<compile_context>
chip_gen: v6e
topology: v6e:2x2x1
jax: 0.10.0
libtpu: 0.0.40
codegen_flags: <defaults>
</compile_context>

<pallas_src>
import functools

import jax
import jax.numpy as jnp
from jax.experimental import pallas as pl
from jax.experimental.pallas import tpu as pltpu

BN_EPS = 1e-5
_VMEM_LIMIT = 32 * 1024 * 1024       # explicit scoped-VMEM budget (safe on v5e..v7x)
_FUSED_BN_BYTES = 4 * 1024 * 1024    # fused-BN path only if f32 activations fit this


def _round_up(x, m):
    return (x + m - 1) // m * m


# ---------------------------------------------------------------------------
# Pallas kernels
# ---------------------------------------------------------------------------
def _matmul_relu_kernel(x_ref, w_ref, o_ref):
    """Tiled GEMM + ReLU.  grid=(M tiles, K tiles); o_ref is the resident f32 acc."""
    k = pl.program_id(1)

    @pl.when(k == 0)
    def _init():
        o_ref[...] = jnp.zeros_like(o_ref)

    o_ref[...] += jnp.dot(x_ref[...], w_ref[...], preferred_element_type=jnp.float32)

    @pl.when(k == pl.num_programs(1) - 1)
    def _finalize():
        o_ref[...] = jnp.maximum(o_ref[...], 0.0)


def _matmul_bn_relu_kernel(x_ref, w_ref, g_ref, b_ref, o_ref, *, m_true, eps):
    """Fused GEMM + BatchNorm(training) + ReLU.  grid=(K tiles,); the full
    (Mp, Coutp) activation stays resident in VMEM, so batch stats are global."""
    k = pl.program_id(0)

    @pl.when(k == 0)
    def _init():
        o_ref[...] = jnp.zeros_like(o_ref)

    o_ref[...] += jnp.dot(x_ref[...], w_ref[...], preferred_element_type=jnp.float32)

    @pl.when(k == pl.num_programs(0) - 1)
    def _finalize():
        y = o_ref[...]
        inv_m = 1.0 / m_true                      # zero-padded rows contribute 0
        mean = jnp.sum(y, axis=0, keepdims=True) * inv_m
        var = jnp.sum(y * y, axis=0, keepdims=True) * inv_m - mean * mean
        scale = g_ref[...] * jax.lax.rsqrt(var + eps)
        shift = b_ref[...] - mean * scale
        o_ref[...] = jnp.maximum(y * scale + shift, 0.0)


def _matmul_stats_kernel(x_ref, w_ref, y_ref, s_ref):
    """Pass 1 of the M-tiled BN path: GEMM + per-M-tile sum / sum-of-squares.
    grid=(M tiles, K tiles).  Stats rows are padded to 8 sublanes."""
    k = pl.program_id(1)

    @pl.when(k == 0)
    def _init():
        y_ref[...] = jnp.zeros_like(y_ref)
        s_ref[...] = jnp.zeros_like(s_ref)

    y_ref[...] += jnp.dot(x_ref[...], w_ref[...], preferred_element_type=jnp.float32)

    @pl.when(k == pl.num_programs(1) - 1)
    def _finalize():
        y = y_ref[...]
        s_ref[0:1, :] = jnp.sum(y, axis=0, keepdims=True)
        s_ref[1:2, :] = jnp.sum(y * y, axis=0, keepdims=True)


def _bn_relu_kernel(y_ref, s_ref, g_ref, b_ref, o_ref, *, m_true, eps):
    """Pass 2 of the M-tiled BN path: normalize with global stats + ReLU.
    grid=(M tiles,)."""
    inv_m = 1.0 / m_true
    mean = s_ref[0:1, :] * inv_m
    var = s_ref[1:2, :] * inv_m - mean * mean
    scale = g_ref[...] * jax.lax.rsqrt(var + eps)
    shift = b_ref[...] - mean * scale
    o_ref[...] = jnp.maximum(y_ref[...] * scale + shift, 0.0)


# ---------------------------------------------------------------------------
# Plain-JAX glue (layout plumbing only)
# ---------------------------------------------------------------------------
def _patch_perm(cin, k):
    """Permutation mapping conv_general_dilated_patches feature order to the
    canonical (ci, kh, kw) row order.  Derived with exact small-integer probes,
    so no assumption about the library's internal ordering is baked in."""
    def probe(code_img):
        p = jax.lax.conv_general_dilated_patches(
            code_img, (k, k), (1, 1), "VALID",
            dimension_numbers=("NHWC", "HWIO", "NHWC"))
        return jnp.round(p.reshape(-1)).astype(jnp.int32)

    ci_img = jnp.broadcast_to(jnp.arange(cin, dtype=jnp.float32), (1, k, k, cin))
    sp_img = jnp.broadcast_to(
        jnp.arange(k * k, dtype=jnp.float32).reshape(1, k, k, 1), (1, k, k, cin))
    ci_idx = probe(ci_img)        # input-channel index of each patch feature
    sp_idx = probe(sp_img)        # flat (kh*k + kw) index of each patch feature
    return ci_idx * (k * k) + sp_idx


def _conv_block(x_nhwc, w_oihw, gamma=None, beta=None, *,
                force_two_pass=False, tile_m=None):
    """One Conv(4, 2, 1, bias=False) [+ BatchNorm] + ReLU layer."""
    n, h, w, cin = x_nhwc.shape
    cout = w_oihw.shape[0]
    ksz = 4

    # im2col: one fused XLA gather; bf16 halves HBM traffic and feeds the MXU.
    patches = jax.lax.conv_general_dilated_patches(
        x_nhwc.astype(jnp.bfloat16), (ksz, ksz), (2, 2), ((1, 1), (1, 1)),
        dimension_numbers=("NHWC", "HWIO", "NHWC"))
    oh, ow = patches.shape[1], patches.shape[2]
    m, kdim = n * oh * ow, patches.shape[3]
    patches = patches.reshape(m, kdim)

    # Weights: PyTorch (Cout, Cin, kh, kw) -> (K, Cout) matching the patch order.
    perm = _patch_perm(cin, ksz)
    w_can = jnp.transpose(w_oihw, (1, 2, 3, 0)).reshape(kdim, cout)
    w_mat = w_can[perm].astype(jnp.bfloat16)

    # Pad to MXU / lane friendly sizes (Cout -> multiple of 128 = lane-dense).
    cp = _round_up(cout, 128)
    tk = min(_round_up(kdim, 128), 256)          # 128-aligned K tiles (tunable/chip)
    kp = _round_up(kdim, tk)
    tm = tile_m if tile_m is not None else min(_round_up(m, 16), 256)
    mp = _round_up(m, tm)
    gm, gk = mp // tm, kp // tk

    patches = jnp.pad(patches, ((0, mp - m), (0, kp - kdim)))
    w_mat = jnp.pad(w_mat, ((0, kp - kdim), (0, cp - cout)))

    flops = 2 * mp * kp * cp
    gemm_bytes = mp * kp * 2 + kp * cp * 2 + mp * cp * 4
    cparams = functools.partial(pltpu.CompilerParams, vmem_limit_bytes=_VMEM_LIMIT)

    if gamma is None:
        # Conv + ReLU (layer 1): M tiles parallel, K reduction accumulates in VMEM.
        out = pl.pallas_call(
            _matmul_relu_kernel,
            grid=(gm, gk),
            in_specs=[pl.BlockSpec((tm, tk), lambda i, k: (i, k)),
                      pl.BlockSpec((tk, cp), lambda i, k: (k, 0))],
            out_specs=pl.BlockSpec((tm, cp), lambda i, k: (i, 0)),
            out_shape=jax.ShapeDtypeStruct((mp, cp), jnp.float32),
            compiler_params=cparams(dimension_semantics=("parallel", "arbitrary")),
            cost_estimate=pl.CostEstimate(flops=flops, transcendentals=0,
                                          bytes_accessed=gemm_bytes),
        )(patches, w_mat)
    else:
        g_p = jnp.pad(gamma.astype(jnp.float32).reshape(1, cout),
                      ((0, 0), (0, cp - cout)))
        b_p = jnp.pad(beta.astype(jnp.float32).reshape(1, cout),
                      ((0, 0), (0, cp - cout)))
        fused_ok = (mp * cp * 4 <= _FUSED_BN_BYTES) and not force_two_pass
        if fused_ok:
            # Whole activation resident in VMEM -> global batch stats in one kernel.
            out = pl.pallas_call(
                functools.partial(_matmul_bn_relu_kernel, m_true=float(m), eps=BN_EPS),
                grid=(gk,),
                in_specs=[pl.BlockSpec((mp, tk), lambda k: (0, k)),
                          pl.BlockSpec((tk, cp), lambda k: (k, 0)),
                          pl.BlockSpec((1, cp), lambda k: (0, 0)),
                          pl.BlockSpec((1, cp), lambda k: (0, 0))],
                out_specs=pl.BlockSpec((mp, cp), lambda k: (0, 0)),
                out_shape=jax.ShapeDtypeStruct((mp, cp), jnp.float32),
                compiler_params=cparams(dimension_semantics=("arbitrary",)),
                cost_estimate=pl.CostEstimate(flops=flops, transcendentals=cp,
                                              bytes_accessed=gemm_bytes),
            )(patches, w_mat, g_p, b_p)
        else:
            # Pass 1: tiled GEMM + per-M-tile sum / sumsq.
            y, part = pl.pallas_call(
                _matmul_stats_kernel,
                grid=(gm, gk),
                in_specs=[pl.BlockSpec((tm, tk), lambda i, k: (i, k)),
                          pl.BlockSpec((tk, cp), lambda i, k: (k, 0))],
                out_specs=[pl.BlockSpec((tm, cp), lambda i, k: (i, 0)),
                           pl.BlockSpec((8, cp), lambda i, k: (i, 0))],
                out_shape=[jax.ShapeDtypeStruct((mp, cp), jnp.float32),
                           jax.ShapeDtypeStruct((8 * gm, cp), jnp.float32)],
                compiler_params=cparams(dimension_semantics=("parallel", "arbitrary")),
                cost_estimate=pl.CostEstimate(
                    flops=flops, transcendentals=0,
                    bytes_accessed=gemm_bytes + 8 * gm * cp * 4),
            )(patches, w_mat)
            stats = part.reshape(gm, 8, cp)[:, :2, :].sum(axis=0)   # (2, cp) global
            # Pass 2: normalize each M tile with the global stats + ReLU.
            out = pl.pallas_call(
                functools.partial(_bn_relu_kernel, m_true=float(m), eps=BN_EPS),
                grid=(gm,),
                in_specs=[pl.BlockSpec((tm, cp), lambda i: (i, 0)),
                          pl.BlockSpec((2, cp), lambda i: (0, 0)),
                          pl.BlockSpec((1, cp), lambda i: (0, 0)),
                          pl.BlockSpec((1, cp), lambda i: (0, 0))],
                out_specs=pl.BlockSpec((tm, cp), lambda i: (i, 0)),
                out_shape=jax.ShapeDtypeStruct((mp, cp), jnp.float32),
                compiler_params=cparams(dimension_semantics=("parallel",)),
                cost_estimate=pl.CostEstimate(flops=3 * mp * cp, transcendentals=cp,
                                              bytes_accessed=2 * mp * cp * 4),
            )(y, stats, g_p, b_p)

    return out[:m, :cout].reshape(n, oh, ow, cout)


# ---------------------------------------------------------------------------
# Encoder forward (mirrors nn.Sequential in the PyTorch module)
# ---------------------------------------------------------------------------
def encoder_forward(x_nchw, params):
    x = jnp.transpose(x_nchw, (0, 2, 3, 1))                        # NCHW -> NHWC
    x = _conv_block(x, params["w1"])                               # Conv + ReLU
    x = _conv_block(x, params["w2"], params["g2"], params["b2"])   # Conv + BN + ReLU
    x = _conv_block(x, params["w3"], params["g3"], params["b3"])   # Conv + BN + ReLU
    x = _conv_block(x, params["w4"], params["g4"], params["b4"])   # Conv + BN + ReLU
    return jnp.transpose(x, (0, 3, 1, 2))                          # NHWC -> NCHW


def _reference_forward(x_nchw, params):
    """Pure-JAX reference with the same bf16-input / f32-accumulate policy."""
    def conv(x, w):
        return jax.lax.conv_general_dilated(
            x.astype(jnp.bfloat16),
            jnp.transpose(w, (2, 3, 1, 0)).astype(jnp.bfloat16),
            (2, 2), ((1, 1), (1, 1)),
            dimension_numbers=("NHWC", "HWIO", "NHWC"),
            preferred_element_type=jnp.float32)

    def bn(y, g, b):
        mean = jnp.mean(y, axis=(0, 1, 2), keepdims=True)
        var = jnp.mean((y - mean) ** 2, axis=(0, 1, 2), keepdims=True)
        return (y - mean) * (g * jax.lax.rsqrt(var + BN_EPS)) + b

    x = jnp.transpose(x_nchw, (0, 2, 3, 1))
    x = jax.nn.relu(conv(x, params["w1"]))
    x = jax.nn.relu(bn(conv(x, params["w2"]), params["g2"], params["b2"]))
    x = jax.nn.relu(bn(conv(x, params["w3"]), params["g3"], params["b3"]))
    x = jax.nn.relu(bn(conv(x, params["w4"]), params["g4"], params["b4"]))
    return jnp.transpose(x, (0, 3, 1, 2))


def init_params(key, n_channel, dim_h):
    """Deterministic synthetic parameter init (PyTorch-like uniform fan-in scale)."""
    ks = jax.random.split(key, 4)

    def conv_w(k, cout, cin):
        bound = 1.0 / jnp.sqrt(jnp.float32(cin * 4 * 4))
        return jax.random.uniform(k, (cout, cin, 4, 4), jnp.float32, -bound, bound)

    return {
        "w1": conv_w(ks[0], dim_h, n_channel),
        "w2": conv_w(ks[1], dim_h * 2, dim_h),
        "g2": jnp.ones((dim_h * 2,), jnp.float32),
        "b2": jnp.zeros((dim_h * 2,), jnp.float32),
        "w3": conv_w(ks[2], dim_h * 4, dim_h * 2),
        "g3": jnp.ones((dim_h * 4,), jnp.float32),
        "b3": jnp.zeros((dim_h * 4,), jnp.float32),
        "w4": conv_w(ks[3], dim_h * 8, dim_h * 4),
        "g4": jnp.ones((dim_h * 8,), jnp.float32),
        "b4": jnp.zeros((dim_h * 8,), jnp.float32),
    }


if __name__ == "__main__":
    key = jax.random.PRNGKey(0)
    kx, kp, kt = jax.random.split(key, 3)

    n_channel, dim_h, n_z = 3, 8, 16  # n_z is unused by forward()
    batch, spatial = 2, 16            # 16 -> 8 -> 4 -> 2 -> 1 after 4 stride-2 convs

    x = jax.random.normal(kx, (batch, n_channel, spatial, spatial), jnp.float32)
    params = init_params(kp, n_channel, dim_h)

    fwd = jax.jit(functools.partial(encoder_forward, params=params))
    out = fwd(x)
    jax.block_until_ready(out)
    assert out.shape == (batch, dim_h * 8, spatial // 16, spatial // 16), out.shape

    # Correctness vs a pure-JAX reference (same bf16 matmul inputs, f32 accumulate).
    ref = jax.jit(functools.partial(_reference_forward, params=params))(x)
    jax.block_until_ready(ref)
    assert bool(jnp.allclose(out, ref, atol=1e-1, rtol=1e-1)), \
        float(jnp.max(jnp.abs(out - ref)))

    # Exercise the M-tiled two-pass BatchNorm path (used for large activations)
    # and check it matches the fused single-block path.
    xt = jax.random.normal(kt, (batch, spatial // 2, spatial // 2, dim_h), jnp.float32)
    fused = jax.jit(lambda a: _conv_block(a, params["w2"], params["g2"],
                                          params["b2"]))(xt)
    tiled = jax.jit(lambda a: _conv_block(a, params["w2"], params["g2"], params["b2"],
                                          force_two_pass=True, tile_m=16))(xt)
    jax.block_until_ready((fused, tiled))
    assert bool(jnp.allclose(fused, tiled, atol=1e-2, rtol=1e-2)), \
        float(jnp.max(jnp.abs(fused - tiled)))

    print("KERNEL_OK")
</pallas_src>

<mosaic_0001>
module attributes {stable_mosaic.version = 11 : i64} {
  func.func @_matmul_relu_kernel(%arg0: i32, %arg1: i32, %arg2: memref<128x128xbf16, #tpu.memory_space<vmem>>, %arg3: memref<128x128xbf16, #tpu.memory_space<vmem>>, %arg4: memref<128x128xf32, #tpu.memory_space<vmem>>) attributes {dimension_semantics = [#tpu.dimension_semantics<parallel>, #tpu.dimension_semantics<arbitrary>], iteration_bounds = array<i64: 1, 1>, scalar_prefetch = 0 : i64, scratch_operands = 0 : i64, tpu.core_type = #tpu.core_type<tc>, window_params = [{transform_indices = @transform_0, window_bounds = array<i64: 128, 128>}, {transform_indices = @transform_1, window_bounds = array<i64: 128, 128>}, {transform_indices = @transform_2, window_bounds = array<i64: 128, 128>}]} {
    %c0_i32 = arith.constant 0 : i32
    %0 = arith.cmpi eq, %arg1, %c0_i32 : i32
    %1 = arith.extui %0 : i1 to i32
    %c0_i32_0 = arith.constant 0 : i32
    %2 = arith.cmpi ne, %1, %c0_i32_0 : i32
    scf.if %2 {
      %cst_10 = arith.constant 0.000000e+00 : f32
      %12 = vector.broadcast %cst_10 : f32 to vector<128x128xf32>
      %c0_11 = arith.constant 0 : index
      %c0_12 = arith.constant 0 : index
      %13 = vector.load %arg4[%c0_11, %c0_12] : memref<128x128xf32, #tpu.memory_space<vmem>>, vector<128x128xf32>
      tpu.vector_store %arg4[%c0_11, %c0_12], %12 {strides = array<i32>} : memref<128x128xf32, #tpu.memory_space<vmem>>, vector<128x128xf32>,
    } else {
    }
    %c0 = arith.constant 0 : index
    %c0_1 = arith.constant 0 : index
    %3 = vector.load %arg4[%c0, %c0_1] : memref<128x128xf32, #tpu.memory_space<vmem>>, vector<128x128xf32>
    %c0_2 = arith.constant 0 : index
    %c0_3 = arith.constant 0 : index
    %4 = vector.load %arg2[%c0_2, %c0_3] : memref<128x128xbf16, #tpu.memory_space<vmem>>, vector<128x128xbf16>
    %c0_4 = arith.constant 0 : index
    %c0_5 = arith.constant 0 : index
    %5 = vector.load %arg3[%c0_4, %c0_5] : memref<128x128xbf16, #tpu.memory_space<vmem>>, vector<128x128xbf16>
    %cst = arith.constant dense<0.000000e+00> : vector<128x128xf32>
    %6 = tpu.matmul %4, %5, %cst {dimension_numbers = #tpu.dot_dimension_numbers<[1], [0], [0], [1], [0, 0, 1, 1], [], []>} : vector<128x128xbf16>, vector<128x128xbf16>, vector<128x128xf32> -> vector<128x128xf32>
    %7 = arith.addf %3, %6 : vector<128x128xf32>
    %c0_6 = arith.constant 0 : index
    %c0_7 = arith.constant 0 : index
    %8 = vector.load %arg4[%c0_6, %c0_7] : memref<128x128xf32, #tpu.memory_space<vmem>>, vector<128x128xf32>
    tpu.vector_store %arg4[%c0_6, %c0_7], %7 {strides = array<i32>} : memref<128x128xf32, #tpu.memory_space<vmem>>, vector<128x128xf32>,
    %c0_i32_8 = arith.constant 0 : i32
    %9 = arith.cmpi eq, %arg1, %c0_i32_8 : i32
    %10 = arith.extui %9 : i1 to i32
    %c0_i32_9 = arith.constant 0 : i32
    %11 = arith.cmpi ne, %10, %c0_i32_9 : i32
    scf.if %11 {
      %c0_10 = arith.constant 0 : index
      %c0_11 = arith.constant 0 : index
      %12 = vector.load %arg4[%c0_10, %c0_11] : memref<128x128xf32, #tpu.memory_space<vmem>>, vector<128x128xf32>
      %cst_12 = arith.constant 0.000000e+00 : f32
      %13 = vector.broadcast %cst_12 : f32 to vector<128x128xf32>
      %14 = arith.maximumf %12, %13 : vector<128x128xf32>
      %c0_13 = arith.constant 0 : index
      %c0_14 = arith.constant 0 : index
      %15 = vector.load %arg4[%c0_13, %c0_14] : memref<128x128xf32, #tpu.memory_space<vmem>>, vector<128x128xf32>
      tpu.vector_store %arg4[%c0_13, %c0_14], %14 {strides = array<i32>} : memref<128x128xf32, #tpu.memory_space<vmem>>, vector<128x128xf32>,
    } else {
    }
    return
  }
  func.func @transform_0(%arg0: i32, %arg1: i32) -> (i32, i32) {
    %c0_i32 = arith.constant 0 : i32
    return %arg0, %arg1 : i32, i32
  }
  func.func @transform_1(%arg0: i32, %arg1: i32) -> (i32, i32) {
    %c0_i32 = arith.constant 0 : i32
    %c0_i32_0 = arith.constant 0 : i32
    return %arg1, %c0_i32 : i32, i32
  }
  func.func @transform_2(%arg0: i32, %arg1: i32) -> (i32, i32) {
    %c0_i32 = arith.constant 0 : i32
    %c0_i32_0 = arith.constant 0 : i32
    return %arg0, %c0_i32 : i32, i32
  }
}

module attributes {stable_mosaic.version = 11 : i64} {
  func.func @_matmul_bn_relu_kernel(%arg0: i32, %arg1: memref<32x128xbf16, #tpu.memory_space<vmem>>, %arg2: memref<128x128xbf16, #tpu.memory_space<vmem>>, %arg3: memref<1x128xf32, #tpu.memory_space<vmem>>, %arg4: memref<1x128xf32, #tpu.memory_space<vmem>>, %arg5: memref<32x128xf32, #tpu.memory_space<vmem>>) attributes {dimension_semantics = [#tpu.dimension_semantics<arbitrary>], iteration_bounds = array<i64: 1>, scalar_prefetch = 0 : i64, scratch_operands = 0 : i64, tpu.core_type = #tpu.core_type<tc>, window_params = [{transform_indices = @transform_0, window_bounds = array<i64: 32, 128>}, {transform_indices = @transform_1, window_bounds = array<i64: 128, 128>}, {pipeline_mode = #tpu.pipeline_mode<synchronous>, transform_indices = @transform_2, window_bounds = array<i64: 1, 128>}, {pipeline_mode = #tpu.pipeline_mode<synchronous>, transform_indices = @transform_3, window_bounds = array<i64: 1, 128>}, {pipeline_mode = #tpu.pipeline_mode<synchronous>, transform_indices = @transform_4, window_bounds = array<i64: 32, 128>}]} {
    %c0_i32 = arith.constant 0 : i32
    %0 = arith.cmpi eq, %arg0, %c0_i32 : i32
    %1 = arith.extui %0 : i1 to i32
    %c0_i32_0 = arith.constant 0 : i32
    %2 = arith.cmpi ne, %1, %c0_i32_0 : i32
    scf.if %2 {
      %cst_10 = arith.constant 0.000000e+00 : f32
      %12 = vector.broadcast %cst_10 : f32 to vector<32x128xf32>
      %c0_11 = arith.constant 0 : index
      %c0_12 = arith.constant 0 : index
      %13 = vector.load %arg5[%c0_11, %c0_12] : memref<32x128xf32, #tpu.memory_space<vmem>>, vector<32x128xf32>
      tpu.vector_store %arg5[%c0_11, %c0_12], %12 {strides = array<i32>} : memref<32x128xf32, #tpu.memory_space<vmem>>, vector<32x128xf32>,
    } else {
    }
    %c0 = arith.constant 0 : index
    %c0_1 = arith.constant 0 : index
    %3 = vector.load %arg5[%c0, %c0_1] : memref<32x128xf32, #tpu.memory_space<vmem>>, vector<32x128xf32>
    %c0_2 = arith.constant 0 : index
    %c0_3 = arith.constant 0 : index
    %4 = vector.load %arg1[%c0_2, %c0_3] : memref<32x128xbf16, #tpu.memory_space<vmem>>, vector<32x128xbf16>
    %c0_4 = arith.constant 0 : index
    %c0_5 = arith.constant 0 : index
    %5 = vector.load %arg2[%c0_4, %c0_5] : memref<128x128xbf16, #tpu.memory_space<vmem>>, vector<128x128xbf16>
    %cst = arith.constant dense<0.000000e+00> : vector<32x128xf32>
    %6 = tpu.matmul %4, %5, %cst {dimension_numbers = #tpu.dot_dimension_numbers<[1], [0], [0], [1], [0, 0, 1, 1], [], []>} : vector<32x128xbf16>, vector<128x128xbf16>, vector<32x128xf32> -> vector<32x128xf32>
    %7 = arith.addf %3, %6 : vector<32x128xf32>
    %c0_6 = arith.constant 0 : index
    %c0_7 = arith.constant 0 : index
    %8 = vector.load %arg5[%c0_6, %c0_7] : memref<32x128xf32, #tpu.memory_space<vmem>>, vector<32x128xf32>
    tpu.vector_store %arg5[%c0_6, %c0_7], %7 {strides = array<i32>} : memref<32x128xf32, #tpu.memory_space<vmem>>, vector<32x128xf32>,
    %c0_i32_8 = arith.constant 0 : i32
    %9 = arith.cmpi eq, %arg0, %c0_i32_8 : i32
    %10 = arith.extui %9 : i1 to i32
    %c0_i32_9 = arith.constant 0 : i32
    %11 = arith.cmpi ne, %10, %c0_i32_9 : i32
    scf.if %11 {
      %c0_10 = arith.constant 0 : index
      %c0_11 = arith.constant 0 : index
      %12 = vector.load %arg5[%c0_10, %c0_11] : memref<32x128xf32, #tpu.memory_space<vmem>>, vector<32x128xf32>
      %cst_12 = arith.constant dense<0.000000e+00> : vector<128xf32>
      %13 = vector.multi_reduction <add>, %12, %cst_12 [0] : vector<32x128xf32> to vector<128xf32>
      %14 = vector.shape_cast %13 : vector<128xf32> to vector<1x128xf32>
      %cst_13 = arith.constant 3.125000e-02 : f32
      %15 = vector.broadcast %cst_13 : f32 to vector<1x128xf32>
      %16 = arith.mulf %14, %15 : vector<1x128xf32>
      %17 = arith.mulf %12, %12 : vector<32x128xf32>
      %cst_14 = arith.constant dense<0.000000e+00> : vector<128xf32>
      %18 = vector.multi_reduction <add>, %17, %cst_14 [0] : vector<32x128xf32> to vector<128xf32>
      %19 = vector.shape_cast %18 : vector<128xf32> to vector<1x128xf32>
      %cst_15 = arith.constant 3.125000e-02 : f32
      %20 = vector.broadcast %cst_15 : f32 to vector<1x128xf32>
      %21 = arith.mulf %19, %20 : vector<1x128xf32>
      %22 = arith.mulf %16, %16 : vector<1x128xf32>
      %23 = arith.subf %21, %22 : vector<1x128xf32>
      %c0_16 = arith.constant 0 : index
      %c0_17 = arith.constant 0 : index
      %24 = vector.load %arg3[%c0_16, %c0_17] : memref<1x128xf32, #tpu.memory_space<vmem>>, vector<1x128xf32>
      %cst_18 = arith.constant 9.99999974E-6 : f32
      %25 = vector.broadcast %cst_18 : f32 to vector<1x128xf32>
      %26 = arith.addf %23, %25 : vector<1x128xf32>
      %27 = math.rsqrt %26 : vector<1x128xf32>
      %28 = arith.mulf %24, %27 : vector<1x128xf32>
      %c0_19 = arith.constant 0 : index
      %c0_20 = arith.constant 0 : index
      %29 = vector.load %arg4[%c0_19, %c0_20] : memref<1x128xf32, #tpu.memory_space<vmem>>, vector<1x128xf32>
      %30 = arith.mulf %16, %28 : vector<1x128xf32>
      %31 = arith.subf %29, %30 : vector<1x128xf32>
      %32 = vector.broadcast %28 : vector<1x128xf32> to vector<32x128xf32>
      %33 = arith.mulf %12, %32 : vector<32x128xf32>
      %34 = vector.broadcast %31 : vector<1x128xf32> to vector<32x128xf32>
      %35 = arith.addf %33, %34 : vector<32x128xf32>
      %cst_21 = arith.constant 0.000000e+00 : f32
      %36 = vector.broadcast %cst_21 : f32 to vector<32x128xf32>
      %37 = arith.maximumf %35, %36 : vector<32x128xf32>
      %c0_22 = arith.constant 0 : index
      %c0_23 = arith.constant 0 : index
      %38 = vector.load %arg5[%c0_22, %c0_23] : memref<32x128xf32, #tpu.memory_space<vmem>>, vector<32x128xf32>
      tpu.vector_store %arg5[%c0_22, %c0_23], %37 {strides = array<i32>} : memref<32x128xf32, #tpu.memory_space<vmem>>, vector<32x128xf32>,
    } else {
    }
    return
  }
  func.func @transform_0(%arg0: i32) -> (i32, i32) {
    %c0_i32 = arith.constant 0 : i32
    %c0_i32_0 = arith.constant 0 : i32
    return %c0_i32, %arg0 : i32, i32
  }
  func.func @transform_1(%arg0: i32) -> (i32, i32) {
    %c0_i32 = arith.constant 0 : i32
    %c0_i32_0 = arith.constant 0 : i32
    return %arg0, %c0_i32 : i32, i32
  }
  func.func @transform_2(%arg0: i32) -> (i32, i32) {
    %c0_i32 = arith.constant 0 : i32
    %c0_i32_0 = arith.constant 0 : i32
    %c0_i32_1 = arith.constant 0 : i32
    return %c0_i32, %c0_i32_0 : i32, i32
  }
  func.func @transform_3(%arg0: i32) -> (i32, i32) {
    %c0_i32 = arith.constant 0 : i32
    %c0_i32_0 = arith.constant 0 : i32
    %c0_i32_1 = arith.constant 0 : i32
    return %c0_i32, %c0_i32_0 : i32, i32
  }
  func.func @transform_4(%arg0: i32) -> (i32, i32) {
    %c0_i32 = arith.constant 0 : i32
    %c0_i32_0 = arith.constant 0 : i32
    %c0_i32_1 = arith.constant 0 : i32
    return %c0_i32, %c0_i32_0 : i32, i32
  }
}

module attributes {stable_mosaic.version = 11 : i64} {
  func.func @_matmul_bn_relu_kernel(%arg0: i32, %arg1: memref<16x256xbf16, #tpu.memory_space<vmem>>, %arg2: memref<256x128xbf16, #tpu.memory_space<vmem>>, %arg3: memref<1x128xf32, #tpu.memory_space<vmem>>, %arg4: memref<1x128xf32, #tpu.memory_space<vmem>>, %arg5: memref<16x128xf32, #tpu.memory_space<vmem>>) attributes {dimension_semantics = [#tpu.dimension_semantics<arbitrary>], iteration_bounds = array<i64: 1>, scalar_prefetch = 0 : i64, scratch_operands = 0 : i64, tpu.core_type = #tpu.core_type<tc>, window_params = [{transform_indices = @transform_0, window_bounds = array<i64: 16, 256>}, {transform_indices = @transform_1, window_bounds = array<i64: 256, 128>}, {pipeline_mode = #tpu.pipeline_mode<synchronous>, transform_indices = @transform_2, window_bounds = array<i64: 1, 128>}, {pipeline_mode = #tpu.pipeline_mode<synchronous>, transform_indices = @transform_3, window_bounds = array<i64: 1, 128>}, {pipeline_mode = #tpu.pipeline_mode<synchronous>, transform_indices = @transform_4, window_bounds = array<i64: 16, 128>}]} {
    %c0_i32 = arith.constant 0 : i32
    %0 = arith.cmpi eq, %arg0, %c0_i32 : i32
    %1 = arith.extui %0 : i1 to i32
    %c0_i32_0 = arith.constant 0 : i32
    %2 = arith.cmpi ne, %1, %c0_i32_0 : i32
    scf.if %2 {
      %cst_10 = arith.constant 0.000000e+00 : f32
      %12 = vector.broadcast %cst_10 : f32 to vector<16x128xf32>
      %c0_11 = arith.constant 0 : index
      %c0_12 = arith.constant 0 : index
      %13 = vector.load %arg5[%c0_11, %c0_12] : memref<16x128xf32, #tpu.memory_space<vmem>>, vector<16x128xf32>
      tpu.vector_store %arg5[%c0_11, %c0_12], %12 {strides = array<i32>} : memref<16x128xf32, #tpu.memory_space<vmem>>, vector<16x128xf32>,
    } else {
    }
    %c0 = arith.constant 0 : index
    %c0_1 = arith.constant 0 : index
    %3 = vector.load %arg5[%c0, %c0_1] : memref<16x128xf32, #tpu.memory_space<vmem>>, vector<16x128xf32>
    %c0_2 = arith.constant 0 : index
    %c0_3 = arith.constant 0 : index
    %4 = vector.load %arg1[%c0_2, %c0_3] : memref<16x256xbf16, #tpu.memory_space<vmem>>, vector<16x256xbf16>
    %c0_4 = arith.constant 0 : index
    %c0_5 = arith.constant 0 : index
    %5 = vector.load %arg2[%c0_4, %c0_5] : memref<256x128xbf16, #tpu.memory_space<vmem>>, vector<256x128xbf16>
    %cst = arith.constant dense<0.000000e+00> : vector<16x128xf32>
    %6 = tpu.matmul %4, %5, %cst {dimension_numbers = #tpu.dot_dimension_numbers<[1], [0], [0], [1], [0, 0, 1, 1], [], []>} : vector<16x256xbf16>, vector<256x128xbf16>, vector<16x128xf32> -> vector<16x128xf32>
    %7 = arith.addf %3, %6 : vector<16x128xf32>
    %c0_6 = arith.constant 0 : index
    %c0_7 = arith.constant 0 : index
    %8 = vector.load %arg5[%c0_6, %c0_7] : memref<16x128xf32, #tpu.memory_space<vmem>>, vector<16x128xf32>
    tpu.vector_store %arg5[%c0_6, %c0_7], %7 {strides = array<i32>} : memref<16x128xf32, #tpu.memory_space<vmem>>, vector<16x128xf32>,
    %c0_i32_8 = arith.constant 0 : i32
    %9 = arith.cmpi eq, %arg0, %c0_i32_8 : i32
    %10 = arith.extui %9 : i1 to i32
    %c0_i32_9 = arith.constant 0 : i32
    %11 = arith.cmpi ne, %10, %c0_i32_9 : i32
    scf.if %11 {
      %c0_10 = arith.constant 0 : index
      %c0_11 = arith.constant 0 : index
      %12 = vector.load %arg5[%c0_10, %c0_11] : memref<16x128xf32, #tpu.memory_space<vmem>>, vector<16x128xf32>
      %cst_12 = arith.constant dense<0.000000e+00> : vector<128xf32>
      %13 = vector.multi_reduction <add>, %12, %cst_12 [0] : vector<16x128xf32> to vector<128xf32>
      %14 = vector.shape_cast %13 : vector<128xf32> to vector<1x128xf32>
      %cst_13 = arith.constant 1.250000e-01 : f32
      %15 = vector.broadcast %cst_13 : f32 to vector<1x128xf32>
      %16 = arith.mulf %14, %15 : vector<1x128xf32>
      %17 = arith.mulf %12, %12 : vector<16x128xf32>
      %cst_14 = arith.constant dense<0.000000e+00> : vector<128xf32>
      %18 = vector.multi_reduction <add>, %17, %cst_14 [0] : vector<16x128xf32> to vector<128xf32>
      %19 = vector.shape_cast %18 : vector<128xf32> to vector<1x128xf32>
      %cst_15 = arith.constant 1.250000e-01 : f32
      %20 = vector.broadcast %cst_15 : f32 to vector<1x128xf32>
      %21 = arith.mulf %19, %20 : vector<1x128xf32>
      %22 = arith.mulf %16, %16 : vector<1x128xf32>
      %23 = arith.subf %21, %22 : vector<1x128xf32>
      %c0_16 = arith.constant 0 : index
      %c0_17 = arith.constant 0 : index
      %24 = vector.load %arg3[%c0_16, %c0_17] : memref<1x128xf32, #tpu.memory_space<vmem>>, vector<1x128xf32>
      %cst_18 = arith.constant 9.99999974E-6 : f32
      %25 = vector.broadcast %cst_18 : f32 to vector<1x128xf32>
      %26 = arith.addf %23, %25 : vector<1x128xf32>
      %27 = math.rsqrt %26 : vector<1x128xf32>
      %28 = arith.mulf %24, %27 : vector<1x128xf32>
      %c0_19 = arith.constant 0 : index
      %c0_20 = arith.constant 0 : index
      %29 = vector.load %arg4[%c0_19, %c0_20] : memref<1x128xf32, #tpu.memory_space<vmem>>, vector<1x128xf32>
      %30 = arith.mulf %16, %28 : vector<1x128xf32>
      %31 = arith.subf %29, %30 : vector<1x128xf32>
      %32 = vector.broadcast %28 : vector<1x128xf32> to vector<16x128xf32>
      %33 = arith.mulf %12, %32 : vector<16x128xf32>
      %34 = vector.broadcast %31 : vector<1x128xf32> to vector<16x128xf32>
      %35 = arith.addf %33, %34 : vector<16x128xf32>
      %cst_21 = arith.constant 0.000000e+00 : f32
      %36 = vector.broadcast %cst_21 : f32 to vector<16x128xf32>
      %37 = arith.maximumf %35, %36 : vector<16x128xf32>
      %c0_22 = arith.constant 0 : index
      %c0_23 = arith.constant 0 : index
      %38 = vector.load %arg5[%c0_22, %c0_23] : memref<16x128xf32, #tpu.memory_space<vmem>>, vector<16x128xf32>
      tpu.vector_store %arg5[%c0_22, %c0_23], %37 {strides = array<i32>} : memref<16x128xf32, #tpu.memory_space<vmem>>, vector<16x128xf32>,
    } else {
    }
    return
  }
  func.func @transform_0(%arg0: i32) -> (i32, i32) {
    %c0_i32 = arith.constant 0 : i32
    %c0_i32_0 = arith.constant 0 : i32
    return %c0_i32, %arg0 : i32, i32
  }
  func.func @transform_1(%arg0: i32) -> (i32, i32) {
    %c0_i32 = arith.constant 0 : i32
    %c0_i32_0 = arith.constant 0 : i32
    return %arg0, %c0_i32 : i32, i32
  }
  func.func @transform_2(%arg0: i32) -> (i32, i32) {
    %c0_i32 = arith.constant 0 : i32
    %c0_i32_0 = arith.constant 0 : i32
    %c0_i32_1 = arith.constant 0 : i32
    return %c0_i32, %c0_i32_0 : i32, i32
  }
  func.func @transform_3(%arg0: i32) -> (i32, i32) {
    %c0_i32 = arith.constant 0 : i32
    %c0_i32_0 = arith.constant 0 : i32
    %c0_i32_1 = arith.constant 0 : i32
    return %c0_i32, %c0_i32_0 : i32, i32
  }
  func.func @transform_4(%arg0: i32) -> (i32, i32) {
    %c0_i32 = arith.constant 0 : i32
    %c0_i32_0 = arith.constant 0 : i32
    %c0_i32_1 = arith.constant 0 : i32
    return %c0_i32, %c0_i32_0 : i32, i32
  }
}

module attributes {stable_mosaic.version = 11 : i64} {
  func.func @_matmul_bn_relu_kernel(%arg0: i32, %arg1: memref<16x256xbf16, #tpu.memory_space<vmem>>, %arg2: memref<256x128xbf16, #tpu.memory_space<vmem>>, %arg3: memref<1x128xf32, #tpu.memory_space<vmem>>, %arg4: memref<1x128xf32, #tpu.memory_space<vmem>>, %arg5: memref<16x128xf32, #tpu.memory_space<vmem>>) attributes {dimension_semantics = [#tpu.dimension_semantics<arbitrary>], iteration_bounds = array<i64: 2>, scalar_prefetch = 0 : i64, scratch_operands = 0 : i64, tpu.core_type = #tpu.core_type<tc>, window_params = [{transform_indices = @transform_0, window_bounds = array<i64: 16, 256>}, {transform_indices = @transform_1, window_bounds = array<i64: 256, 128>}, {pipeline_mode = #tpu.pipeline_mode<synchronous>, transform_indices = @transform_2, window_bounds = array<i64: 1, 128>}, {pipeline_mode = #tpu.pipeline_mode<synchronous>, transform_indices = @transform_3, window_bounds = array<i64: 1, 128>}, {pipeline_mode = #tpu.pipeline_mode<synchronous>, transform_indices = @transform_4, window_bounds = array<i64: 16, 128>}]} {
    %c0_i32 = arith.constant 0 : i32
    %0 = arith.cmpi eq, %arg0, %c0_i32 : i32
    %1 = arith.extui %0 : i1 to i32
    %c0_i32_0 = arith.constant 0 : i32
    %2 = arith.cmpi ne, %1, %c0_i32_0 : i32
    scf.if %2 {
      %cst_9 = arith.constant 0.000000e+00 : f32
      %12 = vector.broadcast %cst_9 : f32 to vector<16x128xf32>
      %c0_10 = arith.constant 0 : index
      %c0_11 = arith.constant 0 : index
      %13 = vector.load %arg5[%c0_10, %c0_11] : memref<16x128xf32, #tpu.memory_space<vmem>>, vector<16x128xf32>
      tpu.vector_store %arg5[%c0_10, %c0_11], %12 {strides = array<i32>} : memref<16x128xf32, #tpu.memory_space<vmem>>, vector<16x128xf32>,
    } else {
    }
    %c0 = arith.constant 0 : index
    %c0_1 = arith.constant 0 : index
    %3 = vector.load %arg5[%c0, %c0_1] : memref<16x128xf32, #tpu.memory_space<vmem>>, vector<16x128xf32>
    %c0_2 = arith.constant 0 : index
    %c0_3 = arith.constant 0 : index
    %4 = vector.load %arg1[%c0_2, %c0_3] : memref<16x256xbf16, #tpu.memory_space<vmem>>, vector<16x256xbf16>
    %c0_4 = arith.constant 0 : index
    %c0_5 = arith.constant 0 : index
    %5 = vector.load %arg2[%c0_4, %c0_5] : memref<256x128xbf16, #tpu.memory_space<vmem>>, vector<256x128xbf16>
    %cst = arith.constant dense<0.000000e+00> : vector<16x128xf32>
    %6 = tpu.matmul %4, %5, %cst {dimension_numbers = #tpu.dot_dimension_numbers<[1], [0], [0], [1], [0, 0, 1, 1], [], []>} : vector<16x256xbf16>, vector<256x128xbf16>, vector<16x128xf32> -> vector<16x128xf32>
    %7 = arith.addf %3, %6 : vector<16x128xf32>
    %c0_6 = arith.constant 0 : index
    %c0_7 = arith.constant 0 : index
    %8 = vector.load %arg5[%c0_6, %c0_7] : memref<16x128xf32, #tpu.memory_space<vmem>>, vector<16x128xf32>
    tpu.vector_store %arg5[%c0_6, %c0_7], %7 {strides = array<i32>} : memref<16x128xf32, #tpu.memory_space<vmem>>, vector<16x128xf32>,
    %c1_i32 = arith.constant 1 : i32
    %9 = arith.cmpi eq, %arg0, %c1_i32 : i32
    %10 = arith.extui %9 : i1 to i32
    %c0_i32_8 = arith.constant 0 : i32
    %11 = arith.cmpi ne, %10, %c0_i32_8 : i32
    scf.if %11 {
      %c0_9 = arith.constant 0 : index
      %c0_10 = arith.constant 0 : index
      %12 = vector.load %arg5[%c0_9, %c0_10] : memref<16x128xf32, #tpu.memory_space<vmem>>, vector<16x128xf32>
      %cst_11 = arith.constant dense<0.000000e+00> : vector<128xf32>
      %13 = vector.multi_reduction <add>, %12, %cst_11 [0] : vector<16x128xf32> to vector<128xf32>
      %14 = vector.shape_cast %13 : vector<128xf32> to vector<1x128xf32>
      %cst_12 = arith.constant 5.000000e-01 : f32
      %15 = vector.broadcast %cst_12 : f32 to vector<1x128xf32>
      %16 = arith.mulf %14, %15 : vector<1x128xf32>
      %17 = arith.mulf %12, %12 : vector<16x128xf32>
      %cst_13 = arith.constant dense<0.000000e+00> : vector<128xf32>
      %18 = vector.multi_reduction <add>, %17, %cst_13 [0] : vector<16x128xf32> to vector<128xf32>
      %19 = vector.shape_cast %18 : vector<128xf32> to vector<1x128xf32>
      %cst_14 = arith.constant 5.000000e-01 : f32
      %20 = vector.broadcast %cst_14 : f32 to vector<1x128xf32>
      %21 = arith.mulf %19, %20 : vector<1x128xf32>
      %22 = arith.mulf %16, %16 : vector<1x128xf32>
      %23 = arith.subf %21, %22 : vector<1x128xf32>
      %c0_15 = arith.constant 0 : index
      %c0_16 = arith.constant 0 : index
      %24 = vector.load %arg3[%c0_15, %c0_16] : memref<1x128xf32, #tpu.memory_space<vmem>>, vector<1x128xf32>
      %cst_17 = arith.constant 9.99999974E-6 : f32
      %25 = vector.broadcast %cst_17 : f32 to vector<1x128xf32>
      %26 = arith.addf %23, %25 : vector<1x128xf32>
      %27 = math.rsqrt %26 : vector<1x128xf32>
      %28 = arith.mulf %24, %27 : vector<1x128xf32>
      %c0_18 = arith.constant 0 : index
      %c0_19 = arith.constant 0 : index
      %29 = vector.load %arg4[%c0_18, %c0_19] : memref<1x128xf32, #tpu.memory_space<vmem>>, vector<1x128xf32>
      %30 = arith.mulf %16, %28 : vector<1x128xf32>
      %31 = arith.subf %29, %30 : vector<1x128xf32>
      %32 = vector.broadcast %28 : vector<1x128xf32> to vector<16x128xf32>
      %33 = arith.mulf %12, %32 : vector<16x128xf32>
      %34 = vector.broadcast %31 : vector<1x128xf32> to vector<16x128xf32>
      %35 = arith.addf %33, %34 : vector<16x128xf32>
      %cst_20 = arith.constant 0.000000e+00 : f32
      %36 = vector.broadcast %cst_20 : f32 to vector<16x128xf32>
      %37 = arith.maximumf %35, %36 : vector<16x128xf32>
      %c0_21 = arith.constant 0 : index
      %c0_22 = arith.constant 0 : index
      %38 = vector.load %arg5[%c0_21, %c0_22] : memref<16x128xf32, #tpu.memory_space<vmem>>, vector<16x128xf32>
      tpu.vector_store %arg5[%c0_21, %c0_22], %37 {strides = array<i32>} : memref<16x128xf32, #tpu.memory_space<vmem>>, vector<16x128xf32>,
    } else {
    }
    return
  }
  func.func @transform_0(%arg0: i32) -> (i32, i32) {
    %c0_i32 = arith.constant 0 : i32
    %c0_i32_0 = arith.constant 0 : i32
    return %c0_i32, %arg0 : i32, i32
  }
  func.func @transform_1(%arg0: i32) -> (i32, i32) {
    %c0_i32 = arith.constant 0 : i32
    %c0_i32_0 = arith.constant 0 : i32
    return %arg0, %c0_i32 : i32, i32
  }
  func.func @transform_2(%arg0: i32) -> (i32, i32) {
    %c0_i32 = arith.constant 0 : i32
    %c0_i32_0 = arith.constant 0 : i32
    %c0_i32_1 = arith.constant 0 : i32
    return %c0_i32, %c0_i32_0 : i32, i32
  }
  func.func @transform_3(%arg0: i32) -> (i32, i32) {
    %c0_i32 = arith.constant 0 : i32
    %c0_i32_0 = arith.constant 0 : i32
    %c0_i32_1 = arith.constant 0 : i32
    return %c0_i32, %c0_i32_0 : i32, i32
  }
  func.func @transform_4(%arg0: i32) -> (i32, i32) {
    %c0_i32 = arith.constant 0 : i32
    %c0_i32_0 = arith.constant 0 : i32
    %c0_i32_1 = arith.constant 0 : i32
    return %c0_i32, %c0_i32_0 : i32, i32
  }
}

</mosaic_0001>

<llo_original>
// kernel: reverse
$region0: #{reverse}
  #allocation0 [shape = 's32[1]{0}', space=sflag, size = 0x4, scoped, tag = 'scoped memory for reverse']
  %s0 = inlined_call_operand.vmem [shape: bf16[4,4,32,512], index: 0, kind: input, shape index: {}]
  %s1 = inlined_call_operand.vmem [shape: bf16[4,4,32,512], index: 1, kind: output, shape index: {}]
  %s2 = scalar_lea.vmem %s0, 960
  %v3 = vld [vmem:[%s2] sm:$0xf]
  %v4 = vunpack.c.l.bf16 %v3
  %v5 = vunpack.c.h.bf16 %v3
  %s6 = scalar_lea.vmem %s0, 704
  %v7 = vld [vmem:[%s6] sm:$0xf]
  %v8 = vunpack.c.l.bf16 %v7
  %v9 = vunpack.c.h.bf16 %v7
  %s10 = scalar_lea.vmem %s1, 256
  %s11 = scalar_lea.vmem %s0, 448
  %v12 = vld [vmem:[%s11] sm:$0xf]
  %v13 = vunpack.c.l.bf16 %v12
  %v14 = vunpack.c.h.bf16 %v12
  %s15 = scalar_lea.vmem %s1, 512
  %s16 = scalar_lea.vmem %s0, 192
  %v17 = vld [vmem:[%s16] sm:$0xf]
  %v18 = vunpack.c.l.bf16 %v17
  %v19 = vunpack.c.h.bf16 %v17
  %s20 = scalar_lea.vmem %s1, 768
  %s21 = scalar_lea.vmem %s0, 896
  %v22 = vld [vmem:[%s21] sm:$0xf]
  %v23 = vunpack.c.l.bf16 %v22
  %v24 = vunpack.c.h.bf16 %v22
  %s25 = scalar_lea.vmem %s1, 64
  %s26 = scalar_lea.vmem %s0, 640
  %v27 = vld [vmem:[%s26] sm:$0xf]
  %v28 = vunpack.c.l.bf16 %v27
  %v29 = vunpack.c.h.bf16 %v27
  %s30 = scalar_lea.vmem %s1, 320
  %s31 = scalar_lea.vmem %s0, 384
  %v32 = vld [vmem:[%s31] sm:$0xf]
  %v33 = vunpack.c.l.bf16 %v32
  %v34 = vunpack.c.h.bf16 %v32
  %s35 = scalar_lea.vmem %s1, 576
  %s36 = scalar_lea.vmem %s0, 128
  %v37 = vld [vmem:[%s36] sm:$0xf]
  %v38 = vunpack.c.l.bf16 %v37
  %v39 = vunpack.c.h.bf16 %v37
  %s40 = scalar_lea.vmem %s1, 832
  %s41 = scalar_lea.vmem %s0, 832
  %v42 = vld [vmem:[%s41] sm:$0xf]
  %v43 = vunpack.c.l.bf16 %v42
  %v44 = vunpack.c.h.bf16 %v42
  %s45 = scalar_lea.vmem %s1, 128
  %s46 = scalar_lea.vmem %s0, 576
  %v47 = vld [vmem:[%s46] sm:$0xf]
  %v48 = vunpack.c.l.bf16 %v47
  %v49 = vunpack.c.h.bf16 %v47
  %s50 = scalar_lea.vmem %s1, 384
  %s51 = scalar_lea.vmem %s0, 320
  %v52 = vld [vmem:[%s51] sm:$0xf]
  %v53 = vunpack.c.l.bf16 %v52
  %v54 = vunpack.c.h.bf16 %v52
  %s55 = scalar_lea.vmem %s1, 640
  %s56 = scalar_lea.vmem %s0, 64
  %v57 = vld [vmem:[%s56] sm:$0xf]
  %v58 = vunpack.c.l.bf16 %v57
  %v59 = vunpack.c.h.bf16 %v57
  %s60 = scalar_lea.vmem %s1, 896
  %s61 = scalar_lea.vmem %s0, 768
  %v62 = vld [vmem:[%s61] sm:$0xf]
  %v63 = vunpack.c.l.bf16 %v62
  %v64 = vunpack.c.h.bf16 %v62
  %s65 = scalar_lea.vmem %s1, 192
  %s66 = scalar_lea.vmem %s0, 512
  %v67 = vld [vmem:[%s66] sm:$0xf]
  %v68 = vunpack.c.l.bf16 %v67
  %v69 = vunpack.c.h.bf16 %v67
  %s70 = scalar_lea.vmem %s1, 448
  %s71 = scalar_lea.vmem %s0, 256
  %v72 = vld [vmem:[%s71] sm:$0xf]
  %v73 = vunpack.c.l.bf16 %v72
  %v74 = vunpack.c.h.bf16 %v72
  %s75 = scalar_lea.vmem %s1, 704
  %v76 = vld [vmem:[%s0] sm:$0xf]
  %v77 = vunpack.c.l.bf16 %v76
  %v78 = vunpack.c.h.bf16 %v76
  %s79 = scalar_lea.vmem %s1, 960
  %s80 = scalar_lea.vmem %s0, 976
  %v81 = vld [vmem:[%s80] sm:$0xf]
  %v82 = vunpack.c.l.bf16 %v81
  %v83 = vunpack.c.h.bf16 %v81
  %s84 = scalar_lea.vmem %s1, 16
  %s85 = scalar_lea.vmem %s0, 720
  %v86 = vld [vmem:[%s85] sm:$0xf]
  %v87 = vunpack.c.l.bf16 %v86
  %v88 = vunpack.c.h.bf16 %v86
  %s89 = scalar_lea.vmem %s1, 272
  %s90 = scalar_lea.vmem %s0, 464
  %v91 = vld [vmem:[%s90] sm:$0xf]
  %v92 = vunpack.c.l.bf16 %v91
  %v93 = vunpack.c.h.bf16 %v91
  %s94 = scalar_lea.vmem %s1, 528
  %s95 = scalar_lea.vmem %s0, 208
  %v96 = vld [vmem:[%s95] sm:$0xf]
  %v97 = vunpack.c.l.bf16 %v96
  %v98 = vunpack.c.h.bf16 %v96
  %s99 = scalar_lea.vmem %s1, 784
  %s100 = scalar_lea.vmem %s0, 912
  %v101 = vld [vmem:[%s100] sm:$0xf]
  %v102 = vunpack.c.l.bf16 %v101
  %v103 = vunpack.c.h.bf16 %v101
  %s104 = scalar_lea.vmem %s1, 80
  %s105 = scalar_lea.vmem %s0, 656
  %v106 = vld [vmem:[%s105] sm:$0xf]
  %v107 = vunpack.c.l.bf16 %v106
  %v108 = vunpack.c.h.bf16 %v106
  %s109 = scalar_lea.vmem %s1, 336
  %s110 = scalar_lea.vmem %s0, 400
  %v111 = vld [vmem:[%s110] sm:$0xf]
  %v112 = vunpack.c.l.bf16 %v111
  %v113 = vunpack.c.h.bf16 %v111
  %s114 = scalar_lea.vmem %s1, 592
  %s115 = scalar_lea.vmem %s0, 144
  %v116 = vld [vmem:[%s115] sm:$0xf]
  %v117 = vunpack.c.l.bf16 %v116
  %v118 = vunpack.c.h.bf16 %v116
  %s119 = scalar_lea.vmem %s1, 848
  %s120 = scalar_lea.vmem %s0, 848
  %v121 = vld [vmem:[%s120] sm:$0xf]
  %v122 = vunpack.c.l.bf16 %v121
  %v123 = vunpack.c.h.bf16 %v121
  %s124 = scalar_lea.vmem %s1, 144
  %s125 = scalar_lea.vmem %s0, 592
  %v126 = vld [vmem:[%s125] sm:$0xf]
  %v127 = vunpack.c.l.bf16 %v126
  %v128 = vunpack.c.h.bf16 %v126
  %s129 = scalar_lea.vmem %s1, 400
  %s130 = scalar_lea.vmem %s0, 336
  %v131 = vld [vmem:[%s130] sm:$0xf]
  %v132 = vunpack.c.l.bf16 %v131
  %v133 = vunpack.c.h.bf16 %v131
  %s134 = scalar_lea.vmem %s1, 656
  %s135 = scalar_lea.vmem %s0, 80
  %v136 = vld [vmem:[%s135] sm:$0xf]
  %v137 = vunpack.c.l.bf16 %v136
  %v138 = vunpack.c.h.bf16 %v136
  %s139 = scalar_lea.vmem %s1, 912
  %s140 = scalar_lea.vmem %s0, 784
  %v141 = vld [vmem:[%s140] sm:$0xf]
  %v142 = vunpack.c.l.bf16 %v141
  %v143 = vunpack.c.h.bf16 %v141
  %s144 = scalar_lea.vmem %s1, 208
  %s145 = scalar_lea.vmem %s0, 528
  %v146 = vld [vmem:[%s145] sm:$0xf]
  %v147 = vunpack.c.l.bf16 %v146
  %v148 = vunpack.c.h.bf16 %v146
  %s149 = scalar_lea.vmem %s1, 464
  %s150 = scalar_lea.vmem %s0, 272
  %v151 = vld [vmem:[%s150] sm:$0xf]
  %v152 = vunpack.c.l.bf16 %v151
  %v153 = vunpack.c.h.bf16 %v151
  %s154 = scalar_lea.vmem %s1, 720
  %s155 = scalar_lea.vmem %s0, 16
  %v156 = vld [vmem:[%s155] sm:$0xf]
  %v157 = vunpack.c.l.bf16 %v156
  %v158 = vunpack.c.h.bf16 %v156
  %s159 = scalar_lea.vmem %s1, 976
  %s160 = scalar_lea.vmem %s0, 992
  %v161 = vld [vmem:[%s160] sm:$0xf]
  %v162 = vunpack.c.l.bf16 %v161
  %v163 = vunpack.c.h.bf16 %v161
  %s164 = scalar_lea.vmem %s1, 32
  %s165 = scalar_lea.vmem %s0, 736
  %v166 = vld [vmem:[%s165] sm:$0xf]
  %v167 = vunpack.c.l.bf16 %v166
  %v168 = vunpack.c.h.bf16 %v166
  %s169 = scalar_lea.vmem %s1, 288
  %s170 = scalar_lea.vmem %s0, 480
  %v171 = vld [vmem:[%s170] sm:$0xf]
  %v172 = vunpack.c.l.bf16 %v171
  %v173 = vunpack.c.h.bf16 %v171
  %s174 = scalar_lea.vmem %s1, 544
  %s175 = scalar_lea.vmem %s0, 224
  %v176 = vld [vmem:[%s175] sm:$0xf]
  %v177 = vunpack.c.l.bf16 %v176
  %v178 = vunpack.c.h.bf16 %v176
  %s179 = scalar_lea.vmem %s1, 800
  %s180 = scalar_lea.vmem %s0, 928
  %v181 = vld [vmem:[%s180] sm:$0xf]
  %v182 = vunpack.c.l.bf16 %v181
  %v183 = vunpack.c.h.bf16 %v181
  %s184 = scalar_lea.vmem %s1, 96
  %s185 = scalar_lea.vmem %s0, 672
  %v186 = vld [vmem:[%s185] sm:$0xf]
  %v187 = vunpack.c.l.bf16 %v186
  %v188 = vunpack.c.h.bf16 %v186
  %s189 = scalar_lea.vmem %s1, 352
  %s190 = scalar_lea.vmem %s0, 416
  %v191 = vld [vmem:[%s190] sm:$0xf]
  %v192 = vunpack.c.l.bf16 %v191
  %v193 = vunpack.c.h.bf16 %v191
  %s194 = scalar_lea.vmem %s1, 608
  %s195 = scalar_lea.vmem %s0, 160
  %v196 = vld [vmem:[%s195] sm:$0xf]
  %v197 = vunpack.c.l.bf16 %v196
  %v198 = vunpack.c.h.bf16 %v196
  %s199 = scalar_lea.vmem %s1, 864
  %s200 = scalar_lea.vmem %s0, 864
  %v201 = vld [vmem:[%s200] sm:$0xf]
  %v202 = vunpack.c.l.bf16 %v201
  %v203 = vunpack.c.h.bf16 %v201
  %s204 = scalar_lea.vmem %s1, 160
  %s205 = scalar_lea.vmem %s0, 608
  %v206 = vld [vmem:[%s205] sm:$0xf]
  %v207 = vunpack.c.l.bf16 %v206
  %v208 = vunpack.c.h.bf16 %v206
  %s209 = scalar_lea.vmem %s1, 416
  %s210 = scalar_lea.vmem %s0, 352
  %v211 = vld [vmem:[%s210] sm:$0xf]
  %v212 = vunpack.c.l.bf16 %v211
  %v213 = vunpack.c.h.bf16 %v211
  %s214 = scalar_lea.vmem %s1, 672
  %s215 = scalar_lea.vmem %s0, 96
  %v216 = vld [vmem:[%s215] sm:$0xf]
  %v217 = vunpack.c.l.bf16 %v216
  %v218 = vunpack.c.h.bf16 %v216
  %s219 = scalar_lea.vmem %s1, 928
  %s220 = scalar_lea.vmem %s0, 800
  %v221 = vld [vmem:[%s220] sm:$0xf]
  %v222 = vunpack.c.l.bf16 %v221
  %v223 = vunpack.c.h.bf16 %v221
  %s224 = scalar_lea.vmem %s1, 224
  %s225 = scalar_lea.vmem %s0, 544
  %v226 = vld [vmem:[%s225] sm:$0xf]
  %v227 = vunpack.c.l.bf16 %v226
  %v228 = vunpack.c.h.bf16 %v226
  %s229 = scalar_lea.vmem %s1, 480
  %s230 = scalar_lea.vmem %s0, 288
  %v231 = vld [vmem:[%s230] sm:$0xf]
  %v232 = vunpack.c.l.bf16 %v231
  %v233 = vunpack.c.h.bf16 %v231
  %s234 = scalar_lea.vmem %s1, 736
  %s235 = scalar_lea.vmem %s0, 32
  %v236 = vld [vmem:[%s235] sm:$0xf]
  %v237 = vunpack.c.l.bf16 %v236
  %v238 = vunpack.c.h.bf16 %v236
  %s239 = scalar_lea.vmem %s1, 992
  %s240 = scalar_lea.vmem %s0, 1008
  %v241 = vld [vmem:[%s240] sm:$0xf]
  %v242 = vunpack.c.l.bf16 %v241
  %v243 = vunpack.c.h.bf16 %v241
  %s244 = scalar_lea.vmem %s1, 48
  %s245 = scalar_lea.vmem %s0, 752
  %v246 = vld [vmem:[%s245] sm:$0xf]
  %v247 = vunpack.c.l.bf16 %v246
  %v248 = vunpack.c.h.bf16 %v246
  %s249 = scalar_lea.vmem %s1, 304
  %s250 = scalar_lea.vmem %s0, 496
  %v251 = vld [vmem:[%s250] sm:$0xf]
  %v252 = vunpack.c.l.bf16 %v251
  %v253 = vunpack.c.h.bf16 %v251
  %s254 = scalar_lea.vmem %s1, 560
  %s255 = scalar_lea.vmem %s0, 240
  %v256 = vld [vmem:[%s255] sm:$0xf]
  %v257 = vunpack.c.l.bf16 %v256
  %v258 = vunpack.c.h.bf16 %v256
  %s259 = scalar_lea.vmem %s1, 816
  %s260 = scalar_lea.vmem %s0, 944
  %v261 = vld [vmem:[%s260] sm:$0xf]
  %v262 = vunpack.c.l.bf16 %v261
  %v263 = vunpack.c.h.bf16 %v261
  %s264 = scalar_lea.vmem %s1, 112
  %s265 = scalar_lea.vmem %s0, 688
  %v266 = vld [vmem:[%s265] sm:$0xf]
  %v267 = vunpack.c.l.bf16 %v266
  %v268 = vunpack.c.h.bf16 %v266
  %s269 = scalar_lea.vmem %s1, 368
  %s270 = scalar_lea.vmem %s0, 432
  %v271 = vld [vmem:[%s270] sm:$0xf]
  %v272 = vunpack.c.l.bf16 %v271
  %v273 = vunpack.c.h.bf16 %v271
  %s274 = scalar_lea.vmem %s1, 624
  %s275 = scalar_lea.vmem %s0, 176
  %v276 = vld [vmem:[%s275] sm:$0xf]
  %v277 = vunpack.c.l.bf16 %v276
  %v278 = vunpack.c.h.bf16 %v276
  %s279 = scalar_lea.vmem %s1, 880
  %s280 = scalar_lea.vmem %s0, 880
  %v281 = vld [vmem:[%s280] sm:$0xf]
  %v282 = vunpack.c.l.bf16 %v281
  %v283 = vunpack.c.h.bf16 %v281
  %s284 = scalar_lea.vmem %s1, 176
  %s285 = scalar_lea.vmem %s0, 624
  %v286 = vld [vmem:[%s285] sm:$0xf]
  %v287 = vunpack.c.l.bf16 %v286
  %v288 = vunpack.c.h.bf16 %v286
  %s289 = scalar_lea.vmem %s1, 432
  %s290 = scalar_lea.vmem %s0, 368
  %v291 = vld [vmem:[%s290] sm:$0xf]
  %v292 = vunpack.c.l.bf16 %v291
  %v293 = vunpack.c.h.bf16 %v291
  %s294 = scalar_lea.vmem %s1, 688
  %s295 = scalar_lea.vmem %s0, 112
  %v296 = vld [vmem:[%s295] sm:$0xf]
  %v297 = vunpack.c.l.bf16 %v296
  %v298 = vunpack.c.h.bf16 %v296
  %s299 = scalar_lea.vmem %s1, 944
  %s300 = scalar_lea.vmem %s0, 816
  %v301 = vld [vmem:[%s300] sm:$0xf]
  %v302 = vunpack.c.l.bf16 %v301
  %v303 = vunpack.c.h.bf16 %v301
  %s304 = scalar_lea.vmem %s1, 240
  %s305 = scalar_lea.vmem %s0, 560
  %v306 = vld [vmem:[%s305] sm:$0xf]
  %v307 = vunpack.c.l.bf16 %v306
  %v308 = vunpack.c.h.bf16 %v306
  %s309 = scalar_lea.vmem %s1, 496
  %s310 = scalar_lea.vmem %s0, 304
  %v311 = vld [vmem:[%s310] sm:$0xf]
  %v312 = vunpack.c.l.bf16 %v311
  %v313 = vunpack.c.h.bf16 %v311
  %s314 = scalar_lea.vmem %s1, 752
  %s315 = scalar_lea.vmem %s0, 48
  %v316 = vld [vmem:[%s315] sm:$0xf]
  %v317 = vunpack.c.l.bf16 %v316
  %v318 = vunpack.c.h.bf16 %v316
  %s319 = scalar_lea.vmem %s1, 1008
  %s320 = scalar_lea.vmem %s0, 964
  %v321 = vld [vmem:[%s320] sm:$0xf]
  %v322 = vunpack.c.l.bf16 %v321
  %v323 = vunpack.c.h.bf16 %v321
  %s324 = scalar_lea.vmem %s1, 4
  %s326 = ssub.s32 0, 4
  %s327 = scalar_lea.vmem %s324, %s326
  %v328 = vpack.c.bf16 %v322, %v4
  %329 = vst [vmem:[%s327] sm:$0xff] %v328
  %s330 = scalar_lea.vmem %s0, 708
  %v331 = vld [vmem:[%s330] sm:$0xf]
  %v332 = vunpack.c.l.bf16 %v331
  %v333 = vunpack.c.h.bf16 %v331
  %s334 = scalar_lea.vmem %s1, 260
  %s336 = ssub.s32 0, 4
  %s337 = scalar_lea.vmem %s334, %s336
  %v338 = vpack.c.bf16 %v332, %v8
  %339 = vst [vmem:[%s337] sm:$0xff] %v338
  %s340 = scalar_lea.vmem %s0, 452
  %v341 = vld [vmem:[%s340] sm:$0xf]
  %v342 = vunpack.c.l.bf16 %v341
  %v343 = vunpack.c.h.bf16 %v341
  %s344 = scalar_lea.vmem %s1, 516
  %s346 = ssub.s32 0, 4
  %s347 = scalar_lea.vmem %s344, %s346
  %v348 = vpack.c.bf16 %v342, %v13
  %349 = vst [vmem:[%s347] sm:$0xff] %v348
  %s350 = scalar_lea.vmem %s0, 196
  %v351 = vld [vmem:[%s350] sm:$0xf]
  %v352 = vunpack.c.l.bf16 %v351
  %v353 = vunpack.c.h.bf16 %v351
  %s354 = scalar_lea.vmem %s1, 772
  %s356 = ssub.s32 0, 4
  %s357 = scalar_lea.vmem %s354, %s356
  %v358 = vpack.c.bf16 %v352, %v18
  %359 = vst [vmem:[%s357] sm:$0xff] %v358
  %s360 = scalar_lea.vmem %s0, 900
  %v361 = vld [vmem:[%s360] sm:$0xf]
  %v362 = vunpack.c.l.bf16 %v361
  %v363 = vunpack.c.h.bf16 %v361
  %s364 = scalar_lea.vmem %s1, 68
  %s366 = ssub.s32 0, 4
  %s367 = scalar_lea.vmem %s364, %s366
  %v368 = vpack.c.bf16 %v362, %v23
  %369 = vst [vmem:[%s367] sm:$0xff] %v368
  %s370 = scalar_lea.vmem %s0, 644
  %v371 = vld [vmem:[%s370] sm:$0xf]
  %v372 = vunpack.c.l.bf16 %v371
  %v373 = vunpack.c.h.bf16 %v371
  %s374 = scalar_lea.vmem %s1, 324
  %s376 = ssub.s32 0, 4
  %s377 = scalar_lea.vmem %s374, %s376
  %v378 = vpack.c.bf16 %v372, %v28
  %379 = vst [vmem:[%s377] sm:$0xff] %v378
  %s380 = scalar_lea.vmem %s0, 388
  %v381 = vld [vmem:[%s380] sm:$0xf]
  %v382 = vunpack.c.l.bf16 %v381
  %v383 = vunpack.c.h.bf16 %v381
  %s384 = scalar_lea.vmem %s1, 580
  %s386 = ssub.s32 0, 4
  %s387 = scalar_lea.vmem %s384, %s386
  %v388 = vpack.c.bf16 %v382, %v33
  %389 = vst [vmem:[%s387] sm:$0xff] %v388
  %s390 = scalar_lea.vmem %s0, 132
  %v391 = vld [vmem:[%s390] sm:$0xf]
  %v392 = vunpack.c.l.bf16 %v391
  %v393 = vunpack.c.h.bf16 %v391
  %s394 = scalar_lea.vmem %s1, 836
  %s396 = ssub.s32 0, 4
  %s397 = scalar_lea.vmem %s394, %s396
  %v398 = vpack.c.bf16 %v392, %v38
  %399 = vst [vmem:[%s397] sm:$0xff] %v398
  %s400 = scalar_lea.vmem %s0, 836
  %v401 = vld [vmem:[%s400] sm:$0xf]
  %v402 = vunpack.c.l.bf16 %v401
  %v403 = vunpack.c.h.bf16 %v401
  %s404 = scalar_lea.vmem %s1, 132
  %s406 = ssub.s32 0, 4
  %s407 = scalar_lea.vmem %s404, %s406
  %v408 = vpack.c.bf16 %v402, %v43
  %409 = vst [vmem:[%s407] sm:$0xff] %v408
  %s410 = scalar_lea.vmem %s0, 580
  %v411 = vld [vmem:[%s410] sm:$0xf]
  %v412 = vunpack.c.l.bf16 %v411
  %v413 = vunpack.c.h.bf16 %v411
  %s414 = scalar_lea.vmem %s1, 388
  %s416 = ssub.s32 0, 4
  %s417 = scalar_lea.vmem %s414, %s416
  %v418 = vpack.c.bf16 %v412, %v48
  %419 = vst [vmem:[%s417] sm:$0xff] %v418
  %s420 = scalar_lea.vmem %s0, 324
  %v421 = vld [vmem:[%s420] sm:$0xf]
  %v422 = vunpack.c.l.bf16 %v421
  %v423 = vunpack.c.h.bf16 %v421
  %s424 = scalar_lea.vmem %s1, 644
  %s426 = ssub.s32 0, 4
  %s427 = scalar_lea.vmem %s424, %s426
  %v428 = vpack.c.bf16 %v422, %v53
  %429 = vst [vmem:[%s427] sm:$0xff] %v428
  %s430 = scalar_lea.vmem %s0, 68
  %v431 = vld [vmem:[%s430] sm:$0xf]
  %v432 = vunpack.c.l.bf16 %v431
  %v433 = vunpack.c.h.bf16 %v431
  %s434 = scalar_lea.vmem %s1, 900
  %s436 = ssub.s32 0, 4
  %s437 = scalar_lea.vmem %s434, %s436
  %v438 = vpack.c.bf16 %v432, %v58
  %439 = vst [vmem:[%s437] sm:$0xff] %v438
  %s440 = scalar_lea.vmem %s0, 772
  %v441 = vld [vmem:[%s440] sm:$0xf]
  %v442 = vunpack.c.l.bf16 %v441
  %v443 = vunpack.c.h.bf16 %v441
  %s444 = scalar_lea.vmem %s1, 196
  %s446 = ssub.s32 0, 4
  %s447 = scalar_lea.vmem %s444, %s446
  %v448 = vpack.c.bf16 %v442, %v63
  %449 = vst [vmem:[%s447] sm:$0xff] %v448
  %s450 = scalar_lea.vmem %s0, 516
  %v451 = vld [vmem:[%s450] sm:$0xf]
  %v452 = vunpack.c.l.bf16 %v451
  %v453 = vunpack.c.h.bf16 %v451
  %s454 = scalar_lea.vmem %s1, 452
  %s456 = ssub.s32 0, 4
  %s457 = scalar_lea.vmem %s454, %s456
  %v458 = vpack.c.bf16 %v452, %v68
  %459 = vst [vmem:[%s457] sm:$0xff] %v458
  %s460 = scalar_lea.vmem %s0, 260
  %v461 = vld [vmem:[%s460] sm:$0xf]
  %v462 = vunpack.c.l.bf16 %v461
  %v463 = vunpack.c.h.bf16 %v461
  %s464 = scalar_lea.vmem %s1, 708
  %s466 = ssub.s32 0, 4
  %s467 = scalar_lea.vmem %s464, %s466
  %v468 = vpack.c.bf16 %v462, %v73
  %469 = vst [vmem:[%s467] sm:$0xff] %v468
  %s470 = scalar_lea.vmem %s0, 4
  %v471 = vld [vmem:[%s470] sm:$0xf]
  %v472 = vunpack.c.l.bf16 %v471
  %v473 = vunpack.c.h.bf16 %v471
  %s474 = scalar_lea.vmem %s1, 964
  %s476 = ssub.s32 0, 4
  %s477 = scalar_lea.vmem %s474, %s476
  %v478 = vpack.c.bf16 %v472, %v77
  %479 = vst [vmem:[%s477] sm:$0xff] %v478
  %s480 = scalar_lea.vmem %s0, 980
  %v481 = vld [vmem:[%s480] sm:$0xf]
  %v482 = vunpack.c.l.bf16 %v481
  %v483 = vunpack.c.h.bf16 %v481
  %s484 = scalar_lea.vmem %s1, 20
  %s486 = ssub.s32 0, 4
  %s487 = scalar_lea.vmem %s484, %s486
  %v488 = vpack.c.bf16 %v482, %v82
  %489 = vst [vmem:[%s487] sm:$0xff] %v488
  %s490 = scalar_lea.vmem %s0, 724
  %v491 = vld [vmem:[%s490] sm:$0xf]
  %v492 = vunpack.c.l.bf16 %v491
  %v493 = vunpack.c.h.bf16 %v491
  %s494 = scalar_lea.vmem %s1, 276
  %s496 = ssub.s32 0, 4
  %s497 = scalar_lea.vmem %s494, %s496
  %v498 = vpack.c.bf16 %v492, %v87
  %499 = vst [vmem:[%s497] sm:$0xff] %v498
  %s500 = scalar_lea.vmem %s0, 468
  %v501 = vld [vmem:[%s500] sm:$0xf]
  %v502 = vunpack.c.l.bf16 %v501
  %v503 = vunpack.c.h.bf16 %v501
  %s504 = scalar_lea.vmem %s1, 532
  %s506 = ssub.s32 0, 4
  %s507 = scalar_lea.vmem %s504, %s506
  %v508 = vpack.c.bf16 %v502, %v92
  %509 = vst [vmem:[%s507] sm:$0xff] %v508
  %s510 = scalar_lea.vmem %s0, 212
  %v511 = vld [vmem:[%s510] sm:$0xf]
  %v512 = vunpack.c.l.bf16 %v511
  %v513 = vunpack.c.h.bf16 %v511
  %s514 = scalar_lea.vmem %s1, 788
  %s516 = ssub.s32 0, 4
  %s517 = scalar_lea.vmem %s514, %s516
  %v518 = vpack.c.bf16 %v512, %v97
  %519 = vst [vmem:[%s517] sm:$0xff] %v518
  %s520 = scalar_lea.vmem %s0, 916
  %v521 = vld [vmem:[%s520] sm:$0xf]
  %v522 = vunpack.c.l.bf16 %v521
  %v523 = vunpack.c.h.bf16 %v521
  %s524 = scalar_lea.vmem %s1, 84
  %s526 = ssub.s32 0, 4
  %s527 = scalar_lea.vmem %s524, %s526
  %v528 = vpack.c.bf16 %v522, %v102
  %529 = vst [vmem:[%s527] sm:$0xff] %v528
  %s530 = scalar_lea.vmem %s0, 660
  %v531 = vld [vmem:[%s530] sm:$0xf]
  %v532 = vunpack.c.l.bf16 %v531
  %v533 = vunpack.c.h.bf16 %v531
  %s534 = scalar_lea.vmem %s1, 340
  %s536 = ssub.s32 0, 4
  %s537 = scalar_lea.vmem %s534, %s536
  %v538 = vpack.c.bf16 %v532, %v107
  %539 = vst [vmem:[%s537] sm:$0xff] %v538
  %s540 = scalar_lea.vmem %s0, 404
  %v541 = vld [vmem:[%s540] sm:$0xf]
  %v542 = vunpack.c.l.bf16 %v541
  %v543 = vunpack.c.h.bf16 %v541
  %s544 = scalar_lea.vmem %s1, 596
  %s546 = ssub.s32 0, 4
  %s547 = scalar_lea.vmem %s544, %s546
  %v548 = vpack.c.bf16 %v542, %v112
  %549 = vst [vmem:[%s547] sm:$0xff] %v548
  %s550 = scalar_lea.vmem %s0, 148
  %v551 = vld [vmem:[%s550] sm:$0xf]
  %v552 = vunpack.c.l.bf16 %v551
  %v553 = vunpack.c.h.bf16 %v551
  %s554 = scalar_lea.vmem %s1, 852
  %s556 = ssub.s32 0, 4
  %s557 = scalar_lea.vmem %s554, %s556
  %v558 = vpack.c.bf16 %v552, %v117
  %559 = vst [vmem:[%s557] sm:$0xff] %v558
  %s560 = scalar_lea.vmem %s0, 852
  %v561 = vld [vmem:[%s560] sm:$0xf]
  %v562 = vunpack.c.l.bf16 %v561
  %v563 = vunpack.c.h.bf16 %v561
  %s564 = scalar_lea.vmem %s1, 148
  %s566 = ssub.s32 0, 4
  %s567 = scalar_lea.vmem %s564, %s566
  %v568 = vpack.c.bf16 %v562, %v122
  %569 = vst [vmem:[%s567] sm:$0xff] %v568
  %s570 = scalar_lea.vmem %s0, 596
  %v571 = vld [vmem:[%s570] sm:$0xf]
  %v572 = vunpack.c.l.bf16 %v571
  %v573 = vunpack.c.h.bf16 %v571
  %s574 = scalar_lea.vmem %s1, 404
  %s576 = ssub.s32 0, 4
  %s577 = scalar_lea.vmem %s574, %s576
  %v578 = vpack.c.bf16 %v572, %v127
  %579 = vst [vmem:[%s577] sm:$0xff] %v578
  %s580 = scalar_lea.vmem %s0, 340
  %v581 = vld [vmem:[%s580] sm:$0xf]
  %v582 = vunpack.c.l.bf16 %v581
  %v583 = vunpack.c.h.bf16 %v581
  %s584 = scalar_lea.vmem %s1, 660
  %s586 = ssub.s32 0, 4
  %s587 = scalar_lea.vmem %s584, %s586
  %v588 = vpack.c.bf16 %v582, %v132
  %589 = vst [vmem:[%s587] sm:$0xff] %v588
  %s590 = scalar_lea.vmem %s0, 84
  %v591 = vld [vmem:[%s590] sm:$0xf]
  %v592 = vunpack.c.l.bf16 %v591
  %v593 = vunpack.c.h.bf16 %v591
  %s594 = scalar_lea.vmem %s1, 916
  %s596 = ssub.s32 0, 4
  %s597 = scalar_lea.vmem %s594, %s596
  %v598 = vpack.c.bf16 %v592, %v137
  %599 = vst [vmem:[%s597] sm:$0xff] %v598
  %s600 = scalar_lea.vmem %s0, 788
  %v601 = vld [vmem:[%s600] sm:$0xf]
  %v602 = vunpack.c.l.bf16 %v601
  %v603 = vunpack.c.h.bf16 %v601
  %s604 = scalar_lea.vmem %s1, 212
  %s606 = ssub.s32 0, 4
  %s607 = scalar_lea.vmem %s604, %s606
  %v608 = vpack.c.bf16 %v602, %v142
  %609 = vst [vmem:[%s607] sm:$0xff] %v608
  %s610 = scalar_lea.vmem %s0, 532
  %v611 = vld [vmem:[%s610] sm:$0xf]
  %v612 = vunpack.c.l.bf16 %v611
  %v613 = vunpack.c.h.bf16 %v611
  %s614 = scalar_lea.vmem %s1, 468
  %s616 = ssub.s32 0, 4
  %s617 = scalar_lea.vmem %s614, %s616
  %v618 = vpack.c.bf16 %v612, %v147
  %619 = vst [vmem:[%s617] sm:$0xff] %v618
  %s620 = scalar_lea.vmem %s0, 276
  %v621 = vld [vmem:[%s620] sm:$0xf]
  %v622 = vunpack.c.l.bf16 %v621
  %v623 = vunpack.c.h.bf16 %v621
  %s624 = scalar_lea.vmem %s1, 724
  %s626 = ssub.s32 0, 4
  %s627 = scalar_lea.vmem %s624, %s626
  %v628 = vpack.c.bf16 %v622, %v152
  %629 = vst [vmem:[%s627] sm:$0xff] %v628
  %s630 = scalar_lea.vmem %s0, 20
  %v631 = vld [vmem:[%s630] sm:$0xf]
  %v632 = vunpack.c.l.bf16 %v631
  %v633 = vunpack.c.h.bf16 %v631
  %s634 = scalar_lea.vmem %s1, 980
  %s636 = ssub.s32 0, 4
  %s637 = scalar_lea.vmem %s634, %s636
  %v638 = vpack.c.bf16 %v632, %v157
  %639 = vst [vmem:[%s637] sm:$0xff] %v638
  %s640 = scalar_lea.vmem %s0, 996
  %v641 = vld [vmem:[%s640] sm:$0xf]
  %v642 = vunpack.c.l.bf16 %v641
  %v643 = vunpack.c.h.bf16 %v641
  %s644 = scalar_lea.vmem %s1, 36
  %s646 = ssub.s32 0, 4
  %s647 = scalar_lea.vmem %s644, %s646
  %v648 = vpack.c.bf16 %v642, %v162
  %649 = vst [vmem:[%s647] sm:$0xff] %v648
  %s650 = scalar_lea.vmem %s0, 740
  %v651 = vld [vmem:[%s650] sm:$0xf]
  %v652 = vunpack.c.l.bf16 %v651
  %v653 = vunpack.c.h.bf16 %v651
  %s654 = scalar_lea.vmem %s1, 292
  %s656 = ssub.s32 0, 4
  %s657 = scalar_lea.vmem %s654, %s656
  %v658 = vpack.c.bf16 %v652, %v167
  %659 = vst [vmem:[%s657] sm:$0xff] %v658
  %s660 = scalar_lea.vmem %s0, 484
  %v661 = vld [vmem:[%s660] sm:$0xf]
  %v662 = vunpack.c.l.bf16 %v661
  %v663 = vunpack.c.h.bf16 %v661
  %s664 = scalar_lea.vmem %s1, 548
  %s666 = ssub.s32 0, 4
  %s667 = scalar_lea.vmem %s664, %s666
  %v668 = vpack.c.bf16 %v662, %v172
  %669 = vst [vmem:[%s667] sm:$0xff] %v668
  %s670 = scalar_lea.vmem %s0, 228
  %v671 = vld [vmem:[%s670] sm:$0xf]
  %v672 = vunpack.c.l.bf16 %v671
  %v673 = vunpack.c.h.bf16 %v671
  %s674 = scalar_lea.vmem %s1, 804
  %s676 = ssub.s32 0, 4
  %s677 = scalar_lea.vmem %s674, %s676
  %v678 = vpack.c.bf16 %v672, %v177
  %679 = vst [vmem:[%s677] sm:$0xff] %v678
  %s680 = scalar_lea.vmem %s0, 932
  %v681 = vld [vmem:[%s680] sm:$0xf]
  %v682 = vunpack.c.l.bf16 %v681
  %v683 = vunpack.c.h.bf16 %v681
  %s684 = scalar_lea.vmem %s1, 100
  %s686 = ssub.s32 0, 4
  %s687 = scalar_lea.vmem %s684, %s686
  %v688 = vpack.c.bf16 %v682, %v182
  %689 = vst [vmem:[%s687] sm:$0xff] %v688
  %s690 = scalar_lea.vmem %s0, 676
  %v691 = vld [vmem:[%s690] sm:$0xf]
  %v692 = vunpack.c.l.bf16 %v691
  %v693 = vunpack.c.h.bf16 %v691
  %s694 = scalar_lea.vmem %s1, 356
  %s696 = ssub.s32 0, 4
  %s697 = scalar_lea.vmem %s694, %s696
  %v698 = vpack.c.bf16 %v692, %v187
  %699 = vst [vmem:[%s697] sm:$0xff] %v698
  %s700 = scalar_lea.vmem %s0, 420
  %v701 = vld [vmem:[%s700] sm:$0xf]
  %v702 = vunpack.c.l.bf16 %v701
  %v703 = vunpack.c.h.bf16 %v701
  %s704 = scalar_lea.vmem %s1, 612
  %s706 = ssub.s32 0, 4
  %s707 = scalar_lea.vmem %s704, %s706
  %v708 = vpack.c.bf16 %v702, %v192
  %709 = vst [vmem:[%s707] sm:$0xff] %v708
  %s710 = scalar_lea.vmem %s0, 164
  %v711 = vld [vmem:[%s710] sm:$0xf]
  %v712 = vunpack.c.l.bf16 %v711
  %v713 = vunpack.c.h.bf16 %v711
  %s714 = scalar_lea.vmem %s1, 868
  %s716 = ssub.s32 0, 4
  %s717 = scalar_lea.vmem %s714, %s716
  %v718 = vpack.c.bf16 %v712, %v197
  %719 = vst [vmem:[%s717] sm:$0xff] %v718
  %s720 = scalar_lea.vmem %s0, 868
  %v721 = vld [vmem:[%s720] sm:$0xf]
  %v722 = vunpack.c.l.bf16 %v721
  %v723 = vunpack.c.h.bf16 %v721
  %s724 = scalar_lea.vmem %s1, 164
  %s726 = ssub.s32 0, 4
  %s727 = scalar_lea.vmem %s724, %s726
  %v728 = vpack.c.bf16 %v722, %v202
  %729 = vst [vmem:[%s727] sm:$0xff] %v728
  %s730 = scalar_lea.vmem %s0, 612
  %v731 = vld [vmem:[%s730] sm:$0xf]
  %v732 = vunpack.c.l.bf16 %v731
  %v733 = vunpack.c.h.bf16 %v731
  %s734 = scalar_lea.vmem %s1, 420
  %s736 = ssub.s32 0, 4
  %s737 = scalar_lea.vmem %s734, %s736
  %v738 = vpack.c.bf16 %v732, %v207
  %739 = vst [vmem:[%s737] sm:$0xff] %v738
  %s740 = scalar_lea.vmem %s0, 356
  %v741 = vld [vmem:[%s740] sm:$0xf]
  %v742 = vunpack.c.l.bf16 %v741
  %v743 = vunpack.c.h.bf16 %v741
  %s744 = scalar_lea.vmem %s1, 676
  %s746 = ssub.s32 0, 4
  %s747 = scalar_lea.vmem %s744, %s746
  %v748 = vpack.c.bf16 %v742, %v212
  %749 = vst [vmem:[%s747] sm:$0xff] %v748
  %s750 = scalar_lea.vmem %s0, 100
  %v751 = vld [vmem:[%s750] sm:$0xf]
  %v752 = vunpack.c.l.bf16 %v751
  %v753 = vunpack.c.h.bf16 %v751
  %s754 = scalar_lea.vmem %s1, 932
  %s756 = ssub.s32 0, 4
  %s757 = scalar_lea.vmem %s754, %s756
  %v758 = vpack.c.bf16 %v752, %v217
  %759 = vst [vmem:[%s757] sm:$0xff] %v758
  %s760 = scalar_lea.vmem %s0, 804
  %v761 = vld [vmem:[%s760] sm:$0xf]
  %v762 = vunpack.c.l.bf16 %v761
  %v763 = vunpack.c.h.bf16 %v761
  %s764 = scalar_lea.vmem %s1, 228
  %s766 = ssub.s32 0, 4
  %s767 = scalar_lea.vmem %s764, %s766
  %v768 = vpack.c.bf16 %v762, %v222
  %769 = vst [vmem:[%s767] sm:$0xff] %v768
  %s770 = scalar_lea.vmem %s0, 548
  %v771 = vld [vmem:[%s770] sm:$0xf]
  %v772 = vunpack.c.l.bf16 %v771
  %v773 = vunpack.c.h.bf16 %v771
  %s774 = scalar_lea.vmem %s1, 484
  %s776 = ssub.s32 0, 4
  %s777 = scalar_lea.vmem %s774, %s776
  %v778 = vpack.c.bf16 %v772, %v227
  %779 = vst [vmem:[%s777] sm:$0xff] %v778
  %s780 = scalar_lea.vmem %s0, 292
  %v781 = vld [vmem:[%s780] sm:$0xf]
  %v782 = vunpack.c.l.bf16 %v781
  %v783 = vunpack.c.h.bf16 %v781
  %s784 = scalar_lea.vmem %s1, 740
  %s786 = ssub.s32 0, 4
  %s787 = scalar_lea.vmem %s784, %s786
  %v788 = vpack.c.bf16 %v782, %v232
  %789 = vst [vmem:[%s787] sm:$0xff] %v788
  %s790 = scalar_lea.vmem %s0, 36
  %v791 = vld [vmem:[%s790] sm:$0xf]
  %v792 = vunpack.c.l.bf16 %v791
  %v793 = vunpack.c.h.bf16 %v791
  %s794 = scalar_lea.vmem %s1, 996
  %s796 = ssub.s32 0, 4
  %s797 = scalar_lea.vmem %s794, %s796
  %v798 = vpack.c.bf16 %v792, %v237
  %799 = vst [vmem:[%s797] sm:$0xff] %v798
  %s800 = scalar_lea.vmem %s0, 1012
  %v801 = vld [vmem:[%s800] sm:$0xf]
  %v802 = vunpack.c.l.bf16 %v801
  %v803 = vunpack.c.h.bf16 %v801
  %s804 = scalar_lea.vmem %s1, 52
  %s806 = ssub.s32 0, 4
  %s807 = scalar_lea.vmem %s804, %s806
  %v808 = vpack.c.bf16 %v802, %v242
  %809 = vst [vmem:[%s807] sm:$0xff] %v808
  %s810 = scalar_lea.vmem %s0, 756
  %v811 = vld [vmem:[%s810] sm:$0xf]
  %v812 = vunpack.c.l.bf16 %v811
  %v813 = vunpack.c.h.bf16 %v811
  %s814 = scalar_lea.vmem %s1, 308
  %s816 = ssub.s32 0, 4
  %s817 = scalar_lea.vmem %s814, %s816
  %v818 = vpack.c.bf16 %v812, %v247
  %819 = vst [vmem:[%s817] sm:$0xff] %v818
  %s820 = scalar_lea.vmem %s0, 500
  %v821 = vld [vmem:[%s820] sm:$0xf]
  %v822 = vunpack.c.l.bf16 %v821
  %v823 = vunpack.c.h.bf16 %v821
  %s824 = scalar_lea.vmem %s1, 564
  %s826 = ssub.s32 0, 4
  %s827 = scalar_lea.vmem %s824, %s826
  %v828 = vpack.c.bf16 %v822, %v252
  %829 = vst [vmem:[%s827] sm:$0xff] %v828
  %s830 = scalar_lea.vmem %s0, 244
  %v831 = vld [vmem:[%s830] sm:$0xf]
  %v832 = vunpack.c.l.bf16 %v831
  %v833 = vunpack.c.h.bf16 %v831
  %s834 = scalar_lea.vmem %s1, 820
  %s836 = ssub.s32 0, 4
  %s837 = scalar_lea.vmem %s834, %s836
  %v838 = vpack.c.bf16 %v832, %v257
  %839 = vst [vmem:[%s837] sm:$0xff] %v838
  %s840 = scalar_lea.vmem %s0, 948
  %v841 = vld [vmem:[%s840] sm:$0xf]
  %v842 = vunpack.c.l.bf16 %v841
  %v843 = vunpack.c.h.bf16 %v841
  %s844 = scalar_lea.vmem %s1, 116
  %s846 = ssub.s32 0, 4
  %s847 = scalar_lea.vmem %s844, %s846
  %v848 = vpack.c.bf16 %v842, %v262
  %849 = vst [vmem:[%s847] sm:$0xff] %v848
  %s850 = scalar_lea.vmem %s0, 692
  %v851 = vld [vmem:[%s850] sm:$0xf]
  %v852 = vunpack.c.l.bf16 %v851
  %v853 = vunpack.c.h.bf16 %v851
  %s854 = scalar_lea.vmem %s1, 372
  %s856 = ssub.s32 0, 4
  %s857 = scalar_lea.vmem %s854, %s856
  %v858 = vpack.c.bf16 %v852, %v267
  %859 = vst [vmem:[%s857] sm:$0xff] %v858
  %s860 = scalar_lea.vmem %s0, 436
  %v861 = vld [vmem:[%s860] sm:$0xf]
  %v862 = vunpack.c.l.bf16 %v861
  %v863 = vunpack.c.h.bf16 %v861
  %s864 = scalar_lea.vmem %s1, 628
  %s866 = ssub.s32 0, 4
  %s867 = scalar_lea.vmem %s864, %s866
  %v868 = vpack.c.bf16 %v862, %v272
  %869 = vst [vmem:[%s867] sm:$0xff] %v868
  %s870 = scalar_lea.vmem %s0, 180
  %v871 = vld [vmem:[%s870] sm:$0xf]
  %v872 = vunpack.c.l.bf16 %v871
  %v873 = vunpack.c.h.bf16 %v871
  %s874 = scalar_lea.vmem %s1, 884
  %s876 = ssub.s32 0, 4
  %s877 = scalar_lea.vmem %s874, %s876
  %v878 = vpack.c.bf16 %v872, %v277
  %879 = vst [vmem:[%s877] sm:$0xff] %v878
  %s880 = scalar_lea.vmem %s0, 884
  %v881 = vld [vmem:[%s880] sm:$0xf]
  %v882 = vunpack.c.l.bf16 %v881
  %v883 = vunpack.c.h.bf16 %v881
  %s884 = scalar_lea.vmem %s1, 180
  %s886 = ssub.s32 0, 4
  %s887 = scalar_lea.vmem %s884, %s886
  %v888 = vpack.c.bf16 %v882, %v282
  %889 = vst [vmem:[%s887] sm:$0xff] %v888
  %s890 = scalar_lea.vmem %s0, 628
  %v891 = vld [vmem:[%s890] sm:$0xf]
  %v892 = vunpack.c.l.bf16 %v891
  %v893 = vunpack.c.h.bf16 %v891
  %s894 = scalar_lea.vmem %s1, 436
  %s896 = ssub.s32 0, 4
  %s897 = scalar_lea.vmem %s894, %s896
  %v898 = vpack.c.bf16 %v892, %v287
  %899 = vst [vmem:[%s897] sm:$0xff] %v898
  %s900 = scalar_lea.vmem %s0, 372
  %v901 = vld [vmem:[%s900] sm:$0xf]
  %v902 = vunpack.c.l.bf16 %v901
  %v903 = vunpack.c.h.bf16 %v901
  %s904 = scalar_lea.vmem %s1, 692
  %s906 = ssub.s32 0, 4
  %s907 = scalar_lea.vmem %s904, %s906
  %v908 = vpack.c.bf16 %v902, %v292
  %909 = vst [vmem:[%s907] sm:$0xff] %v908
  %s910 = scalar_lea.vmem %s0, 116
  %v911 = vld [vmem:[%s910] sm:$0xf]
  %v912 = vunpack.c.l.bf16 %v911
  %v913 = vunpack.c.h.bf16 %v911
  %s914 = scalar_lea.vmem %s1, 948
  %s916 = ssub.s32 0, 4
  %s917 = scalar_lea.vmem %s914, %s916
  %v918 = vpack.c.bf16 %v912, %v297
  %919 = vst [vmem:[%s917] sm:$0xff] %v918
  %s920 = scalar_lea.vmem %s0, 820
  %v921 = vld [vmem:[%s920] sm:$0xf]
  %v922 = vunpack.c.l.bf16 %v921
  %v923 = vunpack.c.h.bf16 %v921
  %s924 = scalar_lea.vmem %s1, 244
  %s926 = ssub.s32 0, 4
  %s927 = scalar_lea.vmem %s924, %s926
  %v928 = vpack.c.bf16 %v922, %v302
  %929 = vst [vmem:[%s927] sm:$0xff] %v928
  %s930 = scalar_lea.vmem %s0, 564
  %v931 = vld [vmem:[%s930] sm:$0xf]
  %v932 = vunpack.c.l.bf16 %v931
  %v933 = vunpack.c.h.bf16 %v931
  %s934 = scalar_lea.vmem %s1, 500
  %s936 = ssub.s32 0, 4
  %s937 = scalar_lea.vmem %s934, %s936
  %v938 = vpack.c.bf16 %v932, %v307
  %939 = vst [vmem:[%s937] sm:$0xff] %v938
  %s940 = scalar_lea.vmem %s0, 308
  %v941 = vld [vmem:[%s940] sm:$0xf]
  %v942 = vunpack.c.l.bf16 %v941
  %v943 = vunpack.c.h.bf16 %v941
  %s944 = scalar_lea.vmem %s1, 756
  %s946 = ssub.s32 0, 4
  %s947 = scalar_lea.vmem %s944, %s946
  %v948 = vpack.c.bf16 %v942, %v312
  %949 = vst [vmem:[%s947] sm:$0xff] %v948
  %s950 = scalar_lea.vmem %s0, 52
  %v951 = vld [vmem:[%s950] sm:$0xf]
  %v952 = vunpack.c.l.bf16 %v951
  %v953 = vunpack.c.h.bf16 %v951
  %s954 = scalar_lea.vmem %s1, 1012
  %s956 = ssub.s32 0, 4
  %s957 = scalar_lea.vmem %s954, %s956
  %v958 = vpack.c.bf16 %v952, %v317
  %959 = vst [vmem:[%s957] sm:$0xff] %v958
  %s960 = scalar_lea.vmem %s0, 968
  %v961 = vld [vmem:[%s960] sm:$0xf]
  %v962 = vunpack.c.l.bf16 %v961
  %v963 = vunpack.c.h.bf16 %v961
  %s964 = scalar_lea.vmem %s1, 8
  %s965 = scalar_lea.vmem %s0, 712
  %v966 = vld [vmem:[%s965] sm:$0xf]
  %v967 = vunpack.c.l.bf16 %v966
  %v968 = vunpack.c.h.bf16 %v966
  %s969 = scalar_lea.vmem %s1, 264
  %s970 = scalar_lea.vmem %s0, 456
  %v971 = vld [vmem:[%s970] sm:$0xf]
  %v972 = vunpack.c.l.bf16 %v971
  %v973 = vunpack.c.h.bf16 %v971
  %s974 = scalar_lea.vmem %s1, 520
  %s975 = scalar_lea.vmem %s0, 200
  %v976 = vld [vmem:[%s975] sm:$0xf]
  %v977 = vunpack.c.l.bf16 %v976
  %v978 = vunpack.c.h.bf16 %v976
  %s979 = scalar_lea.vmem %s1, 776
  %s980 = scalar_lea.vmem %s0, 904
  %v981 = vld [vmem:[%s980] sm:$0xf]
  %v982 = vunpack.c.l.bf16 %v981
  %v983 = vunpack.c.h.bf16 %v981
  %s984 = scalar_lea.vmem %s1, 72
  %s985 = scalar_lea.vmem %s0, 648
  %v986 = vld [vmem:[%s985] sm:$0xf]
  %v987 = vunpack.c.l.bf16 %v986
  %v988 = vunpack.c.h.bf16 %v986
  %s989 = scalar_lea.vmem %s1, 328
  %s990 = scalar_lea.vmem %s0, 392
  %v991 = vld [vmem:[%s990] sm:$0xf]
  %v992 = vunpack.c.l.bf16 %v991
  %v993 = vunpack.c.h.bf16 %v991
  %s994 = scalar_lea.vmem %s1, 584
  %s995 = scalar_lea.vmem %s0, 136
  %v996 = vld [vmem:[%s995] sm:$0xf]
  %v997 = vunpack.c.l.bf16 %v996
  %v998 = vunpack.c.h.bf16 %v996
  %s999 = scalar_lea.vmem %s1, 840
  %s1000 = scalar_lea.vmem %s0, 840
  %v1001 = vld [vmem:[%s1000] sm:$0xf]
  %v1002 = vunpack.c.l.bf16 %v1001
  %v1003 = vunpack.c.h.bf16 %v1001
  %s1004 = scalar_lea.vmem %s1, 136
  %s1005 = scalar_lea.vmem %s0, 584
  %v1006 = vld [vmem:[%s1005] sm:$0xf]
  %v1007 = vunpack.c.l.bf16 %v1006
  %v1008 = vunpack.c.h.bf16 %v1006
  %s1009 = scalar_lea.vmem %s1, 392
  %s1010 = scalar_lea.vmem %s0, 328
  %v1011 = vld [vmem:[%s1010] sm:$0xf]
  %v1012 = vunpack.c.l.bf16 %v1011
  %v1013 = vunpack.c.h.bf16 %v1011
  %s1014 = scalar_lea.vmem %s1, 648
  %s1015 = scalar_lea.vmem %s0, 72
  %v1016 = vld [vmem:[%s1015] sm:$0xf]
  %v1017 = vunpack.c.l.bf16 %v1016
  %v1018 = vunpack.c.h.bf16 %v1016
  %s1019 = scalar_lea.vmem %s1, 904
  %s1020 = scalar_lea.vmem %s0, 776
  %v1021 = vld [vmem:[%s1020] sm:$0xf]
  %v1022 = vunpack.c.l.bf16 %v1021
  %v1023 = vunpack.c.h.bf16 %v1021
  %s1024 = scalar_lea.vmem %s1, 200
  %s1025 = scalar_lea.vmem %s0, 520
  %v1026 = vld [vmem:[%s1025] sm:$0xf]
  %v1027 = vunpack.c.l.bf16 %v1026
  %v1028 = vunpack.c.h.bf16 %v1026
  %s1029 = scalar_lea.vmem %s1, 456
  %s1030 = scalar_lea.vmem %s0, 264
  %v1031 = vld [vmem:[%s1030] sm:$0xf]
  %v1032 = vunpack.c.l.bf16 %v1031
  %v1033 = vunpack.c.h.bf16 %v1031
  %s1034 = scalar_lea.vmem %s1, 712
  %s1035 = scalar_lea.vmem %s0, 8
  %v1036 = vld [vmem:[%s1035] sm:$0xf]
  %v1037 = vunpack.c.l.bf16 %v1036
  %v1038 = vunpack.c.h.bf16 %v1036
  %s1039 = scalar_lea.vmem %s1, 968
  %s1040 = scalar_lea.vmem %s0, 984
  %v1041 = vld [vmem:[%s1040] sm:$0xf]
  %v1042 = vunpack.c.l.bf16 %v1041
  %v1043 = vunpack.c.h.bf16 %v1041
  %s1044 = scalar_lea.vmem %s1, 24
  %s1045 = scalar_lea.vmem %s0, 728
  %v1046 = vld [vmem:[%s1045] sm:$0xf]
  %v1047 = vunpack.c.l.bf16 %v1046
  %v1048 = vunpack.c.h.bf16 %v1046
  %s1049 = scalar_lea.vmem %s1, 280
  %s1050 = scalar_lea.vmem %s0, 472
  %v1051 = vld [vmem:[%s1050] sm:$0xf]
  %v1052 = vunpack.c.l.bf16 %v1051
  %v1053 = vunpack.c.h.bf16 %v1051
  %s1054 = scalar_lea.vmem %s1, 536
  %s1055 = scalar_lea.vmem %s0, 216
  %v1056 = vld [vmem:[%s1055] sm:$0xf]
  %v1057 = vunpack.c.l.bf16 %v1056
  %v1058 = vunpack.c.h.bf16 %v1056
  %s1059 = scalar_lea.vmem %s1, 792
  %s1060 = scalar_lea.vmem %s0, 920
  %v1061 = vld [vmem:[%s1060] sm:$0xf]
  %v1062 = vunpack.c.l.bf16 %v1061
  %v1063 = vunpack.c.h.bf16 %v1061
  %s1064 = scalar_lea.vmem %s1, 88
  %s1065 = scalar_lea.vmem %s0, 664
  %v1066 = vld [vmem:[%s1065] sm:$0xf]
  %v1067 = vunpack.c.l.bf16 %v1066
  %v1068 = vunpack.c.h.bf16 %v1066
  %s1069 = scalar_lea.vmem %s1, 344
  %s1070 = scalar_lea.vmem %s0, 408
  %v1071 = vld [vmem:[%s1070] sm:$0xf]
  %v1072 = vunpack.c.l.bf16 %v1071
  %v1073 = vunpack.c.h.bf16 %v1071
  %s1074 = scalar_lea.vmem %s1, 600
  %s1075 = scalar_lea.vmem %s0, 152
  %v1076 = vld [vmem:[%s1075] sm:$0xf]
  %v1077 = vunpack.c.l.bf16 %v1076
  %v1078 = vunpack.c.h.bf16 %v1076
  %s1079 = scalar_lea.vmem %s1, 856
  %s1080 = scalar_lea.vmem %s0, 856
  %v1081 = vld [vmem:[%s1080] sm:$0xf]
  %v1082 = vunpack.c.l.bf16 %v1081
  %v1083 = vunpack.c.h.bf16 %v1081
  %s1084 = scalar_lea.vmem %s1, 152
  %s1085 = scalar_lea.vmem %s0, 600
  %v1086 = vld [vmem:[%s1085] sm:$0xf]
  %v1087 = vunpack.c.l.bf16 %v1086
  %v1088 = vunpack.c.h.bf16 %v1086
  %s1089 = scalar_lea.vmem %s1, 408
  %s1090 = scalar_lea.vmem %s0, 344
  %v1091 = vld [vmem:[%s1090] sm:$0xf]
  %v1092 = vunpack.c.l.bf16 %v1091
  %v1093 = vunpack.c.h.bf16 %v1091
  %s1094 = scalar_lea.vmem %s1, 664
  %s1095 = scalar_lea.vmem %s0, 88
  %v1096 = vld [vmem:[%s1095] sm:$0xf]
  %v1097 = vunpack.c.l.bf16 %v1096
  %v1098 = vunpack.c.h.bf16 %v1096
  %s1099 = scalar_lea.vmem %s1, 920
  %s1100 = scalar_lea.vmem %s0, 792
  %v1101 = vld [vmem:[%s1100] sm:$0xf]
  %v1102 = vunpack.c.l.bf16 %v1101
  %v1103 = vunpack.c.h.bf16 %v1101
  %s1104 = scalar_lea.vmem %s1, 216
  %s1105 = scalar_lea.vmem %s0, 536
  %v1106 = vld [vmem:[%s1105] sm:$0xf]
  %v1107 = vunpack.c.l.bf16 %v1106
  %v1108 = vunpack.c.h.bf16 %v1106
  %s1109 = scalar_lea.vmem %s1, 472
  %s1110 = scalar_lea.vmem %s0, 280
  %v1111 = vld [vmem:[%s1110] sm:$0xf]
  %v1112 = vunpack.c.l.bf16 %v1111
  %v1113 = vunpack.c.h.bf16 %v1111
  %s1114 = scalar_lea.vmem %s1, 728
  %s1115 = scalar_lea.vmem %s0, 24
  %v1116 = vld [vmem:[%s1115] sm:$0xf]
  %v1117 = vunpack.c.l.bf16 %v1116
  %v1118 = vunpack.c.h.bf16 %v1116
  %s1119 = scalar_lea.vmem %s1, 984
  %s1120 = scalar_lea.vmem %s0, 1000
  %v1121 = vld [vmem:[%s1120] sm:$0xf]
  %v1122 = vunpack.c.l.bf16 %v1121
  %v1123 = vunpack.c.h.bf16 %v1121
  %s1124 = scalar_lea.vmem %s1, 40
  %s1125 = scalar_lea.vmem %s0, 744
  %v1126 = vld [vmem:[%s1125] sm:$0xf]
  %v1127 = vunpack.c.l.bf16 %v1126
  %v1128 = vunpack.c.h.bf16 %v1126
  %s1129 = scalar_lea.vmem %s1, 296
  %s1130 = scalar_lea.vmem %s0, 488
  %v1131 = vld [vmem:[%s1130] sm:$0xf]
  %v1132 = vunpack.c.l.bf16 %v1131
  %v1133 = vunpack.c.h.bf16 %v1131
  %s1134 = scalar_lea.vmem %s1, 552
  %s1135 = scalar_lea.vmem %s0, 232
  %v1136 = vld [vmem:[%s1135] sm:$0xf]
  %v1137 = vunpack.c.l.bf16 %v1136
  %v1138 = vunpack.c.h.bf16 %v1136
  %s1139 = scalar_lea.vmem %s1, 808
  %s1140 = scalar_lea.vmem %s0, 936
  %v1141 = vld [vmem:[%s1140] sm:$0xf]
  %v1142 = vunpack.c.l.bf16 %v1141
  %v1143 = vunpack.c.h.bf16 %v1141
  %s1144 = scalar_lea.vmem %s1, 104
  %s1145 = scalar_lea.vmem %s0, 680
  %v1146 = vld [vmem:[%s1145] sm:$0xf]
  %v1147 = vunpack.c.l.bf16 %v1146
  %v1148 = vunpack.c.h.bf16 %v1146
  %s1149 = scalar_lea.vmem %s1, 360
  %s1150 = scalar_lea.vmem %s0, 424
  %v1151 = vld [vmem:[%s1150] sm:$0xf]
  %v1152 = vunpack.c.l.bf16 %v1151
  %v1153 = vunpack.c.h.bf16 %v1151
  %s1154 = scalar_lea.vmem %s1, 616
  %s1155 = scalar_lea.vmem %s0, 168
  %v1156 = vld [vmem:[%s1155] sm:$0xf]
  %v1157 = vunpack.c.l.bf16 %v1156
  %v1158 = vunpack.c.h.bf16 %v1156
  %s1159 = scalar_lea.vmem %s1, 872
  %s1160 = scalar_lea.vmem %s0, 872
  %v1161 = vld [vmem:[%s1160] sm:$0xf]
  %v1162 = vunpack.c.l.bf16 %v1161
  %v1163 = vunpack.c.h.bf16 %v1161
  %s1164 = scalar_lea.vmem %s1, 168
  %s1165 = scalar_lea.vmem %s0, 616
  %v1166 = vld [vmem:[%s1165] sm:$0xf]
  %v1167 = vunpack.c.l.bf16 %v1166
  %v1168 = vunpack.c.h.bf16 %v1166
  %s1169 = scalar_lea.vmem %s1, 424
  %s1170 = scalar_lea.vmem %s0, 360
  %v1171 = vld [vmem:[%s1170] sm:$0xf]
  %v1172 = vunpack.c.l.bf16 %v1171
  %v1173 = vunpack.c.h.bf16 %v1171
  %s1174 = scalar_lea.vmem %s1, 680
  %s1175 = scalar_lea.vmem %s0, 104
  %v1176 = vld [vmem:[%s1175] sm:$0xf]
  %v1177 = vunpack.c.l.bf16 %v1176
  %v1178 = vunpack.c.h.bf16 %v1176
  %s1179 = scalar_lea.vmem %s1, 936
  %s1180 = scalar_lea.vmem %s0, 808
  %v1181 = vld [vmem:[%s1180] sm:$0xf]
  %v1182 = vunpack.c.l.bf16 %v1181
  %v1183 = vunpack.c.h.bf16 %v1181
  %s1184 = scalar_lea.vmem %s1, 232
  %s1185 = scalar_lea.vmem %s0, 552
  %v1186 = vld [vmem:[%s1185] sm:$0xf]
  %v1187 = vunpack.c.l.bf16 %v1186
  %v1188 = vunpack.c.h.bf16 %v1186
  %s1189 = scalar_lea.vmem %s1, 488
  %s1190 = scalar_lea.vmem %s0, 296
  %v1191 = vld [vmem:[%s1190] sm:$0xf]
  %v1192 = vunpack.c.l.bf16 %v1191
  %v1193 = vunpack.c.h.bf16 %v1191
  %s1194 = scalar_lea.vmem %s1, 744
  %s1195 = scalar_lea.vmem %s0, 40
  %v1196 = vld [vmem:[%s1195] sm:$0xf]
  %v1197 = vunpack.c.l.bf16 %v1196
  %v1198 = vunpack.c.h.bf16 %v1196
  %s1199 = scalar_lea.vmem %s1, 1000
  %s1200 = scalar_lea.vmem %s0, 1016
  %v1201 = vld [vmem:[%s1200] sm:$0xf]
  %v1202 = vunpack.c.l.bf16 %v1201
  %v1203 = vunpack.c.h.bf16 %v1201
  %s1204 = scalar_lea.vmem %s1, 56
  %s1205 = scalar_lea.vmem %s0, 760
  %v1206 = vld [vmem:[%s1205] sm:$0xf]
  %v1207 = vunpack.c.l.bf16 %v1206
  %v1208 = vunpack.c.h.bf16 %v1206
  %s1209 = scalar_lea.vmem %s1, 312
  %s1210 = scalar_lea.vmem %s0, 504
  %v1211 = vld [vmem:[%s1210] sm:$0xf]
  %v1212 = vunpack.c.l.bf16 %v1211
  %v1213 = vunpack.c.h.bf16 %v1211
  %s1214 = scalar_lea.vmem %s1, 568
  %s1215 = scalar_lea.vmem %s0, 248
  %v1216 = vld [vmem:[%s1215] sm:$0xf]
  %v1217 = vunpack.c.l.bf16 %v1216
  %v1218 = vunpack.c.h.bf16 %v1216
  %s1219 = scalar_lea.vmem %s1, 824
  %s1220 = scalar_lea.vmem %s0, 952
  %v1221 = vld [vmem:[%s1220] sm:$0xf]
  %v1222 = vunpack.c.l.bf16 %v1221
  %v1223 = vunpack.c.h.bf16 %v1221
  %s1224 = scalar_lea.vmem %s1, 120
  %s1225 = scalar_lea.vmem %s0, 696
  %v1226 = vld [vmem:[%s1225] sm:$0xf]
  %v1227 = vunpack.c.l.bf16 %v1226
  %v1228 = vunpack.c.h.bf16 %v1226
  %s1229 = scalar_lea.vmem %s1, 376
  %s1230 = scalar_lea.vmem %s0, 440
  %v1231 = vld [vmem:[%s1230] sm:$0xf]
  %v1232 = vunpack.c.l.bf16 %v1231
  %v1233 = vunpack.c.h.bf16 %v1231
  %s1234 = scalar_lea.vmem %s1, 632
  %s1235 = scalar_lea.vmem %s0, 184
  %v1236 = vld [vmem:[%s1235] sm:$0xf]
  %v1237 = vunpack.c.l.bf16 %v1236
  %v1238 = vunpack.c.h.bf16 %v1236
  %s1239 = scalar_lea.vmem %s1, 888
  %s1240 = scalar_lea.vmem %s0, 888
  %v1241 = vld [vmem:[%s1240] sm:$0xf]
  %v1242 = vunpack.c.l.bf16 %v1241
  %v1243 = vunpack.c.h.bf16 %v1241
  %s1244 = scalar_lea.vmem %s1, 184
  %s1245 = scalar_lea.vmem %s0, 632
  %v1246 = vld [vmem:[%s1245] sm:$0xf]
  %v1247 = vunpack.c.l.bf16 %v1246
  %v1248 = vunpack.c.h.bf16 %v1246
  %s1249 = scalar_lea.vmem %s1, 440
  %s1250 = scalar_lea.vmem %s0, 376
  %v1251 = vld [vmem:[%s1250] sm:$0xf]
  %v1252 = vunpack.c.l.bf16 %v1251
  %v1253 = vunpack.c.h.bf16 %v1251
  %s1254 = scalar_lea.vmem %s1, 696
  %s1255 = scalar_lea.vmem %s0, 120
  %v1256 = vld [vmem:[%s1255] sm:$0xf]
  %v1257 = vunpack.c.l.bf16 %v1256
  %v1258 = vunpack.c.h.bf16 %v1256
  %s1259 = scalar_lea.vmem %s1, 952
  %s1260 = scalar_lea.vmem %s0, 824
  %v1261 = vld [vmem:[%s1260] sm:$0xf]
  %v1262 = vunpack.c.l.bf16 %v1261
  %v1263 = vunpack.c.h.bf16 %v1261
  %s1264 = scalar_lea.vmem %s1, 248
  %s1265 = scalar_lea.vmem %s0, 568
  %v1266 = vld [vmem:[%s1265] sm:$0xf]
  %v1267 = vunpack.c.l.bf16 %v1266
  %v1268 = vunpack.c.h.bf16 %v1266
  %s1269 = scalar_lea.vmem %s1, 504
  %s1270 = scalar_lea.vmem %s0, 312
  %v1271 = vld [vmem:[%s1270] sm:$0xf]
  %v1272 = vunpack.c.l.bf16 %v1271
  %v1273 = vunpack.c.h.bf16 %v1271
  %s1274 = scalar_lea.vmem %s1, 760
  %s1275 = scalar_lea.vmem %s0, 56
  %v1276 = vld [vmem:[%s1275] sm:$0xf]
  %v1277 = vunpack.c.l.bf16 %v1276
  %v1278 = vunpack.c.h.bf16 %v1276
  %s1279 = scalar_lea.vmem %s1, 1016
  %s1280 = scalar_lea.vmem %s0, 972
  %v1281 = vld [vmem:[%s1280] sm:$0xf]
  %v1282 = vunpack.c.l.bf16 %v1281
  %v1283 = vunpack.c.h.bf16 %v1281
  %s1284 = scalar_lea.vmem %s1, 12
  %s1286 = ssub.s32 0, 4
  %s1287 = scalar_lea.vmem %s1284, %s1286
  %v1288 = vpack.c.bf16 %v1282, %v962
  %1289 = vst [vmem:[%s1287] sm:$0xff] %v1288
  %s1290 = scalar_lea.vmem %s0, 716
  %v1291 = vld [vmem:[%s1290] sm:$0xf]
  %v1292 = vunpack.c.l.bf16 %v1291
  %v1293 = vunpack.c.h.bf16 %v1291
  %s1294 = scalar_lea.vmem %s1, 268
  %s1296 = ssub.s32 0, 4
  %s1297 = scalar_lea.vmem %s1294, %s1296
  %v1298 = vpack.c.bf16 %v1292, %v967
  %1299 = vst [vmem:[%s1297] sm:$0xff] %v1298
  %s1300 = scalar_lea.vmem %s0, 460
  %v1301 = vld [vmem:[%s1300] sm:$0xf]
  %v1302 = vunpack.c.l.bf16 %v1301
  %v1303 = vunpack.c.h.bf16 %v1301
  %s1304 = scalar_lea.vmem %s1, 524
  %s1306 = ssub.s32 0, 4
  %s1307 = scalar_lea.vmem %s1304, %s1306
  %v1308 = vpack.c.bf16 %v1302, %v972
  %1309 = vst [vmem:[%s1307] sm:$0xff] %v1308
  %s1310 = scalar_lea.vmem %s0, 204
  %v1311 = vld [vmem:[%s1310] sm:$0xf]
  %v1312 = vunpack.c.l.bf16 %v1311
  %v1313 = vunpack.c.h.bf16 %v1311
  %s1314 = scalar_lea.vmem %s1, 780
  %s1316 = ssub.s32 0, 4
  %s1317 = scalar_lea.vmem %s1314, %s1316
  %v1318 = vpack.c.bf16 %v1312, %v977
  %1319 = vst [vmem:[%s1317] sm:$0xff] %v1318
  %s1320 = scalar_lea.vmem %s0, 908
  %v1321 = vld [vmem:[%s1320] sm:$0xf]
  %v1322 = vunpack.c.l.bf16 %v1321
  %v1323 = vunpack.c.h.bf16 %v1321
  %s1324 = scalar_lea.vmem %s1, 76
  %s1326 = ssub.s32 0, 4
  %s1327 = scalar_lea.vmem %s1324, %s1326
  %v1328 = vpack.c.bf16 %v1322, %v982
  %1329 = vst [vmem:[%s1327] sm:$0xff] %v1328
  %s1330 = scalar_lea.vmem %s0, 652
  %v1331 = vld [vmem:[%s1330] sm:$0xf]
  %v1332 = vunpack.c.l.bf16 %v1331
  %v1333 = vunpack.c.h.bf16 %v1331
  %s1334 = scalar_lea.vmem %s1, 332
  %s1336 = ssub.s32 0, 4
  %s1337 = scalar_lea.vmem %s1334, %s1336
  %v1338 = vpack.c.bf16 %v1332, %v987
  %1339 = vst [vmem:[%s1337] sm:$0xff] %v1338
  %s1340 = scalar_lea.vmem %s0, 396
  %v1341 = vld [vmem:[%s1340] sm:$0xf]
  %v1342 = vunpack.c.l.bf16 %v1341
  %v1343 = vunpack.c.h.bf16 %v1341
  %s1344 = scalar_lea.vmem %s1, 588
  %s1346 = ssub.s32 0, 4
  %s1347 = scalar_lea.vmem %s1344, %s1346
  %v1348 = vpack.c.bf16 %v1342, %v992
  %1349 = vst [vmem:[%s1347] sm:$0xff] %v1348
  %s1350 = scalar_lea.vmem %s0, 140
  %v1351 = vld [vmem:[%s1350] sm:$0xf]
  %v1352 = vunpack.c.l.bf16 %v1351
  %v1353 = vunpack.c.h.bf16 %v1351
  %s1354 = scalar_lea.vmem %s1, 844
  %s1356 = ssub.s32 0, 4
  %s1357 = scalar_lea.vmem %s1354, %s1356
  %v1358 = vpack.c.bf16 %v1352, %v997
  %1359 = vst [vmem:[%s1357] sm:$0xff] %v1358
  %s1360 = scalar_lea.vmem %s0, 844
  %v1361 = vld [vmem:[%s1360] sm:$0xf]
  %v1362 = vunpack.c.l.bf16 %v1361
  %v1363 = vunpack.c.h.bf16 %v1361
  %s1364 = scalar_lea.vmem %s1, 140
  %s1366 = ssub.s32 0, 4
  %s1367 = scalar_lea.vmem %s1364, %s1366
  %v1368 = vpack.c.bf16 %v1362, %v1002
  %1369 = vst [vmem:[%s1367] sm:$0xff] %v1368
  %s1370 = scalar_lea.vmem %s0, 588
  %v1371 = vld [vmem:[%s1370] sm:$0xf]
  %v1372 = vunpack.c.l.bf16 %v1371
  %v1373 = vunpack.c.h.bf16 %v1371
  %s1374 = scalar_lea.vmem %s1, 396
  %s1376 = ssub.s32 0, 4
  %s1377 = scalar_lea.vmem %s1374, %s1376
  %v1378 = vpack.c.bf16 %v1372, %v1007
  %1379 = vst [vmem:[%s1377] sm:$0xff] %v1378
  %s1380 = scalar_lea.vmem %s0, 332
  %v1381 = vld [vmem:[%s1380] sm:$0xf]
  %v1382 = vunpack.c.l.bf16 %v1381
  %v1383 = vunpack.c.h.bf16 %v1381
  %s1384 = scalar_lea.vmem %s1, 652
  %s1386 = ssub.s32 0, 4
  %s1387 = scalar_lea.vmem %s1384, %s1386
  %v1388 = vpack.c.bf16 %v1382, %v1012
  %1389 = vst [vmem:[%s1387] sm:$0xff] %v1388
  %s1390 = scalar_lea.vmem %s0, 76
  %v1391 = vld [vmem:[%s1390] sm:$0xf]
  %v1392 = vunpack.c.l.bf16 %v1391
  %v1393 = vunpack.c.h.bf16 %v1391
  %s1394 = scalar_lea.vmem %s1, 908
  %s1396 = ssub.s32 0, 4
  %s1397 = scalar_lea.vmem %s1394, %s1396
  %v1398 = vpack.c.bf16 %v1392, %v1017
  %1399 = vst [vmem:[%s1397] sm:$0xff] %v1398
  %s1400 = scalar_lea.vmem %s0, 780
  %v1401 = vld [vmem:[%s1400] sm:$0xf]
  %v1402 = vunpack.c.l.bf16 %v1401
  %v1403 = vunpack.c.h.bf16 %v1401
  %s1404 = scalar_lea.vmem %s1, 204
  %s1406 = ssub.s32 0, 4
  %s1407 = scalar_lea.vmem %s1404, %s1406
  %v1408 = vpack.c.bf16 %v1402, %v1022
  %1409 = vst [vmem:[%s1407] sm:$0xff] %v1408
  %s1410 = scalar_lea.vmem %s0, 524
  %v1411 = vld [vmem:[%s1410] sm:$0xf]
  %v1412 = vunpack.c.l.bf16 %v1411
  %v1413 = vunpack.c.h.bf16 %v1411
  %s1414 = scalar_lea.vmem %s1, 460
  %s1416 = ssub.s32 0, 4
  %s1417 = scalar_lea.vmem %s1414, %s1416
  %v1418 = vpack.c.bf16 %v1412, %v1027
  %1419 = vst [vmem:[%s1417] sm:$0xff] %v1418
  %s1420 = scalar_lea.vmem %s0, 268
  %v1421 = vld [vmem:[%s1420] sm:$0xf]
  %v1422 = vunpack.c.l.bf16 %v1421
  %v1423 = vunpack.c.h.bf16 %v1421
  %s1424 = scalar_lea.vmem %s1, 716
  %s1426 = ssub.s32 0, 4
  %s1427 = scalar_lea.vmem %s1424, %s1426
  %v1428 = vpack.c.bf16 %v1422, %v1032
  %1429 = vst [vmem:[%s1427] sm:$0xff] %v1428
  %s1430 = scalar_lea.vmem %s0, 12
  %v1431 = vld [vmem:[%s1430] sm:$0xf]
  %v1432 = vunpack.c.l.bf16 %v1431
  %v1433 = vunpack.c.h.bf16 %v1431
  %s1434 = scalar_lea.vmem %s1, 972
  %s1436 = ssub.s32 0, 4
  %s1437 = scalar_lea.vmem %s1434, %s1436
  %v1438 = vpack.c.bf16 %v1432, %v1037
  %1439 = vst [vmem:[%s1437] sm:$0xff] %v1438
  %s1440 = scalar_lea.vmem %s0, 988
  %v1441 = vld [vmem:[%s1440] sm:$0xf]
  %v1442 = vunpack.c.l.bf16 %v1441
  %v1443 = vunpack.c.h.bf16 %v1441
  %s1444 = scalar_lea.vmem %s1, 28
  %s1446 = ssub.s32 0, 4
  %s1447 = scalar_lea.vmem %s1444, %s1446
  %v1448 = vpack.c.bf16 %v1442, %v1042
  %1449 = vst [vmem:[%s1447] sm:$0xff] %v1448
  %s1450 = scalar_lea.vmem %s0, 732
  %v1451 = vld [vmem:[%s1450] sm:$0xf]
  %v1452 = vunpack.c.l.bf16 %v1451
  %v1453 = vunpack.c.h.bf16 %v1451
  %s1454 = scalar_lea.vmem %s1, 284
  %s1456 = ssub.s32 0, 4
  %s1457 = scalar_lea.vmem %s1454, %s1456
  %v1458 = vpack.c.bf16 %v1452, %v1047
  %1459 = vst [vmem:[%s1457] sm:$0xff] %v1458
  %s1460 = scalar_lea.vmem %s0, 476
  %v1461 = vld [vmem:[%s1460] sm:$0xf]
  %v1462 = vunpack.c.l.bf16 %v1461
  %v1463 = vunpack.c.h.bf16 %v1461
  %s1464 = scalar_lea.vmem %s1, 540
  %s1466 = ssub.s32 0, 4
  %s1467 = scalar_lea.vmem %s1464, %s1466
  %v1468 = vpack.c.bf16 %v1462, %v1052
  %1469 = vst [vmem:[%s1467] sm:$0xff] %v1468
  %s1470 = scalar_lea.vmem %s0, 220
  %v1471 = vld [vmem:[%s1470] sm:$0xf]
  %v1472 = vunpack.c.l.bf16 %v1471
  %v1473 = vunpack.c.h.bf16 %v1471
  %s1474 = scalar_lea.vmem %s1, 796
  %s1476 = ssub.s32 0, 4
  %s1477 = scalar_lea.vmem %s1474, %s1476
  %v1478 = vpack.c.bf16 %v1472, %v1057
  %1479 = vst [vmem:[%s1477] sm:$0xff] %v1478
  %s1480 = scalar_lea.vmem %s0, 924
  %v1481 = vld [vmem:[%s1480] sm:$0xf]
  %v1482 = vunpack.c.l.bf16 %v1481
  %v1483 = vunpack.c.h.bf16 %v1481
  %s1484 = scalar_lea.vmem %s1, 92
  %s1486 = ssub.s32 0, 4
  %s1487 = scalar_lea.vmem %s1484, %s1486
  %v1488 = vpack.c.bf16 %v1482, %v1062
  %1489 = vst [vmem:[%s1487] sm:$0xff] %v1488
  %s1490 = scalar_lea.vmem %s0, 668
  %v1491 = vld [vmem:[%s1490] sm:$0xf]
  %v1492 = vunpack.c.l.bf16 %v1491
  %v1493 = vunpack.c.h.bf16 %v1491
  %s1494 = scalar_lea.vmem %s1, 348
  %s1496 = ssub.s32 0, 4
  %s1497 = scalar_lea.vmem %s1494, %s1496
  %v1498 = vpack.c.bf16 %v1492, %v1067
  %1499 = vst [vmem:[%s1497] sm:$0xff] %v1498
  %s1500 = scalar_lea.vmem %s0, 412
  %v1501 = vld [vmem:[%s1500] sm:$0xf]
  %v1502 = vunpack.c.l.bf16 %v1501
  %v1503 = vunpack.c.h.bf16 %v1501
  %s1504 = scalar_lea.vmem %s1, 604
  %s1506 = ssub.s32 0, 4
  %s1507 = scalar_lea.vmem %s1504, %s1506
  %v1508 = vpack.c.bf16 %v1502, %v1072
  %1509 = vst [vmem:[%s1507] sm:$0xff] %v1508
  %s1510 = scalar_lea.vmem %s0, 156
  %v1511 = vld [vmem:[%s1510] sm:$0xf]
  %v1512 = vunpack.c.l.bf16 %v1511
  %v1513 = vunpack.c.h.bf16 %v1511
  %s1514 = scalar_lea.vmem %s1, 860
  %s1516 = ssub.s32 0, 4
  %s1517 = scalar_lea.vmem %s1514, %s1516
  %v1518 = vpack.c.bf16 %v1512, %v1077
  %1519 = vst [vmem:[%s1517] sm:$0xff] %v1518
  %s1520 = scalar_lea.vmem %s0, 860
  %v1521 = vld [vmem:[%s1520] sm:$0xf]
  %v1522 = vunpack.c.l.bf16 %v1521
  %v1523 = vunpack.c.h.bf16 %v1521
  %s1524 = scalar_lea.vmem %s1, 156
  %s1526 = ssub.s32 0, 4
  %s1527 = scalar_lea.vmem %s1524, %s1526
  %v1528 = vpack.c.bf16 %v1522, %v1082
  %1529 = vst [vmem:[%s1527] sm:$0xff] %v1528
  %s1530 = scalar_lea.vmem %s0, 604
  %v1531 = vld [vmem:[%s1530] sm:$0xf]
  %v1532 = vunpack.c.l.bf16 %v1531
  %v1533 = vunpack.c.h.bf16 %v1531
  %s1534 = scalar_lea.vmem %s1, 412
  %s1536 = ssub.s32 0, 4
  %s1537 = scalar_lea.vmem %s1534, %s1536
  %v1538 = vpack.c.bf16 %v1532, %v1087
  %1539 = vst [vmem:[%s1537] sm:$0xff] %v1538
  %s1540 = scalar_lea.vmem %s0, 348
  %v1541 = vld [vmem:[%s1540] sm:$0xf]
  %v1542 = vunpack.c.l.bf16 %v1541
  %v1543 = vunpack.c.h.bf16 %v1541
  %s1544 = scalar_lea.vmem %s1, 668
  %s1546 = ssub.s32 0, 4
  %s1547 = scalar_lea.vmem %s1544, %s1546
  %v1548 = vpack.c.bf16 %v1542, %v1092
  %1549 = vst [vmem:[%s1547] sm:$0xff] %v1548
  %s1550 = scalar_lea.vmem %s0, 92
  %v1551 = vld [vmem:[%s1550] sm:$0xf]
  %v1552 = vunpack.c.l.bf16 %v1551
  %v1553 = vunpack.c.h.bf16 %v1551
  %s1554 = scalar_lea.vmem %s1, 924
  %s1556 = ssub.s32 0, 4
  %s1557 = scalar_lea.vmem %s1554, %s1556
  %v1558 = vpack.c.bf16 %v1552, %v1097
  %1559 = vst [vmem:[%s1557] sm:$0xff] %v1558
  %s1560 = scalar_lea.vmem %s0, 796
  %v1561 = vld [vmem:[%s1560] sm:$0xf]
  %v1562 = vunpack.c.l.bf16 %v1561
  %v1563 = vunpack.c.h.bf16 %v1561
  %s1564 = scalar_lea.vmem %s1, 220
  %s1566 = ssub.s32 0, 4
  %s1567 = scalar_lea.vmem %s1564, %s1566
  %v1568 = vpack.c.bf16 %v1562, %v1102
  %1569 = vst [vmem:[%s1567] sm:$0xff] %v1568
  %s1570 = scalar_lea.vmem %s0, 540
  %v1571 = vld [vmem:[%s1570] sm:$0xf]
  %v1572 = vunpack.c.l.bf16 %v1571
  %v1573 = vunpack.c.h.bf16 %v1571
  %s1574 = scalar_lea.vmem %s1, 476
  %s1576 = ssub.s32 0, 4
  %s1577 = scalar_lea.vmem %s1574, %s1576
  %v1578 = vpack.c.bf16 %v1572, %v1107
  %1579 = vst [vmem:[%s1577] sm:$0xff] %v1578
  %s1580 = scalar_lea.vmem %s0, 284
  %v1581 = vld [vmem:[%s1580] sm:$0xf]
  %v1582 = vunpack.c.l.bf16 %v1581
  %v1583 = vunpack.c.h.bf16 %v1581
  %s1584 = scalar_lea.vmem %s1, 732
  %s1586 = ssub.s32 0, 4
  %s1587 = scalar_lea.vmem %s1584, %s1586
  %v1588 = vpack.c.bf16 %v1582, %v1112
  %1589 = vst [vmem:[%s1587] sm:$0xff] %v1588
  %s1590 = scalar_lea.vmem %s0, 28
  %v1591 = vld [vmem:[%s1590] sm:$0xf]
  %v1592 = vunpack.c.l.bf16 %v1591
  %v1593 = vunpack.c.h.bf16 %v1591
  %s1594 = scalar_lea.vmem %s1, 988
  %s1596 = ssub.s32 0, 4
  %s1597 = scalar_lea.vmem %s1594, %s1596
  %v1598 = vpack.c.bf16 %v1592, %v1117
  %1599 = vst [vmem:[%s1597] sm:$0xff] %v1598
  %s1600 = scalar_lea.vmem %s0, 1004
  %v1601 = vld [vmem:[%s1600] sm:$0xf]
  %v1602 = vunpack.c.l.bf16 %v1601
  %v1603 = vunpack.c.h.bf16 %v1601
  %s1604 = scalar_lea.vmem %s1, 44
  %s1606 = ssub.s32 0, 4
  %s1607 = scalar_lea.vmem %s1604, %s1606
  %v1608 = vpack.c.bf16 %v1602, %v1122
  %1609 = vst [vmem:[%s1607] sm:$0xff] %v1608
  %s1610 = scalar_lea.vmem %s0, 748
  %v1611 = vld [vmem:[%s1610] sm:$0xf]
  %v1612 = vunpack.c.l.bf16 %v1611
  %v1613 = vunpack.c.h.bf16 %v1611
  %s1614 = scalar_lea.vmem %s1, 300
  %s1616 = ssub.s32 0, 4
  %s1617 = scalar_lea.vmem %s1614, %s1616
  %v1618 = vpack.c.bf16 %v1612, %v1127
  %1619 = vst [vmem:[%s1617] sm:$0xff] %v1618
  %s1620 = scalar_lea.vmem %s0, 492
  %v1621 = vld [vmem:[%s1620] sm:$0xf]
  %v1622 = vunpack.c.l.bf16 %v1621
  %v1623 = vunpack.c.h.bf16 %v1621
  %s1624 = scalar_lea.vmem %s1, 556
  %s1626 = ssub.s32 0, 4
  %s1627 = scalar_lea.vmem %s1624, %s1626
  %v1628 = vpack.c.bf16 %v1622, %v1132
  %1629 = vst [vmem:[%s1627] sm:$0xff] %v1628
  %s1630 = scalar_lea.vmem %s0, 236
  %v1631 = vld [vmem:[%s1630] sm:$0xf]
  %v1632 = vunpack.c.l.bf16 %v1631
  %v1633 = vunpack.c.h.bf16 %v1631
  %s1634 = scalar_lea.vmem %s1, 812
  %s1636 = ssub.s32 0, 4
  %s1637 = scalar_lea.vmem %s1634, %s1636
  %v1638 = vpack.c.bf16 %v1632, %v1137
  %1639 = vst [vmem:[%s1637] sm:$0xff] %v1638
  %s1640 = scalar_lea.vmem %s0, 940
  %v1641 = vld [vmem:[%s1640] sm:$0xf]
  %v1642 = vunpack.c.l.bf16 %v1641
  %v1643 = vunpack.c.h.bf16 %v1641
  %s1644 = scalar_lea.vmem %s1, 108
  %s1646 = ssub.s32 0, 4
  %s1647 = scalar_lea.vmem %s1644, %s1646
  %v1648 = vpack.c.bf16 %v1642, %v1142
  %1649 = vst [vmem:[%s1647] sm:$0xff] %v1648
  %s1650 = scalar_lea.vmem %s0, 684
  %v1651 = vld [vmem:[%s1650] sm:$0xf]
  %v1652 = vunpack.c.l.bf16 %v1651
  %v1653 = vunpack.c.h.bf16 %v1651
  %s1654 = scalar_lea.vmem %s1, 364
  %s1656 = ssub.s32 0, 4
  %s1657 = scalar_lea.vmem %s1654, %s1656
  %v1658 = vpack.c.bf16 %v1652, %v1147
  %1659 = vst [vmem:[%s1657] sm:$0xff] %v1658
  %s1660 = scalar_lea.vmem %s0, 428
  %v1661 = vld [vmem:[%s1660] sm:$0xf]
  %v1662 = vunpack.c.l.bf16 %v1661
  %v1663 = vunpack.c.h.bf16 %v1661
  %s1664 = scalar_lea.vmem %s1, 620
  %s1666 = ssub.s32 0, 4
  %s1667 = scalar_lea.vmem %s1664, %s1666
  %v1668 = vpack.c.bf16 %v1662, %v1152
  %1669 = vst [vmem:[%s1667] sm:$0xff] %v1668
  %s1670 = scalar_lea.vmem %s0, 172
  %v1671 = vld [vmem:[%s1670] sm:$0xf]
  %v1672 = vunpack.c.l.bf16 %v1671
  %v1673 = vunpack.c.h.bf16 %v1671
  %s1674 = scalar_lea.vmem %s1, 876
  %s1676 = ssub.s32 0, 4
  %s1677 = scalar_lea.vmem %s1674, %s1676
  %v1678 = vpack.c.bf16 %v1672, %v1157
  %1679 = vst [vmem:[%s1677] sm:$0xff] %v1678
  %s1680 = scalar_lea.vmem %s0, 876
  %v1681 = vld [vmem:[%s1680] sm:$0xf]
  %v1682 = vunpack.c.l.bf16 %v1681
  %v1683 = vunpack.c.h.bf16 %v1681
  %s1684 = scalar_lea.vmem %s1, 172
  %s1686 = ssub.s32 0, 4
  %s1687 = scalar_lea.vmem %s1684, %s1686
  %v1688 = vpack.c.bf16 %v1682, %v1162
  %1689 = vst [vmem:[%s1687] sm:$0xff] %v1688
  %s1690 = scalar_lea.vmem %s0, 620
  %v1691 = vld [vmem:[%s1690] sm:$0xf]
  %v1692 = vunpack.c.l.bf16 %v1691
  %v1693 = vunpack.c.h.bf16 %v1691
  %s1694 = scalar_lea.vmem %s1, 428
  %s1696 = ssub.s32 0, 4
  %s1697 = scalar_lea.vmem %s1694, %s1696
  %v1698 = vpack.c.bf16 %v1692, %v1167
  %1699 = vst [vmem:[%s1697] sm:$0xff] %v1698
  %s1700 = scalar_lea.vmem %s0, 364
  %v1701 = vld [vmem:[%s1700] sm:$0xf]
  %v1702 = vunpack.c.l.bf16 %v1701
  %v1703 = vunpack.c.h.bf16 %v1701
  %s1704 = scalar_lea.vmem %s1, 684
  %s1706 = ssub.s32 0, 4
  %s1707 = scalar_lea.vmem %s1704, %s1706
  %v1708 = vpack.c.bf16 %v1702, %v1172
  %1709 = vst [vmem:[%s1707] sm:$0xff] %v1708
  %s1710 = scalar_lea.vmem %s0, 108
  %v1711 = vld [vmem:[%s1710] sm:$0xf]
  %v1712 = vunpack.c.l.bf16 %v1711
  %v1713 = vunpack.c.h.bf16 %v1711
  %s1714 = scalar_lea.vmem %s1, 940
  %s1716 = ssub.s32 0, 4
  %s1717 = scalar_lea.vmem %s1714, %s1716
  %v1718 = vpack.c.bf16 %v1712, %v1177
  %1719 = vst [vmem:[%s1717] sm:$0xff] %v1718
  %s1720 = scalar_lea.vmem %s0, 812
  %v1721 = vld [vmem:[%s1720] sm:$0xf]
  %v1722 = vunpack.c.l.bf16 %v1721
  %v1723 = vunpack.c.h.bf16 %v1721
  %s1724 = scalar_lea.vmem %s1, 236
  %s1726 = ssub.s32 0, 4
  %s1727 = scalar_lea.vmem %s1724, %s1726
  %v1728 = vpack.c.bf16 %v1722, %v1182
  %1729 = vst [vmem:[%s1727] sm:$0xff] %v1728
  %s1730 = scalar_lea.vmem %s0, 556
  %v1731 = vld [vmem:[%s1730] sm:$0xf]
  %v1732 = vunpack.c.l.bf16 %v1731
  %v1733 = vunpack.c.h.bf16 %v1731
  %s1734 = scalar_lea.vmem %s1, 492
  %s1736 = ssub.s32 0, 4
  %s1737 = scalar_lea.vmem %s1734, %s1736
  %v1738 = vpack.c.bf16 %v1732, %v1187
  %1739 = vst [vmem:[%s1737] sm:$0xff] %v1738
  %s1740 = scalar_lea.vmem %s0, 300
  %v1741 = vld [vmem:[%s1740] sm:$0xf]
  %v1742 = vunpack.c.l.bf16 %v1741
  %v1743 = vunpack.c.h.bf16 %v1741
  %s1744 = scalar_lea.vmem %s1, 748
  %s1746 = ssub.s32 0, 4
  %s1747 = scalar_lea.vmem %s1744, %s1746
  %v1748 = vpack.c.bf16 %v1742, %v1192
  %1749 = vst [vmem:[%s1747] sm:$0xff] %v1748
  %s1750 = scalar_lea.vmem %s0, 44
  %v1751 = vld [vmem:[%s1750] sm:$0xf]
  %v1752 = vunpack.c.l.bf16 %v1751
  %v1753 = vunpack.c.h.bf16 %v1751
  %s1754 = scalar_lea.vmem %s1, 1004
  %s1756 = ssub.s32 0, 4
  %s1757 = scalar_lea.vmem %s1754, %s1756
  %v1758 = vpack.c.bf16 %v1752, %v1197
  %1759 = vst [vmem:[%s1757] sm:$0xff] %v1758
  %s1760 = scalar_lea.vmem %s0, 1020
  %v1761 = vld [vmem:[%s1760] sm:$0xf]
  %v1762 = vunpack.c.l.bf16 %v1761
  %v1763 = vunpack.c.h.bf16 %v1761
  %s1764 = scalar_lea.vmem %s1, 60
  %s1766 = ssub.s32 0, 4
  %s1767 = scalar_lea.vmem %s1764, %s1766
  %v1768 = vpack.c.bf16 %v1762, %v1202
  %1769 = vst [vmem:[%s1767] sm:$0xff] %v1768
  %s1770 = scalar_lea.vmem %s0, 764
  %v1771 = vld [vmem:[%s1770] sm:$0xf]
  %v1772 = vunpack.c.l.bf16 %v1771
  %v1773 = vunpack.c.h.bf16 %v1771
  %s1774 = scalar_lea.vmem %s1, 316
  %s1776 = ssub.s32 0, 4
  %s1777 = scalar_lea.vmem %s1774, %s1776
  %v1778 = vpack.c.bf16 %v1772, %v1207
  %1779 = vst [vmem:[%s1777] sm:$0xff] %v1778
  %s1780 = scalar_lea.vmem %s0, 508
  %v1781 = vld [vmem:[%s1780] sm:$0xf]
  %v1782 = vunpack.c.l.bf16 %v1781
  %v1783 = vunpack.c.h.bf16 %v1781
  %s1784 = scalar_lea.vmem %s1, 572
  %s1786 = ssub.s32 0, 4
  %s1787 = scalar_lea.vmem %s1784, %s1786
  %v1788 = vpack.c.bf16 %v1782, %v1212
  %1789 = vst [vmem:[%s1787] sm:$0xff] %v1788
  %s1790 = scalar_lea.vmem %s0, 252
  %v1791 = vld [vmem:[%s1790] sm:$0xf]
  %v1792 = vunpack.c.l.bf16 %v1791
  %v1793 = vunpack.c.h.bf16 %v1791
  %s1794 = scalar_lea.vmem %s1, 828
  %s1796 = ssub.s32 0, 4
  %s1797 = scalar_lea.vmem %s1794, %s1796
  %v1798 = vpack.c.bf16 %v1792, %v1217
  %1799 = vst [vmem:[%s1797] sm:$0xff] %v1798
  %s1800 = scalar_lea.vmem %s0, 956
  %v1801 = vld [vmem:[%s1800] sm:$0xf]
  %v1802 = vunpack.c.l.bf16 %v1801
  %v1803 = vunpack.c.h.bf16 %v1801
  %s1804 = scalar_lea.vmem %s1, 124
  %s1806 = ssub.s32 0, 4
  %s1807 = scalar_lea.vmem %s1804, %s1806
  %v1808 = vpack.c.bf16 %v1802, %v1222
  %1809 = vst [vmem:[%s1807] sm:$0xff] %v1808
  %s1810 = scalar_lea.vmem %s0, 700
  %v1811 = vld [vmem:[%s1810] sm:$0xf]
  %v1812 = vunpack.c.l.bf16 %v1811
  %v1813 = vunpack.c.h.bf16 %v1811
  %s1814 = scalar_lea.vmem %s1, 380
  %s1816 = ssub.s32 0, 4
  %s1817 = scalar_lea.vmem %s1814, %s1816
  %v1818 = vpack.c.bf16 %v1812, %v1227
  %1819 = vst [vmem:[%s1817] sm:$0xff] %v1818
  %s1820 = scalar_lea.vmem %s0, 444
  %v1821 = vld [vmem:[%s1820] sm:$0xf]
  %v1822 = vunpack.c.l.bf16 %v1821
  %v1823 = vunpack.c.h.bf16 %v1821
  %s1824 = scalar_lea.vmem %s1, 636
  %s1826 = ssub.s32 0, 4
  %s1827 = scalar_lea.vmem %s1824, %s1826
  %v1828 = vpack.c.bf16 %v1822, %v1232
  %1829 = vst [vmem:[%s1827] sm:$0xff] %v1828
  %s1830 = scalar_lea.vmem %s0, 188
  %v1831 = vld [vmem:[%s1830] sm:$0xf]
  %v1832 = vunpack.c.l.bf16 %v1831
  %v1833 = vunpack.c.h.bf16 %v1831
  %s1834 = scalar_lea.vmem %s1, 892
  %s1836 = ssub.s32 0, 4
  %s1837 = scalar_lea.vmem %s1834, %s1836
  %v1838 = vpack.c.bf16 %v1832, %v1237
  %1839 = vst [vmem:[%s1837] sm:$0xff] %v1838
  %s1840 = scalar_lea.vmem %s0, 892
  %v1841 = vld [vmem:[%s1840] sm:$0xf]
  %v1842 = vunpack.c.l.bf16 %v1841
  %v1843 = vunpack.c.h.bf16 %v1841
  %s1844 = scalar_lea.vmem %s1, 188
  %s1846 = ssub.s32 0, 4
  %s1847 = scalar_lea.vmem %s1844, %s1846
  %v1848 = vpack.c.bf16 %v1842, %v1242
  %1849 = vst [vmem:[%s1847] sm:$0xff] %v1848
  %s1850 = scalar_lea.vmem %s0, 636
  %v1851 = vld [vmem:[%s1850] sm:$0xf]
  %v1852 = vunpack.c.l.bf16 %v1851
  %v1853 = vunpack.c.h.bf16 %v1851
  %s1854 = scalar_lea.vmem %s1, 444
  %s1856 = ssub.s32 0, 4
  %s1857 = scalar_lea.vmem %s1854, %s1856
  %v1858 = vpack.c.bf16 %v1852, %v1247
  %1859 = vst [vmem:[%s1857] sm:$0xff] %v1858
  %s1860 = scalar_lea.vmem %s0, 380
  %v1861 = vld [vmem:[%s1860] sm:$0xf]
  %v1862 = vunpack.c.l.bf16 %v1861
  %v1863 = vunpack.c.h.bf16 %v1861
  %s1864 = scalar_lea.vmem %s1, 700
  %s1866 = ssub.s32 0, 4
  %s1867 = scalar_lea.vmem %s1864, %s1866
  %v1868 = vpack.c.bf16 %v1862, %v1252
  %1869 = vst [vmem:[%s1867] sm:$0xff] %v1868
  %s1870 = scalar_lea.vmem %s0, 124
  %v1871 = vld [vmem:[%s1870] sm:$0xf]
  %v1872 = vunpack.c.l.bf16 %v1871
  %v1873 = vunpack.c.h.bf16 %v1871
  %s1874 = scalar_lea.vmem %s1, 956
  %s1876 = ssub.s32 0, 4
  %s1877 = scalar_lea.vmem %s1874, %s1876
  %v1878 = vpack.c.bf16 %v1872, %v1257
  %1879 = vst [vmem:[%s1877] sm:$0xff] %v1878
  %s1880 = scalar_lea.vmem %s0, 828
  %v1881 = vld [vmem:[%s1880] sm:$0xf]
  %v1882 = vunpack.c.l.bf16 %v1881
  %v1883 = vunpack.c.h.bf16 %v1881
  %s1884 = scalar_lea.vmem %s1, 252
  %s1886 = ssub.s32 0, 4
  %s1887 = scalar_lea.vmem %s1884, %s1886
  %v1888 = vpack.c.bf16 %v1882, %v1262
  %1889 = vst [vmem:[%s1887] sm:$0xff] %v1888
  %s1890 = scalar_lea.vmem %s0, 572
  %v1891 = vld [vmem:[%s1890] sm:$0xf]
  %v1892 = vunpack.c.l.bf16 %v1891
  %v1893 = vunpack.c.h.bf16 %v1891
  %s1894 = scalar_lea.vmem %s1, 508
  %s1896 = ssub.s32 0, 4
  %s1897 = scalar_lea.vmem %s1894, %s1896
  %v1898 = vpack.c.bf16 %v1892, %v1267
  %1899 = vst [vmem:[%s1897] sm:$0xff] %v1898
  %s1900 = scalar_lea.vmem %s0, 316
  %v1901 = vld [vmem:[%s1900] sm:$0xf]
  %v1902 = vunpack.c.l.bf16 %v1901
  %v1903 = vunpack.c.h.bf16 %v1901
  %s1904 = scalar_lea.vmem %s1, 764
  %s1906 = ssub.s32 0, 4
  %s1907 = scalar_lea.vmem %s1904, %s1906
  %v1908 = vpack.c.bf16 %v1902, %v1272
  %1909 = vst [vmem:[%s1907] sm:$0xff] %v1908
  %s1910 = scalar_lea.vmem %s0, 60
  %v1911 = vld [vmem:[%s1910] sm:$0xf]
  %v1912 = vunpack.c.l.bf16 %v1911
  %v1913 = vunpack.c.h.bf16 %v1911
  %s1914 = scalar_lea.vmem %s1, 1020
  %s1916 = ssub.s32 0, 4
  %s1917 = scalar_lea.vmem %s1914, %s1916
  %v1918 = vpack.c.bf16 %v1912, %v1277
  %1919 = vst [vmem:[%s1917] sm:$0xff] %v1918

// kernel: encoder_forward.4
$region0: #{encoder_forward.4}
  #allocation0 [shape = 'u32[]', space=smem, size = 0x4, offset = 0x4, fixed_abs, tag = 'smem constant byte address 0x4 - core index']
  #allocation1 [shape = 'u32[144,128]{1,0:T(1,128)}', space=vmem, size = 0x12000, scoped, tag = 'internal scratch']
  %s0 = inlined_call_operand.vmem [shape: bf16[128,128], index: 0, kind: input, shape index: {}]
  %s1 = inlined_call_operand.vmem [shape: bf16[128,128], index: 1, kind: input, shape index: {}]
  %s2 = inlined_call_operand.vmem [shape: f32[128,128], index: 2, kind: output, shape index: {}]
  %s3 = sld [smem:[#allocation0]]
  $region26: #{encoder_forward.4} parent=0
    _
  %s5 = ssub.s32 1, %s3
  %s6 = scalar_select 0, %s5, %s3
  // Predicated region
  $region2: #{encoder_forward.4} parent=0 // pred_check
    _
  $region3: #{encoder_forward.4} parent=0 // pred_check_branch
    %8 = sbr.rel (0) target = $region5
  $region4: #{encoder_forward.4} parent=0 // pred_region
    _
  $region5: #{encoder_forward.4} parent=0 // pred_fallthru
    _
  // Predicated region
  $region6: #{encoder_forward.4} parent=0 // pred_check
    _
  $region7: #{encoder_forward.4} parent=0 // pred_check_branch
    %10 = sbr.rel (0) target = $region9
  $region8: #{encoder_forward.4} parent=0 // pred_region
    _
  $region9: #{encoder_forward.4} parent=0 // pred_fallthru
    _
  %p12 = scmp.eq.s32.totalorder 0, 0
  // Predicated region
  $region10: #{encoder_forward.4} parent=0 // pred_check
    %p13 = pneg %p12
  $region11: #{encoder_forward.4} parent=0 // pred_check_branch
    %15 = sbr.rel (%p13) target = $region13
  $region12: #{encoder_forward.4} parent=0 // pred_region
    %16 = vst [vmem:[%s2] sm:$0xff] 0.0
    %17 = vst [vmem:[%s2 + $0x8] sm:$0xff] 0.0
    %18 = vst [vmem:[%s2 + $0x10] sm:$0xff] 0.0
    %19 = vst [vmem:[%s2 + $0x18] sm:$0xff] 0.0
    %20 = vst [vmem:[%s2 + $0x20] sm:$0xff] 0.0
    %21 = vst [vmem:[%s2 + $0x28] sm:$0xff] 0.0
    %22 = vst [vmem:[%s2 + $0x30] sm:$0xff] 0.0
    %23 = vst [vmem:[%s2 + $0x38] sm:$0xff] 0.0
    %24 = vst [vmem:[%s2 + $0x40] sm:$0xff] 0.0
    %25 = vst [vmem:[%s2 + $0x48] sm:$0xff] 0.0
    %26 = vst [vmem:[%s2 + $0x50] sm:$0xff] 0.0
    %27 = vst [vmem:[%s2 + $0x58] sm:$0xff] 0.0
    %28 = vst [vmem:[%s2 + $0x60] sm:$0xff] 0.0
    %29 = vst [vmem:[%s2 + $0x68] sm:$0xff] 0.0
    %30 = vst [vmem:[%s2 + $0x70] sm:$0xff] 0.0
    %31 = vst [vmem:[%s2 + $0x78] sm:$0xff] 0.0
  $region13: #{encoder_forward.4} parent=0 // pred_fallthru
    _
  %v32 = vld [vmem:[%s2] sm:$0xff]
  %v33 = vld [vmem:[%s2 + $0x8] sm:$0xff]
  %v34 = vld [vmem:[%s2 + $0x10] sm:$0xff]
  %v35 = vld [vmem:[%s2 + $0x18] sm:$0xff]
  %v36 = vld [vmem:[%s2 + $0x20] sm:$0xff]
  %v37 = vld [vmem:[%s2 + $0x28] sm:$0xff]
  %v38 = vld [vmem:[%s2 + $0x30] sm:$0xff]
  %v39 = vld [vmem:[%s2 + $0x38] sm:$0xff]
  %v40 = vld [vmem:[%s2 + $0x40] sm:$0xff]
  %v41 = vld [vmem:[%s2 + $0x48] sm:$0xff]
  %v42 = vld [vmem:[%s2 + $0x50] sm:$0xff]
  %v43 = vld [vmem:[%s2 + $0x58] sm:$0xff]
  %v44 = vld [vmem:[%s2 + $0x60] sm:$0xff]
  %v45 = vld [vmem:[%s2 + $0x68] sm:$0xff]
  %v46 = vld [vmem:[%s2 + $0x70] sm:$0xff]
  %v47 = vld [vmem:[%s2 + $0x78] sm:$0xff]
  %v48 = vld [vmem:[%s0] sm:$0xf]
  %v49 = vld [vmem:[%s0 + $0x4] sm:$0xf]
  %v50 = vld [vmem:[%s0 + $0x8] sm:$0xf]
  %v51 = vld [vmem:[%s0 + $0xc] sm:$0xf]
  %v52 = vld [vmem:[%s0 + $0x10] sm:$0xf]
  %v53 = vld [vmem:[%s0 + $0x14] sm:$0xf]
  %v54 = vld [vmem:[%s0 + $0x18] sm:$0xf]
  %v55 = vld [vmem:[%s0 + $0x1c] sm:$0xf]
  %v56 = vld [vmem:[%s0 + $0x20] sm:$0xf]
  %v57 = vld [vmem:[%s0 + $0x24] sm:$0xf]
  %v58 = vld [vmem:[%s0 + $0x28] sm:$0xf]
  %v59 = vld [vmem:[%s0 + $0x2c] sm:$0xf]
  %v60 = vld [vmem:[%s0 + $0x30] sm:$0xf]
  %v61 = vld [vmem:[%s0 + $0x34] sm:$0xf]
  %v62 = vld [vmem:[%s0 + $0x38] sm:$0xf]
  %v63 = vld [vmem:[%s0 + $0x3c] sm:$0xf]
  %v64 = vld [vmem:[%s1] sm:$0xf]
  %v65 = vld [vmem:[%s1 + $0x4] sm:$0xf]
  %v66 = vld [vmem:[%s1 + $0x8] sm:$0xf]
  %v67 = vld [vmem:[%s1 + $0xc] sm:$0xf]
  %v68 = vld [vmem:[%s1 + $0x10] sm:$0xf]
  %v69 = vld [vmem:[%s1 + $0x14] sm:$0xf]
  %v70 = vld [vmem:[%s1 + $0x18] sm:$0xf]
  %v71 = vld [vmem:[%s1 + $0x1c] sm:$0xf]
  %v72 = vld [vmem:[%s1 + $0x20] sm:$0xf]
  %v73 = vld [vmem:[%s1 + $0x24] sm:$0xf]
  %v74 = vld [vmem:[%s1 + $0x28] sm:$0xf]
  %v75 = vld [vmem:[%s1 + $0x2c] sm:$0xf]
  %v76 = vld [vmem:[%s1 + $0x30] sm:$0xf]
  %v77 = vld [vmem:[%s1 + $0x34] sm:$0xf]
  %v78 = vld [vmem:[%s1 + $0x38] sm:$0xf]
  %v79 = vld [vmem:[%s1 + $0x3c] sm:$0xf]
  %v96 = vunpack.c.l.b16 %v48
  %v97 = vunpack.c.l.b16 %v49
  %v98 = vunpack.c.l.b16 %v50
  %v99 = vunpack.c.l.b16 %v51
  %v100 = vunpack.c.l.b16 %v52
  %v101 = vunpack.c.l.b16 %v53
  %v102 = vunpack.c.l.b16 %v54
  %v103 = vunpack.c.l.b16 %v55
  %v104 = vunpack.c.l.b16 %v56
  %v105 = vunpack.c.l.b16 %v57
  %v106 = vunpack.c.l.b16 %v58
  %v107 = vunpack.c.l.b16 %v59
  %v108 = vunpack.c.l.b16 %v60
  %v109 = vunpack.c.l.b16 %v61
  %v110 = vunpack.c.l.b16 %v62
  %v111 = vunpack.c.l.b16 %v63
  %v112 = vpack.c.b16 %v97, %v96
  %v113 = vpack.c.b16 %v99, %v98
  %v114 = vpack.c.b16 %v101, %v100
  %v115 = vpack.c.b16 %v103, %v102
  %v116 = vpack.c.b16 %v105, %v104
  %v117 = vpack.c.b16 %v107, %v106
  %v118 = vpack.c.b16 %v109, %v108
  %v119 = vpack.c.b16 %v111, %v110
  %v144 = vunpack.c.l.b16 %v64
  %v145 = vunpack.c.l.b16 %v65
  %v146 = vunpack.c.l.b16 %v66
  %v147 = vunpack.c.l.b16 %v67
  %v148 = vunpack.c.l.b16 %v68
  %v149 = vunpack.c.l.b16 %v69
  %v150 = vunpack.c.l.b16 %v70
  %v151 = vunpack.c.l.b16 %v71
  %v152 = vunpack.c.l.b16 %v72
  %v153 = vunpack.c.l.b16 %v73
  %v154 = vunpack.c.l.b16 %v74
  %v155 = vunpack.c.l.b16 %v75
  %v156 = vunpack.c.l.b16 %v76
  %v157 = vunpack.c.l.b16 %v77
  %v158 = vunpack.c.l.b16 %v78
  %v159 = vunpack.c.l.b16 %v79
  %v160 = vpack.c.b16 %v145, %v144
  %v161 = vpack.c.b16 %v147, %v146
  %v162 = vpack.c.b16 %v149, %v148
  %v163 = vpack.c.b16 %v151, %v150
  %v164 = vpack.c.b16 %v153, %v152
  %v165 = vpack.c.b16 %v155, %v154
  %v166 = vpack.c.b16 %v157, %v156
  %v167 = vpack.c.b16 %v159, %v158
  %176 = vmatprep.subr.bf16.mxu0 0
  %177 = vmatpush1.bf16.msra.mxu0 %v167
  %178 = vmatprep.subr.bf16.mxu0 0
  %179 = vmatpush1.bf16.msra.mxu0 %v166
  %180 = vmatprep.subr.bf16.mxu0 0
  %181 = vmatpush1.bf16.msra.mxu0 %v165
  %182 = vmatprep.subr.bf16.mxu0 0
  %183 = vmatpush1.bf16.msra.mxu0 %v164
  %184 = vmatprep.subr.bf16.mxu0 0
  %185 = vmatpush1.bf16.msra.mxu0 %v163
  %186 = vmatprep.subr.bf16.mxu0 0
  %187 = vmatpush1.bf16.msra.mxu0 %v162
  %188 = vmatprep.subr.bf16.mxu0 0
  %189 = vmatpush1.bf16.msra.mxu0 %v161
  %190 = vmatprep.subr.bf16.mxu0 0
  %191 = vmatpush1.bf16.msra.mxu0 %v160
  %192 = vmatprep.subr.bf16.mxu0 0
  %193 = vmatpush2.bf16.msra.mxu0 0
  %194 = vmatprep.subr.bf16.mxu0 0
  %195 = vmatpush2.bf16.msra.mxu0 0
  %196 = vmatprep.subr.bf16.mxu0 0
  %197 = vmatpush2.bf16.msra.mxu0 0
  %198 = vmatprep.subr.bf16.mxu0 0
  %199 = vmatpush2.bf16.msra.mxu0 0
  %200 = vmatprep.subr.bf16.mxu0 0
  %201 = vmatpush2.bf16.msra.mxu0 0
  %202 = vmatprep.subr.bf16.mxu0 0
  %203 = vmatpush2.bf16.msra.mxu0 0
  %204 = vmatprep.subr.bf16.mxu0 0
  %205 = vmatpush2.bf16.msra.mxu0 0
  %206 = vmatprep.subr.bf16.mxu0 0
  %207 = vmatpush2.bf16.msra.mxu0 0
  %208 = vmatprep.mubr.bf16.mxu0 0
  %209 = vmatmul.mubr.bf16.gmra.mxu0 %v112
  %v210 = vpop.f32.mrf.mxu0
  %v211 = vadd.f32 0.0, %v210
  %v212 = vpop.f32.mrf.mxu0
  %v213 = vpop.f32.mrf.mxu0
  %v214 = vadd.f32 0.0, %v213
  %v215 = vpop.f32.mrf.mxu0
  %216 = vmatprep.mubr.bf16.mxu0 0
  %217 = vmatmul.mubr.bf16.gmra.mxu0 %v113
  %v218 = vpop.f32.mrf.mxu0
  %v219 = vadd.f32 0.0, %v218
  %v220 = vpop.f32.mrf.mxu0
  %v221 = vpop.f32.mrf.mxu0
  %v222 = vadd.f32 0.0, %v221
  %v223 = vpop.f32.mrf.mxu0
  %224 = vmatprep.mubr.bf16.mxu0 0
  %225 = vmatmul.mubr.bf16.gmra.mxu0 %v114
  %v226 = vpop.f32.mrf.mxu0
  %v227 = vadd.f32 0.0, %v226
  %v228 = vpop.f32.mrf.mxu0
  %v229 = vpop.f32.mrf.mxu0
  %v230 = vadd.f32 0.0, %v229
  %v231 = vpop.f32.mrf.mxu0
  %232 = vmatprep.mubr.bf16.mxu0 0
  %233 = vmatmul.mubr.bf16.gmra.mxu0 %v115
  %v234 = vpop.f32.mrf.mxu0
  %v235 = vadd.f32 0.0, %v234
  %v236 = vpop.f32.mrf.mxu0
  %v237 = vpop.f32.mrf.mxu0
  %v238 = vadd.f32 0.0, %v237
  %v239 = vpop.f32.mrf.mxu0
  %240 = vmatprep.mubr.bf16.mxu0 0
  %241 = vmatmul.mubr.bf16.gmra.mxu0 %v116
  %v242 = vpop.f32.mrf.mxu0
  %v243 = vadd.f32 0.0, %v242
  %v244 = vpop.f32.mrf.mxu0
  %v245 = vpop.f32.mrf.mxu0
  %v246 = vadd.f32 0.0, %v245
  %v247 = vpop.f32.mrf.mxu0
  %248 = vmatprep.mubr.bf16.mxu0 0
  %249 = vmatmul.mubr.bf16.gmra.mxu0 %v117
  %v250 = vpop.f32.mrf.mxu0
  %v251 = vadd.f32 0.0, %v250
  %v252 = vpop.f32.mrf.mxu0
  %v253 = vpop.f32.mrf.mxu0
  %v254 = vadd.f32 0.0, %v253
  %v255 = vpop.f32.mrf.mxu0
  %256 = vmatprep.mubr.bf16.mxu0 0
  %257 = vmatmul.mubr.bf16.gmra.mxu0 %v118
  %v258 = vpop.f32.mrf.mxu0
  %v259 = vadd.f32 0.0, %v258
  %v260 = vpop.f32.mrf.mxu0
  %v261 = vpop.f32.mrf.mxu0
  %v262 = vadd.f32 0.0, %v261
  %v263 = vpop.f32.mrf.mxu0
  %264 = vmatprep.mubr.bf16.mxu0 0
  %265 = vmatmul.mubr.bf16.gmra.mxu0 %v119
  %v266 = vpop.f32.mrf.mxu0
  %v267 = vadd.f32 0.0, %v266
  %v268 = vpop.f32.mrf.mxu0
  %v269 = vpop.f32.mrf.mxu0
  %v270 = vadd.f32 0.0, %v269
  %v271 = vpop.f32.mrf.mxu0
  %272 = vdwg.mxu0
  %v273 = vadd.f32 %v32, %v211
  %v274 = vadd.f32 %v33, %v214
  %v275 = vadd.f32 %v34, %v219
  %v276 = vadd.f32 %v35, %v222
  %v277 = vadd.f32 %v36, %v227
  %v278 = vadd.f32 %v37, %v230
  %v279 = vadd.f32 %v38, %v235
  %v280 = vadd.f32 %v39, %v238
  %v281 = vadd.f32 %v40, %v243
  %v282 = vadd.f32 %v41, %v246
  %v283 = vadd.f32 %v42, %v251
  %v284 = vadd.f32 %v43, %v254
  %v285 = vadd.f32 %v44, %v259
  %v286 = vadd.f32 %v45, %v262
  %v287 = vadd.f32 %v46, %v267
  %v288 = vadd.f32 %v47, %v270
  %289 = vst [vmem:[%s2] sm:$0xff] %v273
  %290 = vst [vmem:[%s2 + $0x8] sm:$0xff] %v274
  %291 = vst [vmem:[%s2 + $0x10] sm:$0xff] %v275
  %292 = vst [vmem:[%s2 + $0x18] sm:$0xff] %v276
  %293 = vst [vmem:[%s2 + $0x20] sm:$0xff] %v277
  %294 = vst [vmem:[%s2 + $0x28] sm:$0xff] %v278
  %295 = vst [vmem:[%s2 + $0x30] sm:$0xff] %v279
  %296 = vst [vmem:[%s2 + $0x38] sm:$0xff] %v280
  %297 = vst [vmem:[%s2 + $0x40] sm:$0xff] %v281
  %298 = vst [vmem:[%s2 + $0x48] sm:$0xff] %v282
  %299 = vst [vmem:[%s2 + $0x50] sm:$0xff] %v283
  %300 = vst [vmem:[%s2 + $0x58] sm:$0xff] %v284
  %301 = vst [vmem:[%s2 + $0x60] sm:$0xff] %v285
  %302 = vst [vmem:[%s2 + $0x68] sm:$0xff] %v286
  %303 = vst [vmem:[%s2 + $0x70] sm:$0xff] %v287
  %304 = vst [vmem:[%s2 + $0x78] sm:$0xff] %v288
  // Predicated region
  $region14: #{encoder_forward.4} parent=0 // pred_check
    %p305 = pneg %p12
  $region15: #{encoder_forward.4} parent=0 // pred_check_branch
    %307 = sbr.rel (%p305) target = $region17
  $region16: #{encoder_forward.4} parent=0 // pred_region
    %v308 = vld [vmem:[%s2] sm:$0xff]
    %v309 = vld [vmem:[%s2 + $0x8] sm:$0xff]
    %v310 = vld [vmem:[%s2 + $0x10] sm:$0xff]
    %v311 = vld [vmem:[%s2 + $0x18] sm:$0xff]
    %v312 = vld [vmem:[%s2 + $0x20] sm:$0xff]
    %v313 = vld [vmem:[%s2 + $0x28] sm:$0xff]
    %v314 = vld [vmem:[%s2 + $0x30] sm:$0xff]
    %v315 = vld [vmem:[%s2 + $0x38] sm:$0xff]
    %v316 = vld [vmem:[%s2 + $0x40] sm:$0xff]
    %v317 = vld [vmem:[%s2 + $0x48] sm:$0xff]
    %v318 = vld [vmem:[%s2 + $0x50] sm:$0xff]
    %v319 = vld [vmem:[%s2 + $0x58] sm:$0xff]
    %v320 = vld [vmem:[%s2 + $0x60] sm:$0xff]
    %v321 = vld [vmem:[%s2 + $0x68] sm:$0xff]
    %v322 = vld [vmem:[%s2 + $0x70] sm:$0xff]
    %v323 = vld [vmem:[%s2 + $0x78] sm:$0xff]
    %v324 = vmax.f32 %v308, 0.0
    %v325 = vmax.f32 %v309, 0.0
    %v326 = vmax.f32 %v310, 0.0
    %v327 = vmax.f32 %v311, 0.0
    %v328 = vmax.f32 %v312, 0.0
    %v329 = vmax.f32 %v313, 0.0
    %v330 = vmax.f32 %v314, 0.0
    %v331 = vmax.f32 %v315, 0.0
    %v332 = vmax.f32 %v316, 0.0
    %v333 = vmax.f32 %v317, 0.0
    %v334 = vmax.f32 %v318, 0.0
    %v335 = vmax.f32 %v319, 0.0
    %v336 = vmax.f32 %v320, 0.0
    %v337 = vmax.f32 %v321, 0.0
    %v338 = vmax.f32 %v322, 0.0
    %v339 = vmax.f32 %v323, 0.0
    %340 = vst [vmem:[%s2] sm:$0xff] %v324
    %341 = vst [vmem:[%s2 + $0x8] sm:$0xff] %v325
    %342 = vst [vmem:[%s2 + $0x10] sm:$0xff] %v326
    %343 = vst [vmem:[%s2 + $0x18] sm:$0xff] %v327
    %344 = vst [vmem:[%s2 + $0x20] sm:$0xff] %v328
    %345 = vst [vmem:[%s2 + $0x28] sm:$0xff] %v329
    %346 = vst [vmem:[%s2 + $0x30] sm:$0xff] %v330
    %347 = vst [vmem:[%s2 + $0x38] sm:$0xff] %v331
    %348 = vst [vmem:[%s2 + $0x40] sm:$0xff] %v332
    %349 = vst [vmem:[%s2 + $0x48] sm:$0xff] %v333
    %350 = vst [vmem:[%s2 + $0x50] sm:$0xff] %v334
    %351 = vst [vmem:[%s2 + $0x58] sm:$0xff] %v335
    %352 = vst [vmem:[%s2 + $0x60] sm:$0xff] %v336
    %353 = vst [vmem:[%s2 + $0x68] sm:$0xff] %v337
    %354 = vst [vmem:[%s2 + $0x70] sm:$0xff] %v338
    %355 = vst [vmem:[%s2 + $0x78] sm:$0xff] %v339
  $region17: #{encoder_forward.4} parent=0 // pred_fallthru
    _
  // Predicated region
  $region18: #{encoder_forward.4} parent=0 // pred_check
    _
  $region19: #{encoder_forward.4} parent=0 // pred_check_branch
    %357 = sbr.rel (0) target = $region21
  $region20: #{encoder_forward.4} parent=0 // pred_region
    _
  $region21: #{encoder_forward.4} parent=0 // pred_fallthru
    _
  // Predicated region
  $region22: #{encoder_forward.4} parent=0 // pred_check
    _
  $region23: #{encoder_forward.4} parent=0 // pred_check_branch
    %359 = sbr.rel (0) target = $region25
  $region24: #{encoder_forward.4} parent=0 // pred_region
    _
  $region25: #{encoder_forward.4} parent=0 // pred_fallthru
    _

// kernel: encoder_forward.5
$region0: #{encoder_forward.5}
  #allocation0 [shape = 'u32[]', space=smem, size = 0x4, offset = 0x4, fixed_abs, tag = 'smem constant byte address 0x4 - core index']
  #allocation1 [shape = 'u32[144,128]{1,0:T(1,128)}', space=vmem, size = 0x12000, scoped, tag = 'internal scratch']
  %s0 = inlined_call_operand.vmem [shape: bf16[32,128], index: 0, kind: input, shape index: {}]
  %s1 = inlined_call_operand.vmem [shape: bf16[128,128], index: 1, kind: input, shape index: {}]
  %s2 = inlined_call_operand.vmem [shape: f32[1,128], index: 2, kind: input, shape index: {}]
  %s3 = inlined_call_operand.vmem [shape: f32[1,128], index: 3, kind: input, shape index: {}]
  %s4 = inlined_call_operand.vmem [shape: f32[32,128], index: 4, kind: output, shape index: {}]
  %s5 = sld [smem:[#allocation0]]
  $region34: #{encoder_forward.5} parent=0
    _
  %s7 = ssub.s32 1, %s5
  %s8 = scalar_select 0, %s7, %s5
  // Predicated region
  $region2: #{encoder_forward.5} parent=0 // pred_check
    _
  $region3: #{encoder_forward.5} parent=0 // pred_check_branch
    %10 = sbr.rel (0) target = $region5
  $region4: #{encoder_forward.5} parent=0 // pred_region
    _
  $region5: #{encoder_forward.5} parent=0 // pred_fallthru
    _
  // Predicated region
  $region6: #{encoder_forward.5} parent=0 // pred_check
    _
  $region7: #{encoder_forward.5} parent=0 // pred_check_branch
    %12 = sbr.rel (0) target = $region9
  $region8: #{encoder_forward.5} parent=0 // pred_region
    _
  $region9: #{encoder_forward.5} parent=0 // pred_fallthru
    _
  // Predicated region
  $region10: #{encoder_forward.5} parent=0 // pred_check
    _
  $region11: #{encoder_forward.5} parent=0 // pred_check_branch
    %14 = sbr.rel (0) target = $region13
  $region12: #{encoder_forward.5} parent=0 // pred_region
    _
  $region13: #{encoder_forward.5} parent=0 // pred_fallthru
    _
  // Predicated region
  $region14: #{encoder_forward.5} parent=0 // pred_check
    _
  $region15: #{encoder_forward.5} parent=0 // pred_check_branch
    %16 = sbr.rel (0) target = $region17
  $region16: #{encoder_forward.5} parent=0 // pred_region
    _
  $region17: #{encoder_forward.5} parent=0 // pred_fallthru
    _
  %p18 = scmp.eq.s32.totalorder 0, 0
  // Predicated region
  $region18: #{encoder_forward.5} parent=0 // pred_check
    %p19 = pneg %p18
  $region19: #{encoder_forward.5} parent=0 // pred_check_branch
    %21 = sbr.rel (%p19) target = $region21
  $region20: #{encoder_forward.5} parent=0 // pred_region
    %22 = vst [vmem:[%s4] sm:$0xff] 0.0
    %23 = vst [vmem:[%s4 + $0x8] sm:$0xff] 0.0
    %24 = vst [vmem:[%s4 + $0x10] sm:$0xff] 0.0
    %25 = vst [vmem:[%s4 + $0x18] sm:$0xff] 0.0
  $region21: #{encoder_forward.5} parent=0 // pred_fallthru
    _
  %v26 = vld [vmem:[%s4] sm:$0xff]
  %v27 = vld [vmem:[%s4 + $0x8] sm:$0xff]
  %v28 = vld [vmem:[%s4 + $0x10] sm:$0xff]
  %v29 = vld [vmem:[%s4 + $0x18] sm:$0xff]
  %v30 = vld [vmem:[%s0] sm:$0xf]
  %v31 = vld [vmem:[%s0 + $0x4] sm:$0xf]
  %v32 = vld [vmem:[%s0 + $0x8] sm:$0xf]
  %v33 = vld [vmem:[%s0 + $0xc] sm:$0xf]
  %v34 = vld [vmem:[%s1] sm:$0xf]
  %v35 = vld [vmem:[%s1 + $0x4] sm:$0xf]
  %v36 = vld [vmem:[%s1 + $0x8] sm:$0xf]
  %v37 = vld [vmem:[%s1 + $0xc] sm:$0xf]
  %v38 = vld [vmem:[%s1 + $0x10] sm:$0xf]
  %v39 = vld [vmem:[%s1 + $0x14] sm:$0xf]
  %v40 = vld [vmem:[%s1 + $0x18] sm:$0xf]
  %v41 = vld [vmem:[%s1 + $0x1c] sm:$0xf]
  %v42 = vld [vmem:[%s1 + $0x20] sm:$0xf]
  %v43 = vld [vmem:[%s1 + $0x24] sm:$0xf]
  %v44 = vld [vmem:[%s1 + $0x28] sm:$0xf]
  %v45 = vld [vmem:[%s1 + $0x2c] sm:$0xf]
  %v46 = vld [vmem:[%s1 + $0x30] sm:$0xf]
  %v47 = vld [vmem:[%s1 + $0x34] sm:$0xf]
  %v48 = vld [vmem:[%s1 + $0x38] sm:$0xf]
  %v49 = vld [vmem:[%s1 + $0x3c] sm:$0xf]
  %v54 = vunpack.c.l.b16 %v30
  %v55 = vunpack.c.l.b16 %v31
  %v56 = vunpack.c.l.b16 %v32
  %v57 = vunpack.c.l.b16 %v33
  %v58 = vpack.c.b16 %v55, %v54
  %v59 = vpack.c.b16 %v57, %v56
  %v78 = vunpack.c.l.b16 %v34
  %v79 = vunpack.c.l.b16 %v35
  %v80 = vunpack.c.l.b16 %v36
  %v81 = vunpack.c.l.b16 %v37
  %v82 = vunpack.c.l.b16 %v38
  %v83 = vunpack.c.l.b16 %v39
  %v84 = vunpack.c.l.b16 %v40
  %v85 = vunpack.c.l.b16 %v41
  %v86 = vunpack.c.l.b16 %v42
  %v87 = vunpack.c.l.b16 %v43
  %v88 = vunpack.c.l.b16 %v44
  %v89 = vunpack.c.l.b16 %v45
  %v90 = vunpack.c.l.b16 %v46
  %v91 = vunpack.c.l.b16 %v47
  %v92 = vunpack.c.l.b16 %v48
  %v93 = vunpack.c.l.b16 %v49
  %v94 = vpack.c.b16 %v79, %v78
  %v95 = vpack.c.b16 %v81, %v80
  %v96 = vpack.c.b16 %v83, %v82
  %v97 = vpack.c.b16 %v85, %v84
  %v98 = vpack.c.b16 %v87, %v86
  %v99 = vpack.c.b16 %v89, %v88
  %v100 = vpack.c.b16 %v91, %v90
  %v101 = vpack.c.b16 %v93, %v92
  %110 = vmatprep.subr.bf16.mxu0 0
  %111 = vmatpush1.bf16.msra.mxu0 %v101
  %112 = vmatprep.subr.bf16.mxu0 0
  %113 = vmatpush1.bf16.msra.mxu0 %v100
  %114 = vmatprep.subr.bf16.mxu0 0
  %115 = vmatpush1.bf16.msra.mxu0 %v99
  %116 = vmatprep.subr.bf16.mxu0 0
  %117 = vmatpush1.bf16.msra.mxu0 %v98
  %118 = vmatprep.subr.bf16.mxu0 0
  %119 = vmatpush1.bf16.msra.mxu0 %v97
  %120 = vmatprep.subr.bf16.mxu0 0
  %121 = vmatpush1.bf16.msra.mxu0 %v96
  %122 = vmatprep.subr.bf16.mxu0 0
  %123 = vmatpush1.bf16.msra.mxu0 %v95
  %124 = vmatprep.subr.bf16.mxu0 0
  %125 = vmatpush1.bf16.msra.mxu0 %v94
  %126 = vmatprep.subr.bf16.mxu0 0
  %127 = vmatpush2.bf16.msra.mxu0 0
  %128 = vmatprep.subr.bf16.mxu0 0
  %129 = vmatpush2.bf16.msra.mxu0 0
  %130 = vmatprep.subr.bf16.mxu0 0
  %131 = vmatpush2.bf16.msra.mxu0 0
  %132 = vmatprep.subr.bf16.mxu0 0
  %133 = vmatpush2.bf16.msra.mxu0 0
  %134 = vmatprep.subr.bf16.mxu0 0
  %135 = vmatpush2.bf16.msra.mxu0 0
  %136 = vmatprep.subr.bf16.mxu0 0
  %137 = vmatpush2.bf16.msra.mxu0 0
  %138 = vmatprep.subr.bf16.mxu0 0
  %139 = vmatpush2.bf16.msra.mxu0 0
  %140 = vmatprep.subr.bf16.mxu0 0
  %141 = vmatpush2.bf16.msra.mxu0 0
  %142 = vmatprep.mubr.bf16.mxu0 0
  %143 = vmatmul.mubr.bf16.gmra.mxu0 %v58
  %v144 = vpop.f32.mrf.mxu0
  %v145 = vadd.f32 0.0, %v144
  %v146 = vpop.f32.mrf.mxu0
  %v147 = vpop.f32.mrf.mxu0
  %v148 = vadd.f32 0.0, %v147
  %v149 = vpop.f32.mrf.mxu0
  %150 = vmatprep.mubr.bf16.mxu0 0
  %151 = vmatmul.mubr.bf16.gmra.mxu0 %v59
  %v152 = vpop.f32.mrf.mxu0
  %v153 = vadd.f32 0.0, %v152
  %v154 = vpop.f32.mrf.mxu0
  %v155 = vpop.f32.mrf.mxu0
  %v156 = vadd.f32 0.0, %v155
  %v157 = vpop.f32.mrf.mxu0
  %158 = vdwg.mxu0
  %v159 = vadd.f32 %v26, %v145
  %v160 = vadd.f32 %v27, %v148
  %v161 = vadd.f32 %v28, %v153
  %v162 = vadd.f32 %v29, %v156
  %163 = vst [vmem:[%s4] sm:$0xff] %v159
  %164 = vst [vmem:[%s4 + $0x8] sm:$0xff] %v160
  %165 = vst [vmem:[%s4 + $0x10] sm:$0xff] %v161
  %166 = vst [vmem:[%s4 + $0x18] sm:$0xff] %v162
  // Predicated region
  $region22: #{encoder_forward.5} parent=0 // pred_check
    %p167 = pneg %p18
  $region23: #{encoder_forward.5} parent=0 // pred_check_branch
    %169 = sbr.rel (%p167) target = $region25
  $region24: #{encoder_forward.5} parent=0 // pred_region
    %v170 = vld [vmem:[%s4] sm:$0xff]
    %v171 = vld [vmem:[%s4 + $0x8] sm:$0xff]
    %v172 = vld [vmem:[%s4 + $0x10] sm:$0xff]
    %v173 = vld [vmem:[%s4 + $0x18] sm:$0xff]
    %v174 = vadd.f32 %v170, %v171
    %v175 = vadd.f32 %v174, %v172
    %v176 = vadd.f32 %v175, %v173
    %v177 = vrot.slane %v176, 4
    %v178 = vadd.f32 %v176, %v177
    %v179 = vrot.slane %v178, 2
    %v180 = vadd.f32 %v178, %v179
    %v181 = vrot.slane %v180, 1
    %v182 = vadd.f32 %v180, %v181
    %v183 = vmul.f32 %v182, 0.03125
    %v184 = vmul.f32 %v170, %v170
    %v185 = vmul.f32 %v171, %v171
    %v186 = vmul.f32 %v172, %v172
    %v187 = vmul.f32 %v173, %v173
    %v188 = vadd.f32 %v184, %v185
    %v189 = vadd.f32 %v188, %v186
    %v190 = vadd.f32 %v189, %v187
    %v191 = vrot.slane %v190, 4
    %v192 = vadd.f32 %v190, %v191
    %v193 = vrot.slane %v192, 2
    %v194 = vadd.f32 %v192, %v193
    %v195 = vrot.slane %v194, 1
    %v196 = vadd.f32 %v194, %v195
    %v197 = vmul.f32 %v196, 0.03125
    %v198 = vmul.f32 %v183, %v183
    %v199 = vsub.f32 %v197, %v198
    %v200 = vld [vmem:[%s2] sm:$0x1]
    %v201 = vadd.f32 %v199, 1e-05
    %v202 = vrsqrt.pop %v201
    %v203 = vmul.f32 %v200, %v202
    %v204 = vld [vmem:[%s3] sm:$0x1]
    %v205 = vmul.f32 %v183, %v203
    %v206 = vsub.f32 %v204, %v205
    %v208 = vlaneseq
    %v209 = vshrl.u32 %v208, 7
    %v210 = vsub.s32 0, %v209
    %v211 = vrot.slane %v203, %v210
    %v213 = vmul.f32 %v170, %v211
    %v214 = vmul.f32 %v171, %v211
    %v215 = vmul.f32 %v172, %v211
    %v216 = vmul.f32 %v173, %v211
    %v218 = vlaneseq
    %v219 = vshrl.u32 %v218, 7
    %v220 = vsub.s32 0, %v219
    %v221 = vrot.slane %v206, %v220
    %v223 = vadd.f32 %v213, %v221
    %v224 = vadd.f32 %v214, %v221
    %v225 = vadd.f32 %v215, %v221
    %v226 = vadd.f32 %v216, %v221
    %v227 = vmax.f32 %v223, 0.0
    %v228 = vmax.f32 %v224, 0.0
    %v229 = vmax.f32 %v225, 0.0
    %v230 = vmax.f32 %v226, 0.0
    %231 = vst [vmem:[%s4] sm:$0xff] %v227
    %232 = vst [vmem:[%s4 + $0x8] sm:$0xff] %v228
    %233 = vst [vmem:[%s4 + $0x10] sm:$0xff] %v229
    %234 = vst [vmem:[%s4 + $0x18] sm:$0xff] %v230
  $region25: #{encoder_forward.5} parent=0 // pred_fallthru
    _
  // Predicated region
  $region26: #{encoder_forward.5} parent=0 // pred_check
    _
  $region27: #{encoder_forward.5} parent=0 // pred_check_branch
    %236 = sbr.rel (0) target = $region29
  $region28: #{encoder_forward.5} parent=0 // pred_region
    _
  $region29: #{encoder_forward.5} parent=0 // pred_fallthru
    _
  // Predicated region
  $region30: #{encoder_forward.5} parent=0 // pred_check
    _
  $region31: #{encoder_forward.5} parent=0 // pred_check_branch
    %238 = sbr.rel (0) target = $region33
  $region32: #{encoder_forward.5} parent=0 // pred_region
    _
  $region33: #{encoder_forward.5} parent=0 // pred_fallthru
    _

// kernel: encoder_forward.6
$region0: #{encoder_forward.6}
  #allocation0 [shape = 'u32[]', space=smem, size = 0x4, offset = 0x4, fixed_abs, tag = 'smem constant byte address 0x4 - core index']
  #allocation1 [shape = 'u32[144,128]{1,0:T(1,128)}', space=vmem, size = 0x12000, scoped, tag = 'internal scratch']
  %s0 = inlined_call_operand.vmem [shape: bf16[16,256], index: 0, kind: input, shape index: {}]
  %s1 = inlined_call_operand.vmem [shape: bf16[256,128], index: 1, kind: input, shape index: {}]
  %s2 = inlined_call_operand.vmem [shape: f32[1,128], index: 2, kind: input, shape index: {}]
  %s3 = inlined_call_operand.vmem [shape: f32[1,128], index: 3, kind: input, shape index: {}]
  %s4 = inlined_call_operand.vmem [shape: f32[16,128], index: 4, kind: output, shape index: {}]
  %s5 = sld [smem:[#allocation0]]
  $region34: #{encoder_forward.6} parent=0
    _
  %s7 = ssub.s32 1, %s5
  %s8 = scalar_select 0, %s7, %s5
  // Predicated region
  $region2: #{encoder_forward.6} parent=0 // pred_check
    _
  $region3: #{encoder_forward.6} parent=0 // pred_check_branch
    %10 = sbr.rel (0) target = $region5
  $region4: #{encoder_forward.6} parent=0 // pred_region
    _
  $region5: #{encoder_forward.6} parent=0 // pred_fallthru
    _
  // Predicated region
  $region6: #{encoder_forward.6} parent=0 // pred_check
    _
  $region7: #{encoder_forward.6} parent=0 // pred_check_branch
    %12 = sbr.rel (0) target = $region9
  $region8: #{encoder_forward.6} parent=0 // pred_region
    _
  $region9: #{encoder_forward.6} parent=0 // pred_fallthru
    _
  // Predicated region
  $region10: #{encoder_forward.6} parent=0 // pred_check
    _
  $region11: #{encoder_forward.6} parent=0 // pred_check_branch
    %14 = sbr.rel (0) target = $region13
  $region12: #{encoder_forward.6} parent=0 // pred_region
    _
  $region13: #{encoder_forward.6} parent=0 // pred_fallthru
    _
  // Predicated region
  $region14: #{encoder_forward.6} parent=0 // pred_check
    _
  $region15: #{encoder_forward.6} parent=0 // pred_check_branch
    %16 = sbr.rel (0) target = $region17
  $region16: #{encoder_forward.6} parent=0 // pred_region
    _
  $region17: #{encoder_forward.6} parent=0 // pred_fallthru
    _
  %p18 = scmp.eq.s32.totalorder 0, 0
  // Predicated region
  $region18: #{encoder_forward.6} parent=0 // pred_check
    %p19 = pneg %p18
  $region19: #{encoder_forward.6} parent=0 // pred_check_branch
    %21 = sbr.rel (%p19) target = $region21
  $region20: #{encoder_forward.6} parent=0 // pred_region
    %22 = vst [vmem:[%s4] sm:$0xff] 0.0
    %23 = vst [vmem:[%s4 + $0x8] sm:$0xff] 0.0
  $region21: #{encoder_forward.6} parent=0 // pred_fallthru
    _
  %v24 = vld [vmem:[%s4] sm:$0xff]
  %v25 = vld [vmem:[%s4 + $0x8] sm:$0xff]
  %v26 = vld [vmem:[%s0] sm:$0xff]
  %v27 = vld [vmem:[%s0 + $0x8] sm:$0xff]
  %v28 = vld [vmem:[%s1] sm:$0xf]
  %v29 = vld [vmem:[%s1 + $0x4] sm:$0xf]
  %v30 = vld [vmem:[%s1 + $0x8] sm:$0xf]
  %v31 = vld [vmem:[%s1 + $0xc] sm:$0xf]
  %v32 = vld [vmem:[%s1 + $0x10] sm:$0xf]
  %v33 = vld [vmem:[%s1 + $0x14] sm:$0xf]
  %v34 = vld [vmem:[%s1 + $0x18] sm:$0xf]
  %v35 = vld [vmem:[%s1 + $0x1c] sm:$0xf]
  %v36 = vld [vmem:[%s1 + $0x20] sm:$0xf]
  %v37 = vld [vmem:[%s1 + $0x24] sm:$0xf]
  %v38 = vld [vmem:[%s1 + $0x28] sm:$0xf]
  %v39 = vld [vmem:[%s1 + $0x2c] sm:$0xf]
  %v40 = vld [vmem:[%s1 + $0x30] sm:$0xf]
  %v41 = vld [vmem:[%s1 + $0x34] sm:$0xf]
  %v42 = vld [vmem:[%s1 + $0x38] sm:$0xf]
  %v43 = vld [vmem:[%s1 + $0x3c] sm:$0xf]
  %v44 = vld [vmem:[%s1 + $0x40] sm:$0xf]
  %v45 = vld [vmem:[%s1 + $0x44] sm:$0xf]
  %v46 = vld [vmem:[%s1 + $0x48] sm:$0xf]
  %v47 = vld [vmem:[%s1 + $0x4c] sm:$0xf]
  %v48 = vld [vmem:[%s1 + $0x50] sm:$0xf]
  %v49 = vld [vmem:[%s1 + $0x54] sm:$0xf]
  %v50 = vld [vmem:[%s1 + $0x58] sm:$0xf]
  %v51 = vld [vmem:[%s1 + $0x5c] sm:$0xf]
  %v52 = vld [vmem:[%s1 + $0x60] sm:$0xf]
  %v53 = vld [vmem:[%s1 + $0x64] sm:$0xf]
  %v54 = vld [vmem:[%s1 + $0x68] sm:$0xf]
  %v55 = vld [vmem:[%s1 + $0x6c] sm:$0xf]
  %v56 = vld [vmem:[%s1 + $0x70] sm:$0xf]
  %v57 = vld [vmem:[%s1 + $0x74] sm:$0xf]
  %v58 = vld [vmem:[%s1 + $0x78] sm:$0xf]
  %v59 = vld [vmem:[%s1 + $0x7c] sm:$0xf]
  %v62 = vunpack.c.l.b16 %v26
  %v63 = vunpack.c.h.b16 %v26
  %v64 = vunpack.c.l.b16 %v27
  %v65 = vunpack.c.h.b16 %v27
  %v66 = vpack.c.b16 %v64, %v62
  %v67 = vpack.c.b16 %v65, %v63
  %v102 = vunpack.c.l.b16 %v28
  %v103 = vunpack.c.l.b16 %v29
  %v104 = vunpack.c.l.b16 %v30
  %v105 = vunpack.c.l.b16 %v31
  %v106 = vunpack.c.l.b16 %v32
  %v107 = vunpack.c.l.b16 %v33
  %v108 = vunpack.c.l.b16 %v34
  %v109 = vunpack.c.l.b16 %v35
  %v110 = vunpack.c.l.b16 %v36
  %v111 = vunpack.c.l.b16 %v37
  %v112 = vunpack.c.l.b16 %v38
  %v113 = vunpack.c.l.b16 %v39
  %v114 = vunpack.c.l.b16 %v40
  %v115 = vunpack.c.l.b16 %v41
  %v116 = vunpack.c.l.b16 %v42
  %v117 = vunpack.c.l.b16 %v43
  %v118 = vunpack.c.l.b16 %v44
  %v119 = vunpack.c.l.b16 %v45
  %v120 = vunpack.c.l.b16 %v46
  %v121 = vunpack.c.l.b16 %v47
  %v122 = vunpack.c.l.b16 %v48
  %v123 = vunpack.c.l.b16 %v49
  %v124 = vunpack.c.l.b16 %v50
  %v125 = vunpack.c.l.b16 %v51
  %v126 = vunpack.c.l.b16 %v52
  %v127 = vunpack.c.l.b16 %v53
  %v128 = vunpack.c.l.b16 %v54
  %v129 = vunpack.c.l.b16 %v55
  %v130 = vunpack.c.l.b16 %v56
  %v131 = vunpack.c.l.b16 %v57
  %v132 = vunpack.c.l.b16 %v58
  %v133 = vunpack.c.l.b16 %v59
  %v134 = vpack.c.b16 %v103, %v102
  %v135 = vpack.c.b16 %v105, %v104
  %v136 = vpack.c.b16 %v107, %v106
  %v137 = vpack.c.b16 %v109, %v108
  %v138 = vpack.c.b16 %v111, %v110
  %v139 = vpack.c.b16 %v113, %v112
  %v140 = vpack.c.b16 %v115, %v114
  %v141 = vpack.c.b16 %v117, %v116
  %v142 = vpack.c.b16 %v119, %v118
  %v143 = vpack.c.b16 %v121, %v120
  %v144 = vpack.c.b16 %v123, %v122
  %v145 = vpack.c.b16 %v125, %v124
  %v146 = vpack.c.b16 %v127, %v126
  %v147 = vpack.c.b16 %v129, %v128
  %v148 = vpack.c.b16 %v131, %v130
  %v149 = vpack.c.b16 %v133, %v132
  %166 = vmatprep.subr.bf16.mxu0 0
  %167 = vmatpush1.bf16.msra.mxu0 %v141
  %168 = vmatprep.subr.bf16.mxu0 0
  %169 = vmatpush1.bf16.msra.mxu0 %v140
  %170 = vmatprep.subr.bf16.mxu0 0
  %171 = vmatpush1.bf16.msra.mxu0 %v139
  %172 = vmatprep.subr.bf16.mxu0 0
  %173 = vmatpush1.bf16.msra.mxu0 %v138
  %174 = vmatprep.subr.bf16.mxu0 0
  %175 = vmatpush1.bf16.msra.mxu0 %v137
  %176 = vmatprep.subr.bf16.mxu0 0
  %177 = vmatpush1.bf16.msra.mxu0 %v136
  %178 = vmatprep.subr.bf16.mxu0 0
  %179 = vmatpush1.bf16.msra.mxu0 %v135
  %180 = vmatprep.subr.bf16.mxu0 0
  %181 = vmatpush1.bf16.msra.mxu0 %v134
  %182 = vmatprep.subr.bf16.mxu0 0
  %183 = vmatpush2.bf16.msra.mxu0 %v149
  %184 = vmatprep.subr.bf16.mxu0 0
  %185 = vmatpush2.bf16.msra.mxu0 %v148
  %186 = vmatprep.subr.bf16.mxu0 0
  %187 = vmatpush2.bf16.msra.mxu0 %v147
  %188 = vmatprep.subr.bf16.mxu0 0
  %189 = vmatpush2.bf16.msra.mxu0 %v146
  %190 = vmatprep.subr.bf16.mxu0 0
  %191 = vmatpush2.bf16.msra.mxu0 %v145
  %192 = vmatprep.subr.bf16.mxu0 0
  %193 = vmatpush2.bf16.msra.mxu0 %v144
  %194 = vmatprep.subr.bf16.mxu0 0
  %195 = vmatpush2.bf16.msra.mxu0 %v143
  %196 = vmatprep.subr.bf16.mxu0 0
  %197 = vmatpush2.bf16.msra.mxu0 %v142
  %198 = vmatprep.mubr.bf16.mxu0 %v67
  %199 = vmatmul.mubr.bf16.gmra.mxu0 %v66
  %v200 = vpop.f32.mrf.mxu0
  %v201 = vadd.f32 0.0, %v200
  %v202 = vpop.f32.mrf.mxu0
  %v203 = vpop.f32.mrf.mxu0
  %v204 = vadd.f32 0.0, %v203
  %v205 = vpop.f32.mrf.mxu0
  %206 = vdwg.mxu0
  %v207 = vadd.f32 %v24, %v201
  %v208 = vadd.f32 %v25, %v204
  %209 = vst [vmem:[%s4] sm:$0xff] %v207
  %210 = vst [vmem:[%s4 + $0x8] sm:$0xff] %v208
  // Predicated region
  $region22: #{encoder_forward.6} parent=0 // pred_check
    %p211 = pneg %p18
  $region23: #{encoder_forward.6} parent=0 // pred_check_branch
    %213 = sbr.rel (%p211) target = $region25
  $region24: #{encoder_forward.6} parent=0 // pred_region
    %v214 = vld [vmem:[%s4] sm:$0xff]
    %v215 = vld [vmem:[%s4 + $0x8] sm:$0xff]
    %v216 = vadd.f32 %v214, %v215
    %v217 = vrot.slane %v216, 4
    %v218 = vadd.f32 %v216, %v217
    %v219 = vrot.slane %v218, 2
    %v220 = vadd.f32 %v218, %v219
    %v221 = vrot.slane %v220, 1
    %v222 = vadd.f32 %v220, %v221
    %v223 = vmul.f32 %v222, 0.125
    %v224 = vmul.f32 %v214, %v214
    %v225 = vmul.f32 %v215, %v215
    %v226 = vadd.f32 %v224, %v225
    %v227 = vrot.slane %v226, 4
    %v228 = vadd.f32 %v226, %v227
    %v229 = vrot.slane %v228, 2
    %v230 = vadd.f32 %v228, %v229
    %v231 = vrot.slane %v230, 1
    %v232 = vadd.f32 %v230, %v231
    %v233 = vmul.f32 %v232, 0.125
    %v234 = vmul.f32 %v223, %v223
    %v235 = vsub.f32 %v233, %v234
    %v236 = vld [vmem:[%s2] sm:$0x1]
    %v237 = vadd.f32 %v235, 1e-05
    %v238 = vrsqrt.pop %v237
    %v239 = vmul.f32 %v236, %v238
    %v240 = vld [vmem:[%s3] sm:$0x1]
    %v241 = vmul.f32 %v223, %v239
    %v242 = vsub.f32 %v240, %v241
    %v244 = vlaneseq
    %v245 = vshrl.u32 %v244, 7
    %v246 = vsub.s32 0, %v245
    %v247 = vrot.slane %v239, %v246
    %v249 = vmul.f32 %v214, %v247
    %v250 = vmul.f32 %v215, %v247
    %v252 = vlaneseq
    %v253 = vshrl.u32 %v252, 7
    %v254 = vsub.s32 0, %v253
    %v255 = vrot.slane %v242, %v254
    %v257 = vadd.f32 %v249, %v255
    %v258 = vadd.f32 %v250, %v255
    %v259 = vmax.f32 %v257, 0.0
    %v260 = vmax.f32 %v258, 0.0
    %261 = vst [vmem:[%s4] sm:$0xff] %v259
    %262 = vst [vmem:[%s4 + $0x8] sm:$0xff] %v260
  $region25: #{encoder_forward.6} parent=0 // pred_fallthru
    _
  // Predicated region
  $region26: #{encoder_forward.6} parent=0 // pred_check
    _
  $region27: #{encoder_forward.6} parent=0 // pred_check_branch
    %264 = sbr.rel (0) target = $region29
  $region28: #{encoder_forward.6} parent=0 // pred_region
    _
  $region29: #{encoder_forward.6} parent=0 // pred_fallthru
    _
  // Predicated region
  $region30: #{encoder_forward.6} parent=0 // pred_check
    _
  $region31: #{encoder_forward.6} parent=0 // pred_check_branch
    %266 = sbr.rel (0) target = $region33
  $region32: #{encoder_forward.6} parent=0 // pred_region
    _
  $region33: #{encoder_forward.6} parent=0 // pred_fallthru
    _

// kernel: encoder_forward.7
$region0: #{encoder_forward.7}
  #allocation0 [shape = 'u32[]', space=smem, size = 0x4, offset = 0x4, fixed_abs, tag = 'smem constant byte address 0x4 - core index']
  #allocation1 [shape = 'u32[144,128]{1,0:T(1,128)}', space=vmem, size = 0x12000, scoped, tag = 'internal scratch']
  %s0 = inlined_call_operand.vmem [shape: bf16[16,512], index: 0, kind: input, shape index: {}]
  %s1 = inlined_call_operand.vmem [shape: bf16[512,128], index: 1, kind: input, shape index: {}]
  %s2 = inlined_call_operand.vmem [shape: f32[1,128], index: 2, kind: input, shape index: {}]
  %s3 = inlined_call_operand.vmem [shape: f32[1,128], index: 3, kind: input, shape index: {}]
  %s4 = inlined_call_operand.vmem [shape: f32[16,128], index: 4, kind: output, shape index: {}]
  %s5 = sld [smem:[#allocation0]]
  $region95: #{encoder_forward.7} parent=0
    _
  %s7 = ssub.s32 1, %s5
  %s8 = scalar_select 0, %s7, %s5
  $region1: #{encoder_forward.7} parent=0
    #allocation2 [shape = 'u8[16384]{0}', space=vmem, size = 0x4000, scoped, tag = 'input window, operand 0']
    loop: start=0, step=1, limit=4
    $region2: #{encoder_forward.7} parent=1 // loop_pre_header
      _
    $region3: #{encoder_forward.7} parent=1 // loop_header
      %s10 = sphi 0, %s14
      %p11 = scmp.ge.s32.totalorder %s10, 4
      %s20 = sphi 0, %s22
      %s23 = sphi 0, %s20
      %s24 = sphi 0, %s23
      %s40 = sphi 0, %s24
      %s46 = sphi 0, %s48
      %s49 = sphi 0, %s46
      %s50 = sphi 0, %s49
      %s66 = sphi 0, %s50
      %s70 = sphi 0, %s70
      %s72 = sphi 0, %s70
      %s73 = sphi 0, %s72
      %s87 = sphi 0, %s73
      %s91 = sphi 0, %s91
      %s93 = sphi 0, %s91
      %s94 = sphi 0, %s93
      %s108 = sphi 0, %s94
      %s112 = sphi 0, %s112
      %s114 = sphi 0, %s112
      %s115 = sphi 0, %s114
      %s129 = sphi 0, %s115
    $region4: #{encoder_forward.7} parent=1 // loop_header_branch
      %13 = sbr.rel (%p11) target = $region8
    $region5: #{encoder_forward.7} parent=1 // loop_body
      %s15 = ssub.s32 %s10, 1
      %s16 = ssub.s32 %s10, 2
      %s17 = sadd.s32 %s10, 1
      %s18 = ssub.s32 %s10, %s17
      %p19 = scmp.eq.s32.totalorder %s18, 0
      %s21 = sadd.s32 %s20, 1
      %s22 = scalar_select %p19, %s20, %s21
      %p25 = pneg %p19
      %p26 = scmp.eq.s32.totalorder %s10, 1
      %p27 = por %p25, %p26
      %p28 = scmp.ne.s32.totalorder %s20, %s23
      %p29 = scmp.eq.s32.totalorder %s10, 0
      %p30 = por %p28, %p29
      %p31 = scmp.ne.s32.totalorder %s20, %s23
      %p32 = scmp.eq.s32.totalorder %s15, 1
      %p33 = por %p31, %p32
      %p34 = scmp.ne.s32.totalorder %s23, %s24
      %p35 = scmp.eq.s32.totalorder %s15, 0
      %p36 = por %p34, %p35
      %p37 = scmp.ne.s32.totalorder %s23, %s24
      %p38 = scmp.eq.s32.totalorder %s16, 1
      %p39 = por %p37, %p38
      %p41 = scmp.ne.s32.totalorder %s24, %s40
      %p42 = scmp.eq.s32.totalorder %s16, 0
      %p43 = por %p41, %p42
      %s44 = ssub.s32 %s10, %s17
      %p45 = scmp.eq.s32.totalorder %s44, 0
      %s47 = sadd.s32 %s46, 1
      %s48 = scalar_select %p45, %s46, %s47
      %p51 = pneg %p45
      %p52 = scmp.eq.s32.totalorder %s10, 1
      %p53 = por %p51, %p52
      %p54 = scmp.ne.s32.totalorder %s46, %s49
      %p55 = scmp.eq.s32.totalorder %s10, 0
      %p56 = por %p54, %p55
      %p57 = scmp.ne.s32.totalorder %s46, %s49
      %p58 = scmp.eq.s32.totalorder %s15, 1
      %p59 = por %p57, %p58
      %p60 = scmp.ne.s32.totalorder %s49, %s50
      %p61 = scmp.eq.s32.totalorder %s15, 0
      %p62 = por %p60, %p61
      %p63 = scmp.ne.s32.totalorder %s49, %s50
      %p64 = scmp.eq.s32.totalorder %s16, 1
      %p65 = por %p63, %p64
      %p67 = scmp.ne.s32.totalorder %s50, %s66
      %p68 = scmp.eq.s32.totalorder %s16, 0
      %p69 = por %p67, %p68
      %s71 = sadd.s32 %s70, 1
      %p74 = scmp.eq.s32.totalorder %s10, 1
      %p75 = scmp.ne.s32.totalorder %s70, %s72
      %p76 = scmp.eq.s32.totalorder %s10, 0
      %p77 = por %p75, %p76
      %p78 = scmp.ne.s32.totalorder %s70, %s72
      %p79 = scmp.eq.s32.totalorder %s15, 1
      %p80 = por %p78, %p79
      %p81 = scmp.ne.s32.totalorder %s72, %s73
      %p82 = scmp.eq.s32.totalorder %s15, 0
      %p83 = por %p81, %p82
      %p84 = scmp.ne.s32.totalorder %s72, %s73
      %p85 = scmp.eq.s32.totalorder %s16, 1
      %p86 = por %p84, %p85
      %p88 = scmp.ne.s32.totalorder %s73, %s87
      %p89 = scmp.eq.s32.totalorder %s16, 0
      %p90 = por %p88, %p89
      %s92 = sadd.s32 %s91, 1
      %p95 = scmp.eq.s32.totalorder %s10, 1
      %p96 = scmp.ne.s32.totalorder %s91, %s93
      %p97 = scmp.eq.s32.totalorder %s10, 0
      %p98 = por %p96, %p97
      %p99 = scmp.ne.s32.totalorder %s91, %s93
      %p100 = scmp.eq.s32.totalorder %s15, 1
      %p101 = por %p99, %p100
      %p102 = scmp.ne.s32.totalorder %s93, %s94
      %p103 = scmp.eq.s32.totalorder %s15, 0
      %p104 = por %p102, %p103
      %p105 = scmp.ne.s32.totalorder %s93, %s94
      %p106 = scmp.eq.s32.totalorder %s16, 1
      %p107 = por %p105, %p106
      %p109 = scmp.ne.s32.totalorder %s94, %s108
      %p110 = scmp.eq.s32.totalorder %s16, 0
      %p111 = por %p109, %p110
      %s113 = sadd.s32 %s112, 1
      %p116 = scmp.eq.s32.totalorder %s10, 1
      %p117 = scmp.ne.s32.totalorder %s112, %s114
      %p118 = scmp.eq.s32.totalorder %s10, 0
      %p119 = por %p117, %p118
      %p120 = scmp.ne.s32.totalorder %s112, %s114
      %p121 = scmp.eq.s32.totalorder %s15, 1
      %p122 = por %p120, %p121
      %p123 = scmp.ne.s32.totalorder %s114, %s115
      %p124 = scmp.eq.s32.totalorder %s15, 0
      %p125 = por %p123, %p124
      %p126 = scmp.ne.s32.totalorder %s114, %s115
      %p127 = scmp.eq.s32.totalorder %s16, 1
      %p128 = por %p126, %p127
      %p130 = scmp.ne.s32.totalorder %s115, %s129
      %p131 = scmp.eq.s32.totalorder %s16, 0
      %p132 = por %p130, %p131
      %p133 = scmp.le.s32.totalorder 1, %s10
      %p134 = scmp.lt.s32.totalorder %s10, 3
      %p135 = pnand %p133, %p134
      %p136 = pneg %p135
      // Predicated region
      $region9: #{encoder_forward.7} parent=5 // pred_check
        _
      $region10: #{encoder_forward.7} parent=5 // pred_check_branch
        %138 = sbr.rel (%p135) target = $region12
      $region11: #{encoder_forward.7} parent=5 // pred_region
        %s139 = ssub.s32 %s10, 1
        // Predicated region
        $region13: #{encoder_forward.7} parent=11 // pred_check
          %p140 = pneg %p83
        $region14: #{encoder_forward.7} parent=11 // pred_check_branch
          %142 = sbr.rel (%p140) target = $region16
        $region15: #{encoder_forward.7} parent=11 // pred_region
          _
        $region16: #{encoder_forward.7} parent=11 // pred_fallthru
          _
        // Predicated region
        $region17: #{encoder_forward.7} parent=11 // pred_check
          %p143 = pneg %p104
        $region18: #{encoder_forward.7} parent=11 // pred_check_branch
          %145 = sbr.rel (%p143) target = $region20
        $region19: #{encoder_forward.7} parent=11 // pred_region
          _
        $region20: #{encoder_forward.7} parent=11 // pred_fallthru
          _
      $region12: #{encoder_forward.7} parent=5 // pred_fallthru
        _
      %p146 = scmp.lt.s32.totalorder %s10, 2
      // Predicated region
      $region21: #{encoder_forward.7} parent=5 // pred_check
        %p147 = pneg %p146
      $region22: #{encoder_forward.7} parent=5 // pred_check_branch
        %149 = sbr.rel (%p147) target = $region24
      $region23: #{encoder_forward.7} parent=5 // pred_region
        // Predicated region
        $region25: #{encoder_forward.7} parent=23 // pred_check
          %p150 = pneg %p30
        $region26: #{encoder_forward.7} parent=23 // pred_check_branch
          %152 = sbr.rel (%p150) target = $region28
        $region27: #{encoder_forward.7} parent=23 // pred_region
          %s153 = sand.u32 %s20, 1
          %s154 = sand.u32 %s20, 1
          %s155 = smul.addr %s154, 16
          %s156 = scalar_lea.vmem [#allocation2], %s155
          %s157 = smul.u32 2, %s10
          %s158 = smul.addr %s157, 4
          %s159 = scalar_lea.vmem %s0, %s158
          // Predicated region
          $region29: #{encoder_forward.7} parent=27 // pred_check
            _
          $region30: #{encoder_forward.7} parent=27 // pred_check_branch
            %161 = sbr.rel (0) target = $region32
          $region31: #{encoder_forward.7} parent=27 // pred_region
            // Predicated region
            $region33: #{encoder_forward.7} parent=31 // pred_check
              _
            $region34: #{encoder_forward.7} parent=31 // pred_check_branch
              %163 = sbr.rel (0) target = $region36
            $region35: #{encoder_forward.7} parent=31 // pred_region
              // Predicated region
              $region48: #{encoder_forward.7} parent=35 // pred_check
                _
              $region49: #{encoder_forward.7} parent=35 // pred_check_branch
                %181 = sbr.rel (0) target = $region51
              $region50: #{encoder_forward.7} parent=35 // pred_region
                loop: start=0, step=1, limit=1
                $region52: #{encoder_forward.7} parent=50 // loop_pre_header
                  _
                $region53: #{encoder_forward.7} parent=50 // loop_header
                  %s183 = sphi 0, %s187
                  %p184 = scmp.ge.s32.totalorder %s183, 1
                  %s188 = sphi %s159, %s159
                  %s189 = sphi %s156, %s156
                $region54: #{encoder_forward.7} parent=50 // loop_header_branch
                  %186 = sbr.rel (%p184) target = $region58
                $region55: #{encoder_forward.7} parent=50 // loop_body
                  %v190 = vld [vmem:[%s188] sm:$0xff]
                  %191 = vst [vmem:[%s189] sm:$0xff] %v190
                  %v192 = vld [vmem:[%s188 + $0x10] sm:$0xff]
                  %193 = vst [vmem:[%s189 + $0x8] sm:$0xff] %v192
                $region56: #{encoder_forward.7} parent=50 // loop_footer
                  %s187 = sadd.s32 1, %s183
                $region57: #{encoder_forward.7} parent=50 // loop_footer_branch
                  %182 = sbr.rel target = $region53
                $region58: #{encoder_forward.7} parent=50 // loop_exit
                  _
              $region51: #{encoder_forward.7} parent=35 // pred_fallthru
                _
              // Predicated region
              $region59: #{encoder_forward.7} parent=35 // pred_check
                _
              $region60: #{encoder_forward.7} parent=35 // pred_check_branch
                %195 = sbr.rel target = $region62
              $region61: #{encoder_forward.7} parent=35 // pred_region
                _
              $region62: #{encoder_forward.7} parent=35 // pred_fallthru
                _
            $region36: #{encoder_forward.7} parent=31 // pred_fallthru
              _
            // Predicated region
            $region37: #{encoder_forward.7} parent=31 // pred_check
              _
            $region38: #{encoder_forward.7} parent=31 // pred_check_branch
              %165 = sbr.rel target = $region40
            $region39: #{encoder_forward.7} parent=31 // pred_region
              %s167 = ssub.s32 256, 1
              loop: start=0, step=1, limit=1
              $region41: #{encoder_forward.7} parent=39 // loop_pre_header
                _
              $region42: #{encoder_forward.7} parent=39 // loop_header
                %s169 = sphi 0, %s173
                %p170 = scmp.ge.s32.totalorder %s169, 1
                %s174 = sphi %s159, %s159
                %s175 = sphi %s156, %s156
              $region43: #{encoder_forward.7} parent=39 // loop_header_branch
                %172 = sbr.rel (%p170) target = $region47
              $region44: #{encoder_forward.7} parent=39 // loop_body
                %v176 = vld [vmem:[%s174] sm:%s167]
                %177 = vst [vmem:[%s175] sm:%s167] %v176
                %v178 = vld [vmem:[%s174 + $0x10] sm:%s167]
                %179 = vst [vmem:[%s175 + $0x8] sm:%s167] %v178
              $region45: #{encoder_forward.7} parent=39 // loop_footer
                %s173 = sadd.s32 1, %s169
              $region46: #{encoder_forward.7} parent=39 // loop_footer_branch
                %168 = sbr.rel target = $region42
              $region47: #{encoder_forward.7} parent=39 // loop_exit
                _
            $region40: #{encoder_forward.7} parent=31 // pred_fallthru
              _
          $region32: #{encoder_forward.7} parent=27 // pred_fallthru
            _
          %196 = vnop
        $region28: #{encoder_forward.7} parent=23 // pred_fallthru
          _
        // Predicated region
        $region63: #{encoder_forward.7} parent=23 // pred_check
          %p197 = pneg %p56
        $region64: #{encoder_forward.7} parent=23 // pred_check_branch
          %199 = sbr.rel (%p197) target = $region66
        $region65: #{encoder_forward.7} parent=23 // pred_region
          %s200 = smul.u32 32, %s10
          %p201 = scmp.lt.s32.totalorder %s200, 63
          %s202 = scalar_select %p201, %s200, 63
          %s203 = smul.addr %s202, 4
          %s204 = scalar_lea.vmem %s1, %s203
          %s205 = smul.u32 32, %s10
        $region66: #{encoder_forward.7} parent=23 // pred_fallthru
          _
      $region24: #{encoder_forward.7} parent=5 // pred_fallthru
        _
      %p206 = scmp.le.s32.totalorder 1, %s10
      %p207 = scmp.lt.s32.totalorder %s10, 3
      %p208 = pnand %p206, %p207
      %p209 = pneg %p208
      // Predicated region
      $region67: #{encoder_forward.7} parent=5 // pred_check
        _
      $region68: #{encoder_forward.7} parent=5 // pred_check_branch
        %211 = sbr.rel (%p208) target = $region70
      $region69: #{encoder_forward.7} parent=5 // pred_region
        %s212 = ssub.s32 %s10, 1
        %s213 = sand.u32 %s23, 1
        %s214 = sand.u32 %s23, 1
        %s215 = smul.addr %s214, 16
        %s216 = scalar_lea.vmem [#allocation2], %s215
        // Predicated region
        $region71: #{encoder_forward.7} parent=69 // pred_check
          %p217 = pneg %p36
        $region72: #{encoder_forward.7} parent=69 // pred_check_branch
          %219 = sbr.rel (%p217) target = $region74
        $region73: #{encoder_forward.7} parent=69 // pred_region
          _
        $region74: #{encoder_forward.7} parent=69 // pred_fallthru
          _
        %s220 = sand.u32 %s23, 1
        %s221 = sand.u32 %s23, 1
        %s222 = smul.addr %s221, 16
        %s223 = scalar_lea.vmem [#allocation2], %s222
        %p224 = pneg %p36
        %p225 = pneg %p33
        %s226 = smul.u32 32, %s15
        %p227 = scmp.lt.s32.totalorder %s226, 63
        %s228 = scalar_select %p227, %s226, 63
        %s229 = smul.addr %s228, 4
        %s230 = scalar_lea.vmem %s1, %s229
        %p231 = pneg %p62
        %p232 = pneg %p59
        %p233 = pneg %p83
        %p234 = pneg %p80
        %p235 = pneg %p104
        %p236 = pneg %p101
        %p237 = pneg %p125
        %p238 = pneg %p122
        %s239 = smul.u32 2, %s15
        %s240 = smul.u32 32, %s15
        %p241 = scmp.lt.s32.totalorder %s240, 63
        %s242 = scalar_select %p241, %s240, 63
        %s243 = smul.addr %s242, 4
        %s244 = scalar_lea.vmem %s1, %s243
        %s245 = smul.u32 32, %s15
        %p247 = scmp.eq.s32.totalorder %s15, 0
        // Predicated region
        $region75: #{encoder_forward.7} parent=69 // pred_check
          %p248 = pneg %p247
        $region76: #{encoder_forward.7} parent=69 // pred_check_branch
          %250 = sbr.rel (%p248) target = $region78
        $region77: #{encoder_forward.7} parent=69 // pred_region
          %251 = vst [vmem:[%s4] sm:$0xff] 0.0
          %252 = vst [vmem:[%s4 + $0x8] sm:$0xff] 0.0
        $region78: #{encoder_forward.7} parent=69 // pred_fallthru
          _
        %v253 = vld [vmem:[%s4] sm:$0xff]
        %v254 = vld [vmem:[%s4 + $0x8] sm:$0xff]
        %v255 = vld [vmem:[%s216] sm:$0xff]
        %v256 = vld [vmem:[%s216 + $0x8] sm:$0xff]
        %v257 = vld [vmem:[%s244] sm:$0xf]
        %v258 = vld [vmem:[%s244 + $0x4] sm:$0xf]
        %v259 = vld [vmem:[%s244 + $0x8] sm:$0xf]
        %v260 = vld [vmem:[%s244 + $0xc] sm:$0xf]
        %v261 = vld [vmem:[%s244 + $0x10] sm:$0xf]
        %v262 = vld [vmem:[%s244 + $0x14] sm:$0xf]
        %v263 = vld [vmem:[%s244 + $0x18] sm:$0xf]
        %v264 = vld [vmem:[%s244 + $0x1c] sm:$0xf]
        %v265 = vld [vmem:[%s244 + $0x20] sm:$0xf]
        %v266 = vld [vmem:[%s244 + $0x24] sm:$0xf]
        %v267 = vld [vmem:[%s244 + $0x28] sm:$0xf]
        %v268 = vld [vmem:[%s244 + $0x2c] sm:$0xf]
        %v269 = vld [vmem:[%s244 + $0x30] sm:$0xf]
        %v270 = vld [vmem:[%s244 + $0x34] sm:$0xf]
        %v271 = vld [vmem:[%s244 + $0x38] sm:$0xf]
        %v272 = vld [vmem:[%s244 + $0x3c] sm:$0xf]
        %v273 = vld [vmem:[%s244 + $0x40] sm:$0xf]
        %v274 = vld [vmem:[%s244 + $0x44] sm:$0xf]
        %v275 = vld [vmem:[%s244 + $0x48] sm:$0xf]
        %v276 = vld [vmem:[%s244 + $0x4c] sm:$0xf]
        %v277 = vld [vmem:[%s244 + $0x50] sm:$0xf]
        %v278 = vld [vmem:[%s244 + $0x54] sm:$0xf]
        %v279 = vld [vmem:[%s244 + $0x58] sm:$0xf]
        %v280 = vld [vmem:[%s244 + $0x5c] sm:$0xf]
        %v281 = vld [vmem:[%s244 + $0x60] sm:$0xf]
        %v282 = vld [vmem:[%s244 + $0x64] sm:$0xf]
        %v283 = vld [vmem:[%s244 + $0x68] sm:$0xf]
        %v284 = vld [vmem:[%s244 + $0x6c] sm:$0xf]
        %v285 = vld [vmem:[%s244 + $0x70] sm:$0xf]
        %v286 = vld [vmem:[%s244 + $0x74] sm:$0xf]
        %v287 = vld [vmem:[%s244 + $0x78] sm:$0xf]
        %v288 = vld [vmem:[%s244 + $0x7c] sm:$0xf]
        %v291 = vunpack.c.l.b16 %v255
        %v292 = vunpack.c.h.b16 %v255
        %v293 = vunpack.c.l.b16 %v256
        %v294 = vunpack.c.h.b16 %v256
        %v295 = vpack.c.b16 %v293, %v291
        %v296 = vpack.c.b16 %v294, %v292
        %v331 = vunpack.c.l.b16 %v257
        %v332 = vunpack.c.l.b16 %v258
        %v333 = vunpack.c.l.b16 %v259
        %v334 = vunpack.c.l.b16 %v260
        %v335 = vunpack.c.l.b16 %v261
        %v336 = vunpack.c.l.b16 %v262
        %v337 = vunpack.c.l.b16 %v263
        %v338 = vunpack.c.l.b16 %v264
        %v339 = vunpack.c.l.b16 %v265
        %v340 = vunpack.c.l.b16 %v266
        %v341 = vunpack.c.l.b16 %v267
        %v342 = vunpack.c.l.b16 %v268
        %v343 = vunpack.c.l.b16 %v269
        %v344 = vunpack.c.l.b16 %v270
        %v345 = vunpack.c.l.b16 %v271
        %v346 = vunpack.c.l.b16 %v272
        %v347 = vunpack.c.l.b16 %v273
        %v348 = vunpack.c.l.b16 %v274
        %v349 = vunpack.c.l.b16 %v275
        %v350 = vunpack.c.l.b16 %v276
        %v351 = vunpack.c.l.b16 %v277
        %v352 = vunpack.c.l.b16 %v278
        %v353 = vunpack.c.l.b16 %v279
        %v354 = vunpack.c.l.b16 %v280
        %v355 = vunpack.c.l.b16 %v281
        %v356 = vunpack.c.l.b16 %v282
        %v357 = vunpack.c.l.b16 %v283
        %v358 = vunpack.c.l.b16 %v284
        %v359 = vunpack.c.l.b16 %v285
        %v360 = vunpack.c.l.b16 %v286
        %v361 = vunpack.c.l.b16 %v287
        %v362 = vunpack.c.l.b16 %v288
        %v363 = vpack.c.b16 %v332, %v331
        %v364 = vpack.c.b16 %v334, %v333
        %v365 = vpack.c.b16 %v336, %v335
        %v366 = vpack.c.b16 %v338, %v337
        %v367 = vpack.c.b16 %v340, %v339
        %v368 = vpack.c.b16 %v342, %v341
        %v369 = vpack.c.b16 %v344, %v343
        %v370 = vpack.c.b16 %v346, %v345
        %v371 = vpack.c.b16 %v348, %v347
        %v372 = vpack.c.b16 %v350, %v349
        %v373 = vpack.c.b16 %v352, %v351
        %v374 = vpack.c.b16 %v354, %v353
        %v375 = vpack.c.b16 %v356, %v355
        %v376 = vpack.c.b16 %v358, %v357
        %v377 = vpack.c.b16 %v360, %v359
        %v378 = vpack.c.b16 %v362, %v361
        %395 = vmatprep.subr.bf16.mxu0 0
        %396 = vmatpush1.bf16.msra.mxu0 %v370
        %397 = vmatprep.subr.bf16.mxu0 0
        %398 = vmatpush1.bf16.msra.mxu0 %v369
        %399 = vmatprep.subr.bf16.mxu0 0
        %400 = vmatpush1.bf16.msra.mxu0 %v368
        %401 = vmatprep.subr.bf16.mxu0 0
        %402 = vmatpush1.bf16.msra.mxu0 %v367
        %403 = vmatprep.subr.bf16.mxu0 0
        %404 = vmatpush1.bf16.msra.mxu0 %v366
        %405 = vmatprep.subr.bf16.mxu0 0
        %406 = vmatpush1.bf16.msra.mxu0 %v365
        %407 = vmatprep.subr.bf16.mxu0 0
        %408 = vmatpush1.bf16.msra.mxu0 %v364
        %409 = vmatprep.subr.bf16.mxu0 0
        %410 = vmatpush1.bf16.msra.mxu0 %v363
        %411 = vmatprep.subr.bf16.mxu0 0
        %412 = vmatpush2.bf16.msra.mxu0 %v378
        %413 = vmatprep.subr.bf16.mxu0 0
        %414 = vmatpush2.bf16.msra.mxu0 %v377
        %415 = vmatprep.subr.bf16.mxu0 0
        %416 = vmatpush2.bf16.msra.mxu0 %v376
        %417 = vmatprep.subr.bf16.mxu0 0
        %418 = vmatpush2.bf16.msra.mxu0 %v375
        %419 = vmatprep.subr.bf16.mxu0 0
        %420 = vmatpush2.bf16.msra.mxu0 %v374
        %421 = vmatprep.subr.bf16.mxu0 0
        %422 = vmatpush2.bf16.msra.mxu0 %v373
        %423 = vmatprep.subr.bf16.mxu0 0
        %424 = vmatpush2.bf16.msra.mxu0 %v372
        %425 = vmatprep.subr.bf16.mxu0 0
        %426 = vmatpush2.bf16.msra.mxu0 %v371
        %427 = vmatprep.mubr.bf16.mxu0 %v296
        %428 = vmatmul.mubr.bf16.gmra.mxu0 %v295
        %v429 = vpop.f32.mrf.mxu0
        %v430 = vadd.f32 0.0, %v429
        %v431 = vpop.f32.mrf.mxu0
        %v432 = vpop.f32.mrf.mxu0
        %v433 = vadd.f32 0.0, %v432
        %v434 = vpop.f32.mrf.mxu0
        %435 = vdwg.mxu0
        %v436 = vadd.f32 %v253, %v430
        %v437 = vadd.f32 %v254, %v433
        %438 = vst [vmem:[%s4] sm:$0xff] %v436
        %439 = vst [vmem:[%s4 + $0x8] sm:$0xff] %v437
        %p440 = scmp.eq.s32.totalorder %s15, 1
        // Predicated region
        $region79: #{encoder_forward.7} parent=69 // pred_check
          %p441 = pneg %p440
        $region80: #{encoder_forward.7} parent=69 // pred_check_branch
          %443 = sbr.rel (%p441) target = $region82
        $region81: #{encoder_forward.7} parent=69 // pred_region
          %v444 = vld [vmem:[%s4] sm:$0xff]
          %v445 = vld [vmem:[%s4 + $0x8] sm:$0xff]
          %v446 = vadd.f32 %v444, %v445
          %v447 = vrot.slane %v446, 4
          %v448 = vadd.f32 %v446, %v447
          %v449 = vrot.slane %v448, 2
          %v450 = vadd.f32 %v448, %v449
          %v451 = vrot.slane %v450, 1
          %v452 = vadd.f32 %v450, %v451
          %v453 = vmul.f32 %v452, 0.5
          %v454 = vmul.f32 %v444, %v444
          %v455 = vmul.f32 %v445, %v445
          %v456 = vadd.f32 %v454, %v455
          %v457 = vrot.slane %v456, 4
          %v458 = vadd.f32 %v456, %v457
          %v459 = vrot.slane %v458, 2
          %v460 = vadd.f32 %v458, %v459
          %v461 = vrot.slane %v460, 1
          %v462 = vadd.f32 %v460, %v461
          %v463 = vmul.f32 %v462, 0.5
          %v464 = vmul.f32 %v453, %v453
          %v465 = vsub.f32 %v463, %v464
          %v466 = vld [vmem:[%s2] sm:$0x1]
          %v467 = vadd.f32 %v465, 1e-05
          %v468 = vrsqrt.pop %v467
          %v469 = vmul.f32 %v466, %v468
          %v470 = vld [vmem:[%s3] sm:$0x1]
          %v471 = vmul.f32 %v453, %v469
          %v472 = vsub.f32 %v470, %v471
          %v474 = vlaneseq
          %v475 = vshrl.u32 %v474, 7
          %v476 = vsub.s32 0, %v475
          %v477 = vrot.slane %v469, %v476
          %v479 = vmul.f32 %v444, %v477
          %v480 = vmul.f32 %v445, %v477
          %v482 = vlaneseq
          %v483 = vshrl.u32 %v482, 7
          %v484 = vsub.s32 0, %v483
          %v485 = vrot.slane %v472, %v484
          %v487 = vadd.f32 %v479, %v485
          %v488 = vadd.f32 %v480, %v485
          %v489 = vmax.f32 %v487, 0.0
          %v490 = vmax.f32 %v488, 0.0
          %491 = vst [vmem:[%s4] sm:$0xff] %v489
          %492 = vst [vmem:[%s4 + $0x8] sm:$0xff] %v490
        $region82: #{encoder_forward.7} parent=69 // pred_fallthru
          _
        // Predicated region
        $region83: #{encoder_forward.7} parent=69 // pred_check
          %p493 = pneg %p122
        $region84: #{encoder_forward.7} parent=69 // pred_check_branch
          %495 = sbr.rel (%p493) target = $region86
        $region85: #{encoder_forward.7} parent=69 // pred_region
          _
        $region86: #{encoder_forward.7} parent=69 // pred_fallthru
          _
        // Predicated region
        $region87: #{encoder_forward.7} parent=69 // pred_check
          %p496 = pneg %p122
        $region88: #{encoder_forward.7} parent=69 // pred_check_branch
          %498 = sbr.rel (%p496) target = $region90
        $region89: #{encoder_forward.7} parent=69 // pred_region
          _
        $region90: #{encoder_forward.7} parent=69 // pred_fallthru
          _
      $region70: #{encoder_forward.7} parent=5 // pred_fallthru
        _
      %p499 = scmp.le.s32.totalorder 2, %s10
      // Predicated region
      $region91: #{encoder_forward.7} parent=5 // pred_check
        %p500 = pneg %p499
      $region92: #{encoder_forward.7} parent=5 // pred_check_branch
        %502 = sbr.rel (%p500) target = $region94
      $region93: #{encoder_forward.7} parent=5 // pred_region
        %s503 = ssub.s32 %s10, 2
      $region94: #{encoder_forward.7} parent=5 // pred_fallthru
        _
    $region6: #{encoder_forward.7} parent=1 // loop_footer
      %s14 = sadd.s32 1, %s10
    $region7: #{encoder_forward.7} parent=1 // loop_footer_branch
      %9 = sbr.rel target = $region3
    $region8: #{encoder_forward.7} parent=1 // loop_exit
      _

</llo_original>
